<compile_context>
chip_gen: v5e
topology: v5e:2x2
jax: 0.10.0
libtpu: 0.0.40
codegen_flags: <defaults>
</compile_context>

<pallas_src>
import jax
import jax.numpy as jnp
from jax import lax
from jax.experimental import pallas as pl
from jax.experimental.pallas import tpu as pltpu


def _round_up(x, m):
    return ((x + m - 1) // m) * m


def _pool_kernel(spans_ref, h_ref, wm_ref, wx_ref, b_ref, out_ref,
                 mean_acc, max_acc):
    """Grid = (num_slabs, M).  Step (c, j) pools R spans into accumulator rows.

    spans_ref : SMEM i32 [2, total_rows]   (scalar prefetch: begin row / end row)
    h_ref     : VMEM     [R, S, Hp]        (R hidden rows of this step, bf16/f32)
    wm_ref    : VMEM     [Hp, Hp]          (Pooler.out weight, mean half)
    wx_ref    : VMEM     [Hp, Hp]          (Pooler.out weight, max half)
    b_ref     : VMEM f32 [1, Hp]           (Pooler.out bias)
    out_ref   : VMEM f32 [M*R, Hp]         (this slab's output block)
    mean_acc  : VMEM f32 [M*R, Hp]         (per-slab scratch: mean pools)
    max_acc   : VMEM f32 [M*R, Hp]         (per-slab scratch: max pools)
    """
    c = pl.program_id(0)
    j = pl.program_id(1)
    m = pl.num_programs(1)
    R, S, _ = h_ref.shape

    @pl.when(j == 0)
    def _init():
        mean_acc[...] = jnp.zeros_like(mean_acc)
        max_acc[...] = jnp.zeros_like(max_acc)

    base = (c * m + j) * R          # global span index of this step's first row
    arow = j * R                    # accumulator-local first row

    pos = lax.broadcasted_iota(jnp.int32, (S, 1), 0)          # (S, 1)

    # Static unroll over the R rows of this block: each iteration is pure 2-D
    # (S, Hp) work (mask computed once, reused for both pools).  The kernel is
    # DMA-bound, so the extra instruction count is free filler.
    for r in range(R):
        b = spans_ref[0, base + r]
        e = spans_ref[1, base + r]
        x = h_ref[r].astype(jnp.float32)                      # (S, Hp)

        mask = (pos >= b) & (pos < e)                         # (S, 1)
        valid = e > b
        cnt = jnp.maximum(e - b, 1).astype(jnp.float32)

        # mean pool over the span (Pooler._avgpool)
        x_sum = jnp.sum(jnp.where(mask, x, 0.0), axis=0, keepdims=True)
        x_mean = jnp.where(valid, x_sum / cnt, 0.0)
        # max pool over the span (Pooler._maxpool), guarded for empty spans
        x_max = jnp.max(jnp.where(mask, x, -jnp.inf), axis=0, keepdims=True)
        x_max = jnp.where(valid, x_max, 0.0)

        mean_acc[pl.ds(arow + r, 1), :] = x_mean
        max_acc[pl.ds(arow + r, 1), :] = x_max

    # One batched linear per slab on its last inner step:
    #   out = [mean | max] @ W + bias == mean @ W[:H] + max @ W[H:] + bias
    @pl.when(j == m - 1)
    def _finalize():
        wm = wm_ref[...].astype(jnp.float32)
        wx = wx_ref[...].astype(jnp.float32)
        out = jnp.dot(mean_acc[...], wm, preferred_element_type=jnp.float32)
        out = out + jnp.dot(max_acc[...], wx, preferred_element_type=jnp.float32)
        out = out + b_ref[...].astype(jnp.float32)
        out_ref[...] = out.astype(out_ref.dtype)


def text_encoder_span_pool(last_hiddens, spans, w, bias, *,
                           rows_per_step=8, num_slabs=2,
                           weight_dtype=jnp.bfloat16,
                           vmem_limit_bytes=64 * 1024 * 1024):
    """Pallas equivalent of:
        torch.cat([self.pool(last_hiddens[i:i+1, b:e]) for i,(b,e) in enumerate(spans)])

    last_hiddens: [B, S, H]  (bf16 recommended to halve HBM traffic; f32 also ok)
    spans:        i32 [N, 2] (one (begin, end) per row i, N <= B)
    w:            [2H, H]    (Pooler.out weight, pre-transposed: y = x @ w + b)
    bias:         [H] or [1, H]
    returns:      (f32 [N, H], f32 [1])
    """
    B, S, H = last_hiddens.shape
    N = spans.shape[0]
    if N > B:
        raise ValueError(f"need one hidden row per span: N={N} > B={B}")

    R = _round_up(max(int(rows_per_step), 1), 8)   # spans per grid step (sublane multiple)
    C = max(int(num_slabs), 1)                     # leading "parallel" slabs (2 TCs on v7x)
    n_blocks = -(-N // R)
    M = -(-n_blocks // C)                          # span-blocks per slab
    total_rows = C * M * R
    H_pad = _round_up(max(H, 128), 128)            # lane-dense blocks

    # --- spans: clamp to [0, S], pad, long axis last for cheap SMEM layout ---
    spans = spans.astype(jnp.int32)
    b_ids = jnp.pad(jnp.clip(spans[:, 0], 0, S), (0, total_rows - N))
    e_ids = jnp.pad(jnp.clip(spans[:, 1], 0, S), (0, total_rows - N))
    spans_t = jnp.stack([b_ids, e_ids], axis=0)                 # i32 (2, total_rows)

    # --- hidden states: streamed in the caller's dtype; pad only if needed ---
    h = last_hiddens
    if H_pad != H:
        h = jnp.pad(h, ((0, 0), (0, 0), (0, H_pad - H)))
    if B < total_rows:
        h = jnp.pad(h, ((0, total_rows - B), (0, 0), (0, 0)))

    # --- Pooler.out parameters: split halves first, then pad + cast to bf16 ---
    wm = w[:H, :]
    wx = w[H:2 * H, :]
    if H_pad != H:
        wm = jnp.pad(wm, ((0, H_pad - H), (0, H_pad - H)))
        wx = jnp.pad(wx, ((0, H_pad - H), (0, H_pad - H)))
    wm = wm.astype(weight_dtype)
    wx = wx.astype(weight_dtype)
    bias2 = jnp.reshape(bias, (1, H)).astype(jnp.float32)
    if H_pad != H:
        bias2 = jnp.pad(bias2, ((0, 0), (0, H_pad - H)))

    def _index_h(c, j, spans_ref):
        return (c * M + j, 0, 0)

    def _index_out(c, j, spans_ref):
        return (c, 0)

    def _index_const(c, j, spans_ref):
        return (0, 0)

    def _run(resident_weights):
        if resident_weights:
            # Whole weight/bias arrays resident in VMEM, single-buffered
            # (no per-step double-buffer DMA for constant operands).
            w_specs = [pl.BlockSpec(memory_space=pltpu.MemorySpace.VMEM)] * 3
        else:
            # Fallback: blocked specs with constant index maps (double-buffered).
            w_specs = [pl.BlockSpec((H_pad, H_pad), _index_const),
                       pl.BlockSpec((H_pad, H_pad), _index_const),
                       pl.BlockSpec((1, H_pad), _index_const)]
        grid_spec = pltpu.PrefetchScalarGridSpec(
            num_scalar_prefetch=1,
            grid=(C, M),
            in_specs=[pl.BlockSpec((R, S, H_pad), _index_h)] + w_specs,
            out_specs=pl.BlockSpec((M * R, H_pad), _index_out),
            scratch_shapes=[pltpu.VMEM((M * R, H_pad), jnp.float32),   # mean pools
                            pltpu.VMEM((M * R, H_pad), jnp.float32)],  # max pools
        )
        return pl.pallas_call(
            _pool_kernel,
            out_shape=jax.ShapeDtypeStruct((total_rows, H_pad), jnp.float32),
            grid_spec=grid_spec,
            compiler_params=pltpu.CompilerParams(
                # slab axis is independent (per-slab scratch + output block) ->
                # "parallel" so v7x can shard it across its two TensorCores;
                # the inner axis carries the accumulators -> "arbitrary".
                dimension_semantics=("parallel", "arbitrary"),
                vmem_limit_bytes=vmem_limit_bytes,
            ),
        )(spans_t, h, wm, wx, bias2)

    try:
        pooled_padded = _run(resident_weights=True)
    except Exception:  # pragma: no cover — older Pallas without VMEM-space input specs
        pooled_padded = _run(resident_weights=False)

    pooled = pooled_padded[:N, :H]
    # Match TextEncoder.forward return: (pooled_output, torch.tensor([1.0]))
    return pooled, jnp.array([1.0], dtype=jnp.float32)


def _reference(last_hiddens, spans_py, w, bias):
    outs = []
    for i, (b, e) in enumerate(spans_py):
        x = last_hiddens[i, b:e]                                          # (len, H)
        conc = jnp.concatenate([x.mean(axis=0), x.max(axis=0)], axis=-1)  # (2H,)
        outs.append(conc @ w + bias.reshape(-1))
    return jnp.stack(outs)


if __name__ == "__main__":
    # Small shapes consistent with the module's forward:
    #   batch B=2, seq S=8, hidden H=32; one span per batch row.
    # (Production shapes should use H multiple of 128 and bf16 hidden states.)
    B, S, H = 2, 8, 32
    key = jax.random.PRNGKey(0)
    k_h, k_w, k_b = jax.random.split(key, 3)

    last_hiddens_f32 = jax.random.normal(k_h, (B, S, H), dtype=jnp.float32)

    # Deterministic Pooler.out = nn.Linear(2H, H) parameters (uniform +-1/sqrt(2H)).
    bound = 1.0 / jnp.sqrt(jnp.float32(2 * H))
    w = jax.random.uniform(k_w, (2 * H, H), dtype=jnp.float32,
                           minval=-bound, maxval=bound)
    bias = jax.random.uniform(k_b, (1, H), dtype=jnp.float32,
                              minval=-bound, maxval=bound)

    # Stream the backbone output as bf16 (the recommended production path).
    last_hiddens = last_hiddens_f32.astype(jnp.bfloat16)

    spans_py = [(1, 6), (0, 8)]                      # (begin, end) per row
    spans = jnp.array(spans_py, dtype=jnp.int32)     # [N, 2]

    pooled, flag = text_encoder_span_pool(last_hiddens, spans, w, bias)
    pooled = jax.block_until_ready(pooled)

    # Reference from the same bf16-quantized hidden states / weights, in f32.
    h_q = last_hiddens.astype(jnp.float32)
    w_q = w.astype(jnp.bfloat16).astype(jnp.float32)
    ref = _reference(h_q, spans_py, w_q, bias)

    assert pooled.shape == (len(spans_py), H)
    # Tolerance covers the MXU's reduced-precision f32 matmul passes.
    assert jnp.allclose(pooled, ref, atol=5e-3, rtol=5e-3), "mismatch vs reference"
    assert float(flag[0]) == 1.0

    print("KERNEL_OK")
</pallas_src>

<mosaic_0001>
module attributes {stable_mosaic.version = 11 : i64} {
  func.func @_pool_kernel(%arg0: i32, %arg1: i32, %arg2: memref<2x16xi32, #tpu.memory_space<smem>>, %arg3: memref<8x8x128xbf16, #tpu.memory_space<vmem>>, %arg4: memref<128x128xbf16, #tpu.memory_space<vmem>>, %arg5: memref<128x128xbf16, #tpu.memory_space<vmem>>, %arg6: memref<1x128xf32, #tpu.memory_space<vmem>>, %arg7: memref<8x128xf32, #tpu.memory_space<vmem>>, %arg8: memref<8x128xf32, #tpu.memory_space<vmem>>, %arg9: memref<8x128xf32, #tpu.memory_space<vmem>>) attributes {dimension_semantics = [#tpu.dimension_semantics<parallel>, #tpu.dimension_semantics<arbitrary>], iteration_bounds = array<i64: 2, 1>, scalar_prefetch = 1 : i64, scratch_operands = 2 : i64, tpu.core_type = #tpu.core_type<tc>, window_params = [{transform_indices = @transform_0, window_bounds = array<i64: 8, 8, 128>}, {pipeline_mode = #tpu.pipeline_mode<synchronous>, transform_indices = @transform_1, window_bounds = array<i64: 128, 128>}, {pipeline_mode = #tpu.pipeline_mode<synchronous>, transform_indices = @transform_2, window_bounds = array<i64: 128, 128>}, {pipeline_mode = #tpu.pipeline_mode<synchronous>, transform_indices = @transform_3, window_bounds = array<i64: 1, 128>}, {transform_indices = @transform_4, window_bounds = array<i64: 8, 128>}]} {
    %c0_i32 = arith.constant 0 : i32
    %0 = arith.cmpi eq, %arg1, %c0_i32 : i32
    %1 = arith.extui %0 : i1 to i32
    %c0_i32_0 = arith.constant 0 : i32
    %2 = arith.cmpi ne, %1, %c0_i32_0 : i32
    scf.if %2 {
      %cst_133 = arith.constant 0.000000e+00 : f32
      %347 = vector.broadcast %cst_133 : f32 to vector<8x128xf32>
      %c0_134 = arith.constant 0 : index
      %c0_135 = arith.constant 0 : index
      %348 = vector.load %arg8[%c0_134, %c0_135] : memref<8x128xf32, #tpu.memory_space<vmem>>, vector<8x128xf32>
      tpu.vector_store %arg8[%c0_134, %c0_135], %347 {strides = array<i32>} : memref<8x128xf32, #tpu.memory_space<vmem>>, vector<8x128xf32>,
      %cst_136 = arith.constant 0.000000e+00 : f32
      %349 = vector.broadcast %cst_136 : f32 to vector<8x128xf32>
      %c0_137 = arith.constant 0 : index
      %c0_138 = arith.constant 0 : index
      %350 = vector.load %arg9[%c0_137, %c0_138] : memref<8x128xf32, #tpu.memory_space<vmem>>, vector<8x128xf32>
      tpu.vector_store %arg9[%c0_137, %c0_138], %349 {strides = array<i32>} : memref<8x128xf32, #tpu.memory_space<vmem>>, vector<8x128xf32>,
    } else {
    }
    %c1_i32 = arith.constant 1 : i32
    %3 = arith.muli %arg0, %c1_i32 : i32
    %4 = arith.addi %3, %arg1 : i32
    %c8_i32 = arith.constant 8 : i32
    %5 = arith.muli %4, %c8_i32 : i32
    %c8_i32_1 = arith.constant 8 : i32
    %6 = arith.muli %arg1, %c8_i32_1 : i32
    %7 = tpu.iota {dimensions = array<i32: 0>} : vector<8x1xi32>
    %c0_i32_2 = arith.constant 0 : i32
    %8 = arith.addi %5, %c0_i32_2 : i32
    %c0 = arith.constant 0 : index
    %9 = arith.index_cast %8 : i32 to index
    %10 = memref.load %arg2[%c0, %9] : memref<2x16xi32, #tpu.memory_space<smem>>
    %c0_i32_3 = arith.constant 0 : i32
    %11 = arith.addi %5, %c0_i32_3 : i32
    %c1 = arith.constant 1 : index
    %12 = arith.index_cast %11 : i32 to index
    %13 = memref.load %arg2[%c1, %12] : memref<2x16xi32, #tpu.memory_space<smem>>
    %c0_4 = arith.constant 0 : index
    %c0_5 = arith.constant 0 : index
    %c0_6 = arith.constant 0 : index
    %14 = vector.load %arg3[%c0_4, %c0_5, %c0_6] : memref<8x8x128xbf16, #tpu.memory_space<vmem>>, vector<1x8x128xbf16>
    %15 = vector.shape_cast %14 : vector<1x8x128xbf16> to vector<8x128xbf16>
    %16 = arith.extf %15 : vector<8x128xbf16> to vector<8x128xf32>
    %17 = vector.broadcast %10 : i32 to vector<8x1xi32>
    %18 = arith.cmpi sge, %7, %17 : vector<8x1xi32>
    %19 = vector.broadcast %13 : i32 to vector<8x1xi32>
    %20 = arith.cmpi slt, %7, %19 : vector<8x1xi32>
    %21 = arith.andi %18, %20 : vector<8x1xi1>
    %22 = arith.cmpi sgt, %13, %10 : i32
    %23 = arith.subi %13, %10 : i32
    %c1_i32_7 = arith.constant 1 : i32
    %24 = arith.maxsi %23, %c1_i32_7 : i32
    %25 = arith.sitofp %24 : i32 to f32
    %cst = arith.constant 0.000000e+00 : f32
    %26 = vector.shape_cast %21 : vector<8x1xi1> to vector<8x1xi1>
    %27 = vector.broadcast %26 : vector<8x1xi1> to vector<8x128xi1>
    %28 = vector.broadcast %cst : f32 to vector<8x128xf32>
    %29 = arith.select %27, %16, %28 : vector<8x128xi1>, vector<8x128xf32>
    %cst_8 = arith.constant dense<0.000000e+00> : vector<128xf32>
    %30 = vector.multi_reduction <add>, %29, %cst_8 [0] : vector<8x128xf32> to vector<128xf32>
    %31 = vector.shape_cast %30 : vector<128xf32> to vector<1x128xf32>
    %32 = vector.broadcast %25 : f32 to vector<1x128xf32>
    %33 = arith.divf %31, %32 : vector<1x128xf32>
    %cst_9 = arith.constant 0.000000e+00 : f32
    %34 = vector.broadcast %cst_9 : f32 to vector<1x128xf32>
    %35 = arith.select %22, %33, %34 : vector<1x128xf32>
    %cst_10 = arith.constant 0xFF800000 : f32
    %36 = vector.shape_cast %21 : vector<8x1xi1> to vector<8x1xi1>
    %37 = vector.broadcast %36 : vector<8x1xi1> to vector<8x128xi1>
    %38 = vector.broadcast %cst_10 : f32 to vector<8x128xf32>
    %39 = arith.select %37, %16, %38 : vector<8x128xi1>, vector<8x128xf32>
    %cst_11 = arith.constant dense<0xFF800000> : vector<128xf32>
    %40 = vector.multi_reduction <maximumf>, %39, %cst_11 [0] : vector<8x128xf32> to vector<128xf32>
    %41 = vector.shape_cast %40 : vector<128xf32> to vector<1x128xf32>
    %cst_12 = arith.constant 0.000000e+00 : f32
    %42 = vector.broadcast %cst_12 : f32 to vector<1x128xf32>
    %43 = arith.select %22, %41, %42 : vector<1x128xf32>
    %c0_i32_13 = arith.constant 0 : i32
    %44 = arith.addi %6, %c0_i32_13 : i32
    %45 = arith.index_cast %44 : i32 to index
    %c0_14 = arith.constant 0 : index
    %46 = vector.load %arg8[%45, %c0_14] : memref<8x128xf32, #tpu.memory_space<vmem>>, vector<1x128xf32>
    tpu.vector_store %arg8[%45, %c0_14], %35 {strides = array<i32>} : memref<8x128xf32, #tpu.memory_space<vmem>>, vector<1x128xf32>,
    %c0_i32_15 = arith.constant 0 : i32
    %47 = arith.addi %6, %c0_i32_15 : i32
    %48 = arith.index_cast %47 : i32 to index
    %c0_16 = arith.constant 0 : index
    %49 = vector.load %arg9[%48, %c0_16] : memref<8x128xf32, #tpu.memory_space<vmem>>, vector<1x128xf32>
    tpu.vector_store %arg9[%48, %c0_16], %43 {strides = array<i32>} : memref<8x128xf32, #tpu.memory_space<vmem>>, vector<1x128xf32>,
    %c1_i32_17 = arith.constant 1 : i32
    %50 = arith.addi %5, %c1_i32_17 : i32
    %c0_18 = arith.constant 0 : index
    %51 = arith.index_cast %50 : i32 to index
    %52 = memref.load %arg2[%c0_18, %51] : memref<2x16xi32, #tpu.memory_space<smem>>
    %c1_i32_19 = arith.constant 1 : i32
    %53 = arith.addi %5, %c1_i32_19 : i32
    %c1_20 = arith.constant 1 : index
    %54 = arith.index_cast %53 : i32 to index
    %55 = memref.load %arg2[%c1_20, %54] : memref<2x16xi32, #tpu.memory_space<smem>>
    %c1_21 = arith.constant 1 : index
    %c0_22 = arith.constant 0 : index
    %c0_23 = arith.constant 0 : index
    %56 = vector.load %arg3[%c1_21, %c0_22, %c0_23] : memref<8x8x128xbf16, #tpu.memory_space<vmem>>, vector<1x8x128xbf16>
    %57 = vector.shape_cast %56 : vector<1x8x128xbf16> to vector<8x128xbf16>
    %58 = arith.extf %57 : vector<8x128xbf16> to vector<8x128xf32>
    %59 = vector.broadcast %52 : i32 to vector<8x1xi32>
    %60 = arith.cmpi sge, %7, %59 : vector<8x1xi32>
    %61 = vector.broadcast %55 : i32 to vector<8x1xi32>
    %62 = arith.cmpi slt, %7, %61 : vector<8x1xi32>
    %63 = arith.andi %60, %62 : vector<8x1xi1>
    %64 = arith.cmpi sgt, %55, %52 : i32
    %65 = arith.subi %55, %52 : i32
    %c1_i32_24 = arith.constant 1 : i32
    %66 = arith.maxsi %65, %c1_i32_24 : i32
    %67 = arith.sitofp %66 : i32 to f32
    %cst_25 = arith.constant 0.000000e+00 : f32
    %68 = vector.shape_cast %63 : vector<8x1xi1> to vector<8x1xi1>
    %69 = vector.broadcast %68 : vector<8x1xi1> to vector<8x128xi1>
    %70 = vector.broadcast %cst_25 : f32 to vector<8x128xf32>
    %71 = arith.select %69, %58, %70 : vector<8x128xi1>, vector<8x128xf32>
    %cst_26 = arith.constant dense<0.000000e+00> : vector<128xf32>
    %72 = vector.multi_reduction <add>, %71, %cst_26 [0] : vector<8x128xf32> to vector<128xf32>
    %73 = vector.shape_cast %72 : vector<128xf32> to vector<1x128xf32>
    %74 = vector.broadcast %67 : f32 to vector<1x128xf32>
    %75 = arith.divf %73, %74 : vector<1x128xf32>
    %cst_27 = arith.constant 0.000000e+00 : f32
    %76 = vector.broadcast %cst_27 : f32 to vector<1x128xf32>
    %77 = arith.select %64, %75, %76 : vector<1x128xf32>
    %cst_28 = arith.constant 0xFF800000 : f32
    %78 = vector.shape_cast %63 : vector<8x1xi1> to vector<8x1xi1>
    %79 = vector.broadcast %78 : vector<8x1xi1> to vector<8x128xi1>
    %80 = vector.broadcast %cst_28 : f32 to vector<8x128xf32>
    %81 = arith.select %79, %58, %80 : vector<8x128xi1>, vector<8x128xf32>
    %cst_29 = arith.constant dense<0xFF800000> : vector<128xf32>
    %82 = vector.multi_reduction <maximumf>, %81, %cst_29 [0] : vector<8x128xf32> to vector<128xf32>
    %83 = vector.shape_cast %82 : vector<128xf32> to vector<1x128xf32>
    %cst_30 = arith.constant 0.000000e+00 : f32
    %84 = vector.broadcast %cst_30 : f32 to vector<1x128xf32>
    %85 = arith.select %64, %83, %84 : vector<1x128xf32>
    %c1_i32_31 = arith.constant 1 : i32
    %86 = arith.addi %6, %c1_i32_31 : i32
    %87 = arith.index_cast %86 : i32 to index
    %c0_32 = arith.constant 0 : index
    %88 = vector.load %arg8[%87, %c0_32] : memref<8x128xf32, #tpu.memory_space<vmem>>, vector<1x128xf32>
    tpu.vector_store %arg8[%87, %c0_32], %77 {strides = array<i32>} : memref<8x128xf32, #tpu.memory_space<vmem>>, vector<1x128xf32>,
    %c1_i32_33 = arith.constant 1 : i32
    %89 = arith.addi %6, %c1_i32_33 : i32
    %90 = arith.index_cast %89 : i32 to index
    %c0_34 = arith.constant 0 : index
    %91 = vector.load %arg9[%90, %c0_34] : memref<8x128xf32, #tpu.memory_space<vmem>>, vector<1x128xf32>
    tpu.vector_store %arg9[%90, %c0_34], %85 {strides = array<i32>} : memref<8x128xf32, #tpu.memory_space<vmem>>, vector<1x128xf32>,
    %c2_i32 = arith.constant 2 : i32
    %92 = arith.addi %5, %c2_i32 : i32
    %c0_35 = arith.constant 0 : index
    %93 = arith.index_cast %92 : i32 to index
    %94 = memref.load %arg2[%c0_35, %93] : memref<2x16xi32, #tpu.memory_space<smem>>
    %c2_i32_36 = arith.constant 2 : i32
    %95 = arith.addi %5, %c2_i32_36 : i32
    %c1_37 = arith.constant 1 : index
    %96 = arith.index_cast %95 : i32 to index
    %97 = memref.load %arg2[%c1_37, %96] : memref<2x16xi32, #tpu.memory_space<smem>>
    %c2 = arith.constant 2 : index
    %c0_38 = arith.constant 0 : index
    %c0_39 = arith.constant 0 : index
    %98 = vector.load %arg3[%c2, %c0_38, %c0_39] : memref<8x8x128xbf16, #tpu.memory_space<vmem>>, vector<1x8x128xbf16>
    %99 = vector.shape_cast %98 : vector<1x8x128xbf16> to vector<8x128xbf16>
    %100 = arith.extf %99 : vector<8x128xbf16> to vector<8x128xf32>
    %101 = vector.broadcast %94 : i32 to vector<8x1xi32>
    %102 = arith.cmpi sge, %7, %101 : vector<8x1xi32>
    %103 = vector.broadcast %97 : i32 to vector<8x1xi32>
    %104 = arith.cmpi slt, %7, %103 : vector<8x1xi32>
    %105 = arith.andi %102, %104 : vector<8x1xi1>
    %106 = arith.cmpi sgt, %97, %94 : i32
    %107 = arith.subi %97, %94 : i32
    %c1_i32_40 = arith.constant 1 : i32
    %108 = arith.maxsi %107, %c1_i32_40 : i32
    %109 = arith.sitofp %108 : i32 to f32
    %cst_41 = arith.constant 0.000000e+00 : f32
    %110 = vector.shape_cast %105 : vector<8x1xi1> to vector<8x1xi1>
    %111 = vector.broadcast %110 : vector<8x1xi1> to vector<8x128xi1>
    %112 = vector.broadcast %cst_41 : f32 to vector<8x128xf32>
    %113 = arith.select %111, %100, %112 : vector<8x128xi1>, vector<8x128xf32>
    %cst_42 = arith.constant dense<0.000000e+00> : vector<128xf32>
    %114 = vector.multi_reduction <add>, %113, %cst_42 [0] : vector<8x128xf32> to vector<128xf32>
    %115 = vector.shape_cast %114 : vector<128xf32> to vector<1x128xf32>
    %116 = vector.broadcast %109 : f32 to vector<1x128xf32>
    %117 = arith.divf %115, %116 : vector<1x128xf32>
    %cst_43 = arith.constant 0.000000e+00 : f32
    %118 = vector.broadcast %cst_43 : f32 to vector<1x128xf32>
    %119 = arith.select %106, %117, %118 : vector<1x128xf32>
    %cst_44 = arith.constant 0xFF800000 : f32
    %120 = vector.shape_cast %105 : vector<8x1xi1> to vector<8x1xi1>
    %121 = vector.broadcast %120 : vector<8x1xi1> to vector<8x128xi1>
    %122 = vector.broadcast %cst_44 : f32 to vector<8x128xf32>
    %123 = arith.select %121, %100, %122 : vector<8x128xi1>, vector<8x128xf32>
    %cst_45 = arith.constant dense<0xFF800000> : vector<128xf32>
    %124 = vector.multi_reduction <maximumf>, %123, %cst_45 [0] : vector<8x128xf32> to vector<128xf32>
    %125 = vector.shape_cast %124 : vector<128xf32> to vector<1x128xf32>
    %cst_46 = arith.constant 0.000000e+00 : f32
    %126 = vector.broadcast %cst_46 : f32 to vector<1x128xf32>
    %127 = arith.select %106, %125, %126 : vector<1x128xf32>
    %c2_i32_47 = arith.constant 2 : i32
    %128 = arith.addi %6, %c2_i32_47 : i32
    %129 = arith.index_cast %128 : i32 to index
    %c0_48 = arith.constant 0 : index
    %130 = vector.load %arg8[%129, %c0_48] : memref<8x128xf32, #tpu.memory_space<vmem>>, vector<1x128xf32>
    tpu.vector_store %arg8[%129, %c0_48], %119 {strides = array<i32>} : memref<8x128xf32, #tpu.memory_space<vmem>>, vector<1x128xf32>,
    %c2_i32_49 = arith.constant 2 : i32
    %131 = arith.addi %6, %c2_i32_49 : i32
    %132 = arith.index_cast %131 : i32 to index
    %c0_50 = arith.constant 0 : index
    %133 = vector.load %arg9[%132, %c0_50] : memref<8x128xf32, #tpu.memory_space<vmem>>, vector<1x128xf32>
    tpu.vector_store %arg9[%132, %c0_50], %127 {strides = array<i32>} : memref<8x128xf32, #tpu.memory_space<vmem>>, vector<1x128xf32>,
    %c3_i32 = arith.constant 3 : i32
    %134 = arith.addi %5, %c3_i32 : i32
    %c0_51 = arith.constant 0 : index
    %135 = arith.index_cast %134 : i32 to index
    %136 = memref.load %arg2[%c0_51, %135] : memref<2x16xi32, #tpu.memory_space<smem>>
    %c3_i32_52 = arith.constant 3 : i32
    %137 = arith.addi %5, %c3_i32_52 : i32
    %c1_53 = arith.constant 1 : index
    %138 = arith.index_cast %137 : i32 to index
    %139 = memref.load %arg2[%c1_53, %138] : memref<2x16xi32, #tpu.memory_space<smem>>
    %c3 = arith.constant 3 : index
    %c0_54 = arith.constant 0 : index
    %c0_55 = arith.constant 0 : index
    %140 = vector.load %arg3[%c3, %c0_54, %c0_55] : memref<8x8x128xbf16, #tpu.memory_space<vmem>>, vector<1x8x128xbf16>
    %141 = vector.shape_cast %140 : vector<1x8x128xbf16> to vector<8x128xbf16>
    %142 = arith.extf %141 : vector<8x128xbf16> to vector<8x128xf32>
    %143 = vector.broadcast %136 : i32 to vector<8x1xi32>
    %144 = arith.cmpi sge, %7, %143 : vector<8x1xi32>
    %145 = vector.broadcast %139 : i32 to vector<8x1xi32>
    %146 = arith.cmpi slt, %7, %145 : vector<8x1xi32>
    %147 = arith.andi %144, %146 : vector<8x1xi1>
    %148 = arith.cmpi sgt, %139, %136 : i32
    %149 = arith.subi %139, %136 : i32
    %c1_i32_56 = arith.constant 1 : i32
    %150 = arith.maxsi %149, %c1_i32_56 : i32
    %151 = arith.sitofp %150 : i32 to f32
    %cst_57 = arith.constant 0.000000e+00 : f32
    %152 = vector.shape_cast %147 : vector<8x1xi1> to vector<8x1xi1>
    %153 = vector.broadcast %152 : vector<8x1xi1> to vector<8x128xi1>
    %154 = vector.broadcast %cst_57 : f32 to vector<8x128xf32>
    %155 = arith.select %153, %142, %154 : vector<8x128xi1>, vector<8x128xf32>
    %cst_58 = arith.constant dense<0.000000e+00> : vector<128xf32>
    %156 = vector.multi_reduction <add>, %155, %cst_58 [0] : vector<8x128xf32> to vector<128xf32>
    %157 = vector.shape_cast %156 : vector<128xf32> to vector<1x128xf32>
    %158 = vector.broadcast %151 : f32 to vector<1x128xf32>
    %159 = arith.divf %157, %158 : vector<1x128xf32>
    %cst_59 = arith.constant 0.000000e+00 : f32
    %160 = vector.broadcast %cst_59 : f32 to vector<1x128xf32>
    %161 = arith.select %148, %159, %160 : vector<1x128xf32>
    %cst_60 = arith.constant 0xFF800000 : f32
    %162 = vector.shape_cast %147 : vector<8x1xi1> to vector<8x1xi1>
    %163 = vector.broadcast %162 : vector<8x1xi1> to vector<8x128xi1>
    %164 = vector.broadcast %cst_60 : f32 to vector<8x128xf32>
    %165 = arith.select %163, %142, %164 : vector<8x128xi1>, vector<8x128xf32>
    %cst_61 = arith.constant dense<0xFF800000> : vector<128xf32>
    %166 = vector.multi_reduction <maximumf>, %165, %cst_61 [0] : vector<8x128xf32> to vector<128xf32>
    %167 = vector.shape_cast %166 : vector<128xf32> to vector<1x128xf32>
    %cst_62 = arith.constant 0.000000e+00 : f32
    %168 = vector.broadcast %cst_62 : f32 to vector<1x128xf32>
    %169 = arith.select %148, %167, %168 : vector<1x128xf32>
    %c3_i32_63 = arith.constant 3 : i32
    %170 = arith.addi %6, %c3_i32_63 : i32
    %171 = arith.index_cast %170 : i32 to index
    %c0_64 = arith.constant 0 : index
    %172 = vector.load %arg8[%171, %c0_64] : memref<8x128xf32, #tpu.memory_space<vmem>>, vector<1x128xf32>
    tpu.vector_store %arg8[%171, %c0_64], %161 {strides = array<i32>} : memref<8x128xf32, #tpu.memory_space<vmem>>, vector<1x128xf32>,
    %c3_i32_65 = arith.constant 3 : i32
    %173 = arith.addi %6, %c3_i32_65 : i32
    %174 = arith.index_cast %173 : i32 to index
    %c0_66 = arith.constant 0 : index
    %175 = vector.load %arg9[%174, %c0_66] : memref<8x128xf32, #tpu.memory_space<vmem>>, vector<1x128xf32>
    tpu.vector_store %arg9[%174, %c0_66], %169 {strides = array<i32>} : memref<8x128xf32, #tpu.memory_space<vmem>>, vector<1x128xf32>,
    %c4_i32 = arith.constant 4 : i32
    %176 = arith.addi %5, %c4_i32 : i32
    %c0_67 = arith.constant 0 : index
    %177 = arith.index_cast %176 : i32 to index
    %178 = memref.load %arg2[%c0_67, %177] : memref<2x16xi32, #tpu.memory_space<smem>>
    %c4_i32_68 = arith.constant 4 : i32
    %179 = arith.addi %5, %c4_i32_68 : i32
    %c1_69 = arith.constant 1 : index
    %180 = arith.index_cast %179 : i32 to index
    %181 = memref.load %arg2[%c1_69, %180] : memref<2x16xi32, #tpu.memory_space<smem>>
    %c4 = arith.constant 4 : index
    %c0_70 = arith.constant 0 : index
    %c0_71 = arith.constant 0 : index
    %182 = vector.load %arg3[%c4, %c0_70, %c0_71] : memref<8x8x128xbf16, #tpu.memory_space<vmem>>, vector<1x8x128xbf16>
    %183 = vector.shape_cast %182 : vector<1x8x128xbf16> to vector<8x128xbf16>
    %184 = arith.extf %183 : vector<8x128xbf16> to vector<8x128xf32>
    %185 = vector.broadcast %178 : i32 to vector<8x1xi32>
    %186 = arith.cmpi sge, %7, %185 : vector<8x1xi32>
    %187 = vector.broadcast %181 : i32 to vector<8x1xi32>
    %188 = arith.cmpi slt, %7, %187 : vector<8x1xi32>
    %189 = arith.andi %186, %188 : vector<8x1xi1>
    %190 = arith.cmpi sgt, %181, %178 : i32
    %191 = arith.subi %181, %178 : i32
    %c1_i32_72 = arith.constant 1 : i32
    %192 = arith.maxsi %191, %c1_i32_72 : i32
    %193 = arith.sitofp %192 : i32 to f32
    %cst_73 = arith.constant 0.000000e+00 : f32
    %194 = vector.shape_cast %189 : vector<8x1xi1> to vector<8x1xi1>
    %195 = vector.broadcast %194 : vector<8x1xi1> to vector<8x128xi1>
    %196 = vector.broadcast %cst_73 : f32 to vector<8x128xf32>
    %197 = arith.select %195, %184, %196 : vector<8x128xi1>, vector<8x128xf32>
    %cst_74 = arith.constant dense<0.000000e+00> : vector<128xf32>
    %198 = vector.multi_reduction <add>, %197, %cst_74 [0] : vector<8x128xf32> to vector<128xf32>
    %199 = vector.shape_cast %198 : vector<128xf32> to vector<1x128xf32>
    %200 = vector.broadcast %193 : f32 to vector<1x128xf32>
    %201 = arith.divf %199, %200 : vector<1x128xf32>
    %cst_75 = arith.constant 0.000000e+00 : f32
    %202 = vector.broadcast %cst_75 : f32 to vector<1x128xf32>
    %203 = arith.select %190, %201, %202 : vector<1x128xf32>
    %cst_76 = arith.constant 0xFF800000 : f32
    %204 = vector.shape_cast %189 : vector<8x1xi1> to vector<8x1xi1>
    %205 = vector.broadcast %204 : vector<8x1xi1> to vector<8x128xi1>
    %206 = vector.broadcast %cst_76 : f32 to vector<8x128xf32>
    %207 = arith.select %205, %184, %206 : vector<8x128xi1>, vector<8x128xf32>
    %cst_77 = arith.constant dense<0xFF800000> : vector<128xf32>
    %208 = vector.multi_reduction <maximumf>, %207, %cst_77 [0] : vector<8x128xf32> to vector<128xf32>
    %209 = vector.shape_cast %208 : vector<128xf32> to vector<1x128xf32>
    %cst_78 = arith.constant 0.000000e+00 : f32
    %210 = vector.broadcast %cst_78 : f32 to vector<1x128xf32>
    %211 = arith.select %190, %209, %210 : vector<1x128xf32>
    %c4_i32_79 = arith.constant 4 : i32
    %212 = arith.addi %6, %c4_i32_79 : i32
    %213 = arith.index_cast %212 : i32 to index
    %c0_80 = arith.constant 0 : index
    %214 = vector.load %arg8[%213, %c0_80] : memref<8x128xf32, #tpu.memory_space<vmem>>, vector<1x128xf32>
    tpu.vector_store %arg8[%213, %c0_80], %203 {strides = array<i32>} : memref<8x128xf32, #tpu.memory_space<vmem>>, vector<1x128xf32>,
    %c4_i32_81 = arith.constant 4 : i32
    %215 = arith.addi %6, %c4_i32_81 : i32
    %216 = arith.index_cast %215 : i32 to index
    %c0_82 = arith.constant 0 : index
    %217 = vector.load %arg9[%216, %c0_82] : memref<8x128xf32, #tpu.memory_space<vmem>>, vector<1x128xf32>
    tpu.vector_store %arg9[%216, %c0_82], %211 {strides = array<i32>} : memref<8x128xf32, #tpu.memory_space<vmem>>, vector<1x128xf32>,
    %c5_i32 = arith.constant 5 : i32
    %218 = arith.addi %5, %c5_i32 : i32
    %c0_83 = arith.constant 0 : index
    %219 = arith.index_cast %218 : i32 to index
    %220 = memref.load %arg2[%c0_83, %219] : memref<2x16xi32, #tpu.memory_space<smem>>
    %c5_i32_84 = arith.constant 5 : i32
    %221 = arith.addi %5, %c5_i32_84 : i32
    %c1_85 = arith.constant 1 : index
    %222 = arith.index_cast %221 : i32 to index
    %223 = memref.load %arg2[%c1_85, %222] : memref<2x16xi32, #tpu.memory_space<smem>>
    %c5 = arith.constant 5 : index
    %c0_86 = arith.constant 0 : index
    %c0_87 = arith.constant 0 : index
    %224 = vector.load %arg3[%c5, %c0_86, %c0_87] : memref<8x8x128xbf16, #tpu.memory_space<vmem>>, vector<1x8x128xbf16>
    %225 = vector.shape_cast %224 : vector<1x8x128xbf16> to vector<8x128xbf16>
    %226 = arith.extf %225 : vector<8x128xbf16> to vector<8x128xf32>
    %227 = vector.broadcast %220 : i32 to vector<8x1xi32>
    %228 = arith.cmpi sge, %7, %227 : vector<8x1xi32>
    %229 = vector.broadcast %223 : i32 to vector<8x1xi32>
    %230 = arith.cmpi slt, %7, %229 : vector<8x1xi32>
    %231 = arith.andi %228, %230 : vector<8x1xi1>
    %232 = arith.cmpi sgt, %223, %220 : i32
    %233 = arith.subi %223, %220 : i32
    %c1_i32_88 = arith.constant 1 : i32
    %234 = arith.maxsi %233, %c1_i32_88 : i32
    %235 = arith.sitofp %234 : i32 to f32
    %cst_89 = arith.constant 0.000000e+00 : f32
    %236 = vector.shape_cast %231 : vector<8x1xi1> to vector<8x1xi1>
    %237 = vector.broadcast %236 : vector<8x1xi1> to vector<8x128xi1>
    %238 = vector.broadcast %cst_89 : f32 to vector<8x128xf32>
    %239 = arith.select %237, %226, %238 : vector<8x128xi1>, vector<8x128xf32>
    %cst_90 = arith.constant dense<0.000000e+00> : vector<128xf32>
    %240 = vector.multi_reduction <add>, %239, %cst_90 [0] : vector<8x128xf32> to vector<128xf32>
    %241 = vector.shape_cast %240 : vector<128xf32> to vector<1x128xf32>
    %242 = vector.broadcast %235 : f32 to vector<1x128xf32>
    %243 = arith.divf %241, %242 : vector<1x128xf32>
    %cst_91 = arith.constant 0.000000e+00 : f32
    %244 = vector.broadcast %cst_91 : f32 to vector<1x128xf32>
    %245 = arith.select %232, %243, %244 : vector<1x128xf32>
    %cst_92 = arith.constant 0xFF800000 : f32
    %246 = vector.shape_cast %231 : vector<8x1xi1> to vector<8x1xi1>
    %247 = vector.broadcast %246 : vector<8x1xi1> to vector<8x128xi1>
    %248 = vector.broadcast %cst_92 : f32 to vector<8x128xf32>
    %249 = arith.select %247, %226, %248 : vector<8x128xi1>, vector<8x128xf32>
    %cst_93 = arith.constant dense<0xFF800000> : vector<128xf32>
    %250 = vector.multi_reduction <maximumf>, %249, %cst_93 [0] : vector<8x128xf32> to vector<128xf32>
    %251 = vector.shape_cast %250 : vector<128xf32> to vector<1x128xf32>
    %cst_94 = arith.constant 0.000000e+00 : f32
    %252 = vector.broadcast %cst_94 : f32 to vector<1x128xf32>
    %253 = arith.select %232, %251, %252 : vector<1x128xf32>
    %c5_i32_95 = arith.constant 5 : i32
    %254 = arith.addi %6, %c5_i32_95 : i32
    %255 = arith.index_cast %254 : i32 to index
    %c0_96 = arith.constant 0 : index
    %256 = vector.load %arg8[%255, %c0_96] : memref<8x128xf32, #tpu.memory_space<vmem>>, vector<1x128xf32>
    tpu.vector_store %arg8[%255, %c0_96], %245 {strides = array<i32>} : memref<8x128xf32, #tpu.memory_space<vmem>>, vector<1x128xf32>,
    %c5_i32_97 = arith.constant 5 : i32
    %257 = arith.addi %6, %c5_i32_97 : i32
    %258 = arith.index_cast %257 : i32 to index
    %c0_98 = arith.constant 0 : index
    %259 = vector.load %arg9[%258, %c0_98] : memref<8x128xf32, #tpu.memory_space<vmem>>, vector<1x128xf32>
    tpu.vector_store %arg9[%258, %c0_98], %253 {strides = array<i32>} : memref<8x128xf32, #tpu.memory_space<vmem>>, vector<1x128xf32>,
    %c6_i32 = arith.constant 6 : i32
    %260 = arith.addi %5, %c6_i32 : i32
    %c0_99 = arith.constant 0 : index
    %261 = arith.index_cast %260 : i32 to index
    %262 = memref.load %arg2[%c0_99, %261] : memref<2x16xi32, #tpu.memory_space<smem>>
    %c6_i32_100 = arith.constant 6 : i32
    %263 = arith.addi %5, %c6_i32_100 : i32
    %c1_101 = arith.constant 1 : index
    %264 = arith.index_cast %263 : i32 to index
    %265 = memref.load %arg2[%c1_101, %264] : memref<2x16xi32, #tpu.memory_space<smem>>
    %c6 = arith.constant 6 : index
    %c0_102 = arith.constant 0 : index
    %c0_103 = arith.constant 0 : index
    %266 = vector.load %arg3[%c6, %c0_102, %c0_103] : memref<8x8x128xbf16, #tpu.memory_space<vmem>>, vector<1x8x128xbf16>
    %267 = vector.shape_cast %266 : vector<1x8x128xbf16> to vector<8x128xbf16>
    %268 = arith.extf %267 : vector<8x128xbf16> to vector<8x128xf32>
    %269 = vector.broadcast %262 : i32 to vector<8x1xi32>
    %270 = arith.cmpi sge, %7, %269 : vector<8x1xi32>
    %271 = vector.broadcast %265 : i32 to vector<8x1xi32>
    %272 = arith.cmpi slt, %7, %271 : vector<8x1xi32>
    %273 = arith.andi %270, %272 : vector<8x1xi1>
    %274 = arith.cmpi sgt, %265, %262 : i32
    %275 = arith.subi %265, %262 : i32
    %c1_i32_104 = arith.constant 1 : i32
    %276 = arith.maxsi %275, %c1_i32_104 : i32
    %277 = arith.sitofp %276 : i32 to f32
    %cst_105 = arith.constant 0.000000e+00 : f32
    %278 = vector.shape_cast %273 : vector<8x1xi1> to vector<8x1xi1>
    %279 = vector.broadcast %278 : vector<8x1xi1> to vector<8x128xi1>
    %280 = vector.broadcast %cst_105 : f32 to vector<8x128xf32>
    %281 = arith.select %279, %268, %280 : vector<8x128xi1>, vector<8x128xf32>
    %cst_106 = arith.constant dense<0.000000e+00> : vector<128xf32>
    %282 = vector.multi_reduction <add>, %281, %cst_106 [0] : vector<8x128xf32> to vector<128xf32>
    %283 = vector.shape_cast %282 : vector<128xf32> to vector<1x128xf32>
    %284 = vector.broadcast %277 : f32 to vector<1x128xf32>
    %285 = arith.divf %283, %284 : vector<1x128xf32>
    %cst_107 = arith.constant 0.000000e+00 : f32
    %286 = vector.broadcast %cst_107 : f32 to vector<1x128xf32>
    %287 = arith.select %274, %285, %286 : vector<1x128xf32>
    %cst_108 = arith.constant 0xFF800000 : f32
    %288 = vector.shape_cast %273 : vector<8x1xi1> to vector<8x1xi1>
    %289 = vector.broadcast %288 : vector<8x1xi1> to vector<8x128xi1>
    %290 = vector.broadcast %cst_108 : f32 to vector<8x128xf32>
    %291 = arith.select %289, %268, %290 : vector<8x128xi1>, vector<8x128xf32>
    %cst_109 = arith.constant dense<0xFF800000> : vector<128xf32>
    %292 = vector.multi_reduction <maximumf>, %291, %cst_109 [0] : vector<8x128xf32> to vector<128xf32>
    %293 = vector.shape_cast %292 : vector<128xf32> to vector<1x128xf32>
    %cst_110 = arith.constant 0.000000e+00 : f32
    %294 = vector.broadcast %cst_110 : f32 to vector<1x128xf32>
    %295 = arith.select %274, %293, %294 : vector<1x128xf32>
    %c6_i32_111 = arith.constant 6 : i32
    %296 = arith.addi %6, %c6_i32_111 : i32
    %297 = arith.index_cast %296 : i32 to index
    %c0_112 = arith.constant 0 : index
    %298 = vector.load %arg8[%297, %c0_112] : memref<8x128xf32, #tpu.memory_space<vmem>>, vector<1x128xf32>
    tpu.vector_store %arg8[%297, %c0_112], %287 {strides = array<i32>} : memref<8x128xf32, #tpu.memory_space<vmem>>, vector<1x128xf32>,
    %c6_i32_113 = arith.constant 6 : i32
    %299 = arith.addi %6, %c6_i32_113 : i32
    %300 = arith.index_cast %299 : i32 to index
    %c0_114 = arith.constant 0 : index
    %301 = vector.load %arg9[%300, %c0_114] : memref<8x128xf32, #tpu.memory_space<vmem>>, vector<1x128xf32>
    tpu.vector_store %arg9[%300, %c0_114], %295 {strides = array<i32>} : memref<8x128xf32, #tpu.memory_space<vmem>>, vector<1x128xf32>,
    %c7_i32 = arith.constant 7 : i32
    %302 = arith.addi %5, %c7_i32 : i32
    %c0_115 = arith.constant 0 : index
    %303 = arith.index_cast %302 : i32 to index
    %304 = memref.load %arg2[%c0_115, %303] : memref<2x16xi32, #tpu.memory_space<smem>>
    %c7_i32_116 = arith.constant 7 : i32
    %305 = arith.addi %5, %c7_i32_116 : i32
    %c1_117 = arith.constant 1 : index
    %306 = arith.index_cast %305 : i32 to index
    %307 = memref.load %arg2[%c1_117, %306] : memref<2x16xi32, #tpu.memory_space<smem>>
    %c7 = arith.constant 7 : index
    %c0_118 = arith.constant 0 : index
    %c0_119 = arith.constant 0 : index
    %308 = vector.load %arg3[%c7, %c0_118, %c0_119] : memref<8x8x128xbf16, #tpu.memory_space<vmem>>, vector<1x8x128xbf16>
    %309 = vector.shape_cast %308 : vector<1x8x128xbf16> to vector<8x128xbf16>
    %310 = arith.extf %309 : vector<8x128xbf16> to vector<8x128xf32>
    %311 = vector.broadcast %304 : i32 to vector<8x1xi32>
    %312 = arith.cmpi sge, %7, %311 : vector<8x1xi32>
    %313 = vector.broadcast %307 : i32 to vector<8x1xi32>
    %314 = arith.cmpi slt, %7, %313 : vector<8x1xi32>
    %315 = arith.andi %312, %314 : vector<8x1xi1>
    %316 = arith.cmpi sgt, %307, %304 : i32
    %317 = arith.subi %307, %304 : i32
    %c1_i32_120 = arith.constant 1 : i32
    %318 = arith.maxsi %317, %c1_i32_120 : i32
    %319 = arith.sitofp %318 : i32 to f32
    %cst_121 = arith.constant 0.000000e+00 : f32
    %320 = vector.shape_cast %315 : vector<8x1xi1> to vector<8x1xi1>
    %321 = vector.broadcast %320 : vector<8x1xi1> to vector<8x128xi1>
    %322 = vector.broadcast %cst_121 : f32 to vector<8x128xf32>
    %323 = arith.select %321, %310, %322 : vector<8x128xi1>, vector<8x128xf32>
    %cst_122 = arith.constant dense<0.000000e+00> : vector<128xf32>
    %324 = vector.multi_reduction <add>, %323, %cst_122 [0] : vector<8x128xf32> to vector<128xf32>
    %325 = vector.shape_cast %324 : vector<128xf32> to vector<1x128xf32>
    %326 = vector.broadcast %319 : f32 to vector<1x128xf32>
    %327 = arith.divf %325, %326 : vector<1x128xf32>
    %cst_123 = arith.constant 0.000000e+00 : f32
    %328 = vector.broadcast %cst_123 : f32 to vector<1x128xf32>
    %329 = arith.select %316, %327, %328 : vector<1x128xf32>
    %cst_124 = arith.constant 0xFF800000 : f32
    %330 = vector.shape_cast %315 : vector<8x1xi1> to vector<8x1xi1>
    %331 = vector.broadcast %330 : vector<8x1xi1> to vector<8x128xi1>
    %332 = vector.broadcast %cst_124 : f32 to vector<8x128xf32>
    %333 = arith.select %331, %310, %332 : vector<8x128xi1>, vector<8x128xf32>
    %cst_125 = arith.constant dense<0xFF800000> : vector<128xf32>
    %334 = vector.multi_reduction <maximumf>, %333, %cst_125 [0] : vector<8x128xf32> to vector<128xf32>
    %335 = vector.shape_cast %334 : vector<128xf32> to vector<1x128xf32>
    %cst_126 = arith.constant 0.000000e+00 : f32
    %336 = vector.broadcast %cst_126 : f32 to vector<1x128xf32>
    %337 = arith.select %316, %335, %336 : vector<1x128xf32>
    %c7_i32_127 = arith.constant 7 : i32
    %338 = arith.addi %6, %c7_i32_127 : i32
    %339 = arith.index_cast %338 : i32 to index
    %c0_128 = arith.constant 0 : index
    %340 = vector.load %arg8[%339, %c0_128] : memref<8x128xf32, #tpu.memory_space<vmem>>, vector<1x128xf32>
    tpu.vector_store %arg8[%339, %c0_128], %329 {strides = array<i32>} : memref<8x128xf32, #tpu.memory_space<vmem>>, vector<1x128xf32>,
    %c7_i32_129 = arith.constant 7 : i32
    %341 = arith.addi %6, %c7_i32_129 : i32
    %342 = arith.index_cast %341 : i32 to index
    %c0_130 = arith.constant 0 : index
    %343 = vector.load %arg9[%342, %c0_130] : memref<8x128xf32, #tpu.memory_space<vmem>>, vector<1x128xf32>
    tpu.vector_store %arg9[%342, %c0_130], %337 {strides = array<i32>} : memref<8x128xf32, #tpu.memory_space<vmem>>, vector<1x128xf32>,
    %c0_i32_131 = arith.constant 0 : i32
    %344 = arith.cmpi eq, %arg1, %c0_i32_131 : i32
    %345 = arith.extui %344 : i1 to i32
    %c0_i32_132 = arith.constant 0 : i32
    %346 = arith.cmpi ne, %345, %c0_i32_132 : i32
    scf.if %346 {
      %c0_133 = arith.constant 0 : index
      %c0_134 = arith.constant 0 : index
      %347 = vector.load %arg4[%c0_133, %c0_134] : memref<128x128xbf16, #tpu.memory_space<vmem>>, vector<128x128xbf16>
      %348 = arith.extf %347 : vector<128x128xbf16> to vector<128x128xf32>
      %c0_135 = arith.constant 0 : index
      %c0_136 = arith.constant 0 : index
      %349 = vector.load %arg5[%c0_135, %c0_136] : memref<128x128xbf16, #tpu.memory_space<vmem>>, vector<128x128xbf16>
      %350 = arith.extf %349 : vector<128x128xbf16> to vector<128x128xf32>
      %c0_137 = arith.constant 0 : index
      %c0_138 = arith.constant 0 : index
      %351 = vector.load %arg8[%c0_137, %c0_138] : memref<8x128xf32, #tpu.memory_space<vmem>>, vector<8x128xf32>
      %cst_139 = arith.constant dense<0.000000e+00> : vector<8x128xf32>
      %352 = tpu.matmul %351, %348, %cst_139 {dimension_numbers = #tpu.dot_dimension_numbers<[1], [0], [0], [1], [0, 0, 1, 1], [], []>} : vector<8x128xf32>, vector<128x128xf32>, vector<8x128xf32> -> vector<8x128xf32>
      %c0_140 = arith.constant 0 : index
      %c0_141 = arith.constant 0 : index
      %353 = vector.load %arg9[%c0_140, %c0_141] : memref<8x128xf32, #tpu.memory_space<vmem>>, vector<8x128xf32>
      %cst_142 = arith.constant dense<0.000000e+00> : vector<8x128xf32>
      %354 = tpu.matmul %353, %350, %cst_142 {dimension_numbers = #tpu.dot_dimension_numbers<[1], [0], [0], [1], [0, 0, 1, 1], [], []>} : vector<8x128xf32>, vector<128x128xf32>, vector<8x128xf32> -> vector<8x128xf32>
      %355 = arith.addf %352, %354 : vector<8x128xf32>
      %c0_143 = arith.constant 0 : index
      %c0_144 = arith.constant 0 : index
      %356 = vector.load %arg6[%c0_143, %c0_144] : memref<1x128xf32, #tpu.memory_space<vmem>>, vector<1x128xf32>
      %357 = vector.broadcast %356 : vector<1x128xf32> to vector<8x128xf32>
      %358 = arith.addf %355, %357 : vector<8x128xf32>
      %c0_145 = arith.constant 0 : index
      %c0_146 = arith.constant 0 : index
      %359 = vector.load %arg7[%c0_145, %c0_146] : memref<8x128xf32, #tpu.memory_space<vmem>>, vector<8x128xf32>
      tpu.vector_store %arg7[%c0_145, %c0_146], %358 {strides = array<i32>} : memref<8x128xf32, #tpu.memory_space<vmem>>, vector<8x128xf32>,
    } else {
    }
    return
  }
  func.func @transform_0(%arg0: i32, %arg1: i32, %arg2: memref<2x16xi32, #tpu.memory_space<smem>>) -> (i32, i32, i32) {
    %c1_i32 = arith.constant 1 : i32
    %0 = arith.muli %arg0, %c1_i32 : i32
    %1 = arith.addi %0, %arg1 : i32
    %c0_i32 = arith.constant 0 : i32
    %c0_i32_0 = arith.constant 0 : i32
    %c0_i32_1 = arith.constant 0 : i32
    return %1, %c0_i32, %c0_i32_0 : i32, i32, i32
  }
  func.func @transform_1(%arg0: i32, %arg1: i32, %arg2: memref<2x16xi32, #tpu.memory_space<smem>>) -> (i32, i32) {
    %c0_i32 = arith.constant 0 : i32
    %c0_i32_0 = arith.constant 0 : i32
    %c0_i32_1 = arith.constant 0 : i32
    return %c0_i32, %c0_i32_0 : i32, i32
  }
  func.func @transform_2(%arg0: i32, %arg1: i32, %arg2: memref<2x16xi32, #tpu.memory_space<smem>>) -> (i32, i32) {
    %c0_i32 = arith.constant 0 : i32
    %c0_i32_0 = arith.constant 0 : i32
    %c0_i32_1 = arith.constant 0 : i32
    return %c0_i32, %c0_i32_0 : i32, i32
  }
  func.func @transform_3(%arg0: i32, %arg1: i32, %arg2: memref<2x16xi32, #tpu.memory_space<smem>>) -> (i32, i32) {
    %c0_i32 = arith.constant 0 : i32
    %c0_i32_0 = arith.constant 0 : i32
    %c0_i32_1 = arith.constant 0 : i32
    return %c0_i32, %c0_i32_0 : i32, i32
  }
  func.func @transform_4(%arg0: i32, %arg1: i32, %arg2: memref<2x16xi32, #tpu.memory_space<smem>>) -> (i32, i32) {
    %c0_i32 = arith.constant 0 : i32
    %c0_i32_0 = arith.constant 0 : i32
    return %arg0, %c0_i32 : i32, i32
  }
}

module attributes {stable_mosaic.version = 11 : i64} {
  func.func @_pool_kernel(%arg0: i32, %arg1: i32, %arg2: memref<2x16xi32, #tpu.memory_space<smem>>, %arg3: memref<8x8x128xbf16, #tpu.memory_space<vmem>>, %arg4: memref<128x128xbf16, #tpu.memory_space<vmem>>, %arg5: memref<128x128xbf16, #tpu.memory_space<vmem>>, %arg6: memref<1x128xf32, #tpu.memory_space<vmem>>, %arg7: memref<8x128xf32, #tpu.memory_space<vmem>>, %arg8: memref<8x128xf32, #tpu.memory_space<vmem>>, %arg9: memref<8x128xf32, #tpu.memory_space<vmem>>) attributes {dimension_semantics = [#tpu.dimension_semantics<parallel>, #tpu.dimension_semantics<arbitrary>], iteration_bounds = array<i64: 2, 1>, scalar_prefetch = 1 : i64, scratch_operands = 2 : i64, tpu.core_type = #tpu.core_type<tc>, window_params = [{transform_indices = @transform_0, window_bounds = array<i64: 8, 8, 128>}, {pipeline_mode = #tpu.pipeline_mode<synchronous>, transform_indices = @transform_1, window_bounds = array<i64: 128, 128>}, {pipeline_mode = #tpu.pipeline_mode<synchronous>, transform_indices = @transform_2, window_bounds = array<i64: 128, 128>}, {pipeline_mode = #tpu.pipeline_mode<synchronous>, transform_indices = @transform_3, window_bounds = array<i64: 1, 128>}, {transform_indices = @transform_4, window_bounds = array<i64: 8, 128>}]} {
    %c0_i32 = arith.constant 0 : i32
    %0 = arith.cmpi eq, %arg1, %c0_i32 : i32
    %1 = arith.extui %0 : i1 to i32
    %c0_i32_0 = arith.constant 0 : i32
    %2 = arith.cmpi ne, %1, %c0_i32_0 : i32
    scf.if %2 {
      %cst_133 = arith.constant 0.000000e+00 : f32
      %347 = vector.broadcast %cst_133 : f32 to vector<8x128xf32>
      %c0_134 = arith.constant 0 : index
      %c0_135 = arith.constant 0 : index
      %348 = vector.load %arg8[%c0_134, %c0_135] : memref<8x128xf32, #tpu.memory_space<vmem>>, vector<8x128xf32>
      tpu.vector_store %arg8[%c0_134, %c0_135], %347 {strides = array<i32>} : memref<8x128xf32, #tpu.memory_space<vmem>>, vector<8x128xf32>,
      %cst_136 = arith.constant 0.000000e+00 : f32
      %349 = vector.broadcast %cst_136 : f32 to vector<8x128xf32>
      %c0_137 = arith.constant 0 : index
      %c0_138 = arith.constant 0 : index
      %350 = vector.load %arg9[%c0_137, %c0_138] : memref<8x128xf32, #tpu.memory_space<vmem>>, vector<8x128xf32>
      tpu.vector_store %arg9[%c0_137, %c0_138], %349 {strides = array<i32>} : memref<8x128xf32, #tpu.memory_space<vmem>>, vector<8x128xf32>,
    } else {
    }
    %c1_i32 = arith.constant 1 : i32
    %3 = arith.muli %arg0, %c1_i32 : i32
    %4 = arith.addi %3, %arg1 : i32
    %c8_i32 = arith.constant 8 : i32
    %5 = arith.muli %4, %c8_i32 : i32
    %c8_i32_1 = arith.constant 8 : i32
    %6 = arith.muli %arg1, %c8_i32_1 : i32
    %7 = tpu.iota {dimensions = array<i32: 0>} : vector<8x1xi32>
    %c0_i32_2 = arith.constant 0 : i32
    %8 = arith.addi %5, %c0_i32_2 : i32
    %c0 = arith.constant 0 : index
    %9 = arith.index_cast %8 : i32 to index
    %10 = memref.load %arg2[%c0, %9] : memref<2x16xi32, #tpu.memory_space<smem>>
    %c0_i32_3 = arith.constant 0 : i32
    %11 = arith.addi %5, %c0_i32_3 : i32
    %c1 = arith.constant 1 : index
    %12 = arith.index_cast %11 : i32 to index
    %13 = memref.load %arg2[%c1, %12] : memref<2x16xi32, #tpu.memory_space<smem>>
    %c0_4 = arith.constant 0 : index
    %c0_5 = arith.constant 0 : index
    %c0_6 = arith.constant 0 : index
    %14 = vector.load %arg3[%c0_4, %c0_5, %c0_6] : memref<8x8x128xbf16, #tpu.memory_space<vmem>>, vector<1x8x128xbf16>
    %15 = vector.shape_cast %14 : vector<1x8x128xbf16> to vector<8x128xbf16>
    %16 = arith.extf %15 : vector<8x128xbf16> to vector<8x128xf32>
    %17 = vector.broadcast %10 : i32 to vector<8x1xi32>
    %18 = arith.cmpi sge, %7, %17 : vector<8x1xi32>
    %19 = vector.broadcast %13 : i32 to vector<8x1xi32>
    %20 = arith.cmpi slt, %7, %19 : vector<8x1xi32>
    %21 = arith.andi %18, %20 : vector<8x1xi1>
    %22 = arith.cmpi sgt, %13, %10 : i32
    %23 = arith.subi %13, %10 : i32
    %c1_i32_7 = arith.constant 1 : i32
    %24 = arith.maxsi %23, %c1_i32_7 : i32
    %25 = arith.sitofp %24 : i32 to f32
    %cst = arith.constant 0.000000e+00 : f32
    %26 = vector.shape_cast %21 : vector<8x1xi1> to vector<8x1xi1>
    %27 = vector.broadcast %26 : vector<8x1xi1> to vector<8x128xi1>
    %28 = vector.broadcast %cst : f32 to vector<8x128xf32>
    %29 = arith.select %27, %16, %28 : vector<8x128xi1>, vector<8x128xf32>
    %cst_8 = arith.constant dense<0.000000e+00> : vector<128xf32>
    %30 = vector.multi_reduction <add>, %29, %cst_8 [0] : vector<8x128xf32> to vector<128xf32>
    %31 = vector.shape_cast %30 : vector<128xf32> to vector<1x128xf32>
    %32 = vector.broadcast %25 : f32 to vector<1x128xf32>
    %33 = arith.divf %31, %32 : vector<1x128xf32>
    %cst_9 = arith.constant 0.000000e+00 : f32
    %34 = vector.broadcast %cst_9 : f32 to vector<1x128xf32>
    %35 = arith.select %22, %33, %34 : vector<1x128xf32>
    %cst_10 = arith.constant 0xFF800000 : f32
    %36 = vector.shape_cast %21 : vector<8x1xi1> to vector<8x1xi1>
    %37 = vector.broadcast %36 : vector<8x1xi1> to vector<8x128xi1>
    %38 = vector.broadcast %cst_10 : f32 to vector<8x128xf32>
    %39 = arith.select %37, %16, %38 : vector<8x128xi1>, vector<8x128xf32>
    %cst_11 = arith.constant dense<0xFF800000> : vector<128xf32>
    %40 = vector.multi_reduction <maximumf>, %39, %cst_11 [0] : vector<8x128xf32> to vector<128xf32>
    %41 = vector.shape_cast %40 : vector<128xf32> to vector<1x128xf32>
    %cst_12 = arith.constant 0.000000e+00 : f32
    %42 = vector.broadcast %cst_12 : f32 to vector<1x128xf32>
    %43 = arith.select %22, %41, %42 : vector<1x128xf32>
    %c0_i32_13 = arith.constant 0 : i32
    %44 = arith.addi %6, %c0_i32_13 : i32
    %45 = arith.index_cast %44 : i32 to index
    %c0_14 = arith.constant 0 : index
    %46 = vector.load %arg8[%45, %c0_14] : memref<8x128xf32, #tpu.memory_space<vmem>>, vector<1x128xf32>
    tpu.vector_store %arg8[%45, %c0_14], %35 {strides = array<i32>} : memref<8x128xf32, #tpu.memory_space<vmem>>, vector<1x128xf32>,
    %c0_i32_15 = arith.constant 0 : i32
    %47 = arith.addi %6, %c0_i32_15 : i32
    %48 = arith.index_cast %47 : i32 to index
    %c0_16 = arith.constant 0 : index
    %49 = vector.load %arg9[%48, %c0_16] : memref<8x128xf32, #tpu.memory_space<vmem>>, vector<1x128xf32>
    tpu.vector_store %arg9[%48, %c0_16], %43 {strides = array<i32>} : memref<8x128xf32, #tpu.memory_space<vmem>>, vector<1x128xf32>,
    %c1_i32_17 = arith.constant 1 : i32
    %50 = arith.addi %5, %c1_i32_17 : i32
    %c0_18 = arith.constant 0 : index
    %51 = arith.index_cast %50 : i32 to index
    %52 = memref.load %arg2[%c0_18, %51] : memref<2x16xi32, #tpu.memory_space<smem>>
    %c1_i32_19 = arith.constant 1 : i32
    %53 = arith.addi %5, %c1_i32_19 : i32
    %c1_20 = arith.constant 1 : index
    %54 = arith.index_cast %53 : i32 to index
    %55 = memref.load %arg2[%c1_20, %54] : memref<2x16xi32, #tpu.memory_space<smem>>
    %c1_21 = arith.constant 1 : index
    %c0_22 = arith.constant 0 : index
    %c0_23 = arith.constant 0 : index
    %56 = vector.load %arg3[%c1_21, %c0_22, %c0_23] : memref<8x8x128xbf16, #tpu.memory_space<vmem>>, vector<1x8x128xbf16>
    %57 = vector.shape_cast %56 : vector<1x8x128xbf16> to vector<8x128xbf16>
    %58 = arith.extf %57 : vector<8x128xbf16> to vector<8x128xf32>
    %59 = vector.broadcast %52 : i32 to vector<8x1xi32>
    %60 = arith.cmpi sge, %7, %59 : vector<8x1xi32>
    %61 = vector.broadcast %55 : i32 to vector<8x1xi32>
    %62 = arith.cmpi slt, %7, %61 : vector<8x1xi32>
    %63 = arith.andi %60, %62 : vector<8x1xi1>
    %64 = arith.cmpi sgt, %55, %52 : i32
    %65 = arith.subi %55, %52 : i32
    %c1_i32_24 = arith.constant 1 : i32
    %66 = arith.maxsi %65, %c1_i32_24 : i32
    %67 = arith.sitofp %66 : i32 to f32
    %cst_25 = arith.constant 0.000000e+00 : f32
    %68 = vector.shape_cast %63 : vector<8x1xi1> to vector<8x1xi1>
    %69 = vector.broadcast %68 : vector<8x1xi1> to vector<8x128xi1>
    %70 = vector.broadcast %cst_25 : f32 to vector<8x128xf32>
    %71 = arith.select %69, %58, %70 : vector<8x128xi1>, vector<8x128xf32>
    %cst_26 = arith.constant dense<0.000000e+00> : vector<128xf32>
    %72 = vector.multi_reduction <add>, %71, %cst_26 [0] : vector<8x128xf32> to vector<128xf32>
    %73 = vector.shape_cast %72 : vector<128xf32> to vector<1x128xf32>
    %74 = vector.broadcast %67 : f32 to vector<1x128xf32>
    %75 = arith.divf %73, %74 : vector<1x128xf32>
    %cst_27 = arith.constant 0.000000e+00 : f32
    %76 = vector.broadcast %cst_27 : f32 to vector<1x128xf32>
    %77 = arith.select %64, %75, %76 : vector<1x128xf32>
    %cst_28 = arith.constant 0xFF800000 : f32
    %78 = vector.shape_cast %63 : vector<8x1xi1> to vector<8x1xi1>
    %79 = vector.broadcast %78 : vector<8x1xi1> to vector<8x128xi1>
    %80 = vector.broadcast %cst_28 : f32 to vector<8x128xf32>
    %81 = arith.select %79, %58, %80 : vector<8x128xi1>, vector<8x128xf32>
    %cst_29 = arith.constant dense<0xFF800000> : vector<128xf32>
    %82 = vector.multi_reduction <maximumf>, %81, %cst_29 [0] : vector<8x128xf32> to vector<128xf32>
    %83 = vector.shape_cast %82 : vector<128xf32> to vector<1x128xf32>
    %cst_30 = arith.constant 0.000000e+00 : f32
    %84 = vector.broadcast %cst_30 : f32 to vector<1x128xf32>
    %85 = arith.select %64, %83, %84 : vector<1x128xf32>
    %c1_i32_31 = arith.constant 1 : i32
    %86 = arith.addi %6, %c1_i32_31 : i32
    %87 = arith.index_cast %86 : i32 to index
    %c0_32 = arith.constant 0 : index
    %88 = vector.load %arg8[%87, %c0_32] : memref<8x128xf32, #tpu.memory_space<vmem>>, vector<1x128xf32>
    tpu.vector_store %arg8[%87, %c0_32], %77 {strides = array<i32>} : memref<8x128xf32, #tpu.memory_space<vmem>>, vector<1x128xf32>,
    %c1_i32_33 = arith.constant 1 : i32
    %89 = arith.addi %6, %c1_i32_33 : i32
    %90 = arith.index_cast %89 : i32 to index
    %c0_34 = arith.constant 0 : index
    %91 = vector.load %arg9[%90, %c0_34] : memref<8x128xf32, #tpu.memory_space<vmem>>, vector<1x128xf32>
    tpu.vector_store %arg9[%90, %c0_34], %85 {strides = array<i32>} : memref<8x128xf32, #tpu.memory_space<vmem>>, vector<1x128xf32>,
    %c2_i32 = arith.constant 2 : i32
    %92 = arith.addi %5, %c2_i32 : i32
    %c0_35 = arith.constant 0 : index
    %93 = arith.index_cast %92 : i32 to index
    %94 = memref.load %arg2[%c0_35, %93] : memref<2x16xi32, #tpu.memory_space<smem>>
    %c2_i32_36 = arith.constant 2 : i32
    %95 = arith.addi %5, %c2_i32_36 : i32
    %c1_37 = arith.constant 1 : index
    %96 = arith.index_cast %95 : i32 to index
    %97 = memref.load %arg2[%c1_37, %96] : memref<2x16xi32, #tpu.memory_space<smem>>
    %c2 = arith.constant 2 : index
    %c0_38 = arith.constant 0 : index
    %c0_39 = arith.constant 0 : index
    %98 = vector.load %arg3[%c2, %c0_38, %c0_39] : memref<8x8x128xbf16, #tpu.memory_space<vmem>>, vector<1x8x128xbf16>
    %99 = vector.shape_cast %98 : vector<1x8x128xbf16> to vector<8x128xbf16>
    %100 = arith.extf %99 : vector<8x128xbf16> to vector<8x128xf32>
    %101 = vector.broadcast %94 : i32 to vector<8x1xi32>
    %102 = arith.cmpi sge, %7, %101 : vector<8x1xi32>
    %103 = vector.broadcast %97 : i32 to vector<8x1xi32>
    %104 = arith.cmpi slt, %7, %103 : vector<8x1xi32>
    %105 = arith.andi %102, %104 : vector<8x1xi1>
    %106 = arith.cmpi sgt, %97, %94 : i32
    %107 = arith.subi %97, %94 : i32
    %c1_i32_40 = arith.constant 1 : i32
    %108 = arith.maxsi %107, %c1_i32_40 : i32
    %109 = arith.sitofp %108 : i32 to f32
    %cst_41 = arith.constant 0.000000e+00 : f32
    %110 = vector.shape_cast %105 : vector<8x1xi1> to vector<8x1xi1>
    %111 = vector.broadcast %110 : vector<8x1xi1> to vector<8x128xi1>
    %112 = vector.broadcast %cst_41 : f32 to vector<8x128xf32>
    %113 = arith.select %111, %100, %112 : vector<8x128xi1>, vector<8x128xf32>
    %cst_42 = arith.constant dense<0.000000e+00> : vector<128xf32>
    %114 = vector.multi_reduction <add>, %113, %cst_42 [0] : vector<8x128xf32> to vector<128xf32>
    %115 = vector.shape_cast %114 : vector<128xf32> to vector<1x128xf32>
    %116 = vector.broadcast %109 : f32 to vector<1x128xf32>
    %117 = arith.divf %115, %116 : vector<1x128xf32>
    %cst_43 = arith.constant 0.000000e+00 : f32
    %118 = vector.broadcast %cst_43 : f32 to vector<1x128xf32>
    %119 = arith.select %106, %117, %118 : vector<1x128xf32>
    %cst_44 = arith.constant 0xFF800000 : f32
    %120 = vector.shape_cast %105 : vector<8x1xi1> to vector<8x1xi1>
    %121 = vector.broadcast %120 : vector<8x1xi1> to vector<8x128xi1>
    %122 = vector.broadcast %cst_44 : f32 to vector<8x128xf32>
    %123 = arith.select %121, %100, %122 : vector<8x128xi1>, vector<8x128xf32>
    %cst_45 = arith.constant dense<0xFF800000> : vector<128xf32>
    %124 = vector.multi_reduction <maximumf>, %123, %cst_45 [0] : vector<8x128xf32> to vector<128xf32>
    %125 = vector.shape_cast %124 : vector<128xf32> to vector<1x128xf32>
    %cst_46 = arith.constant 0.000000e+00 : f32
    %126 = vector.broadcast %cst_46 : f32 to vector<1x128xf32>
    %127 = arith.select %106, %125, %126 : vector<1x128xf32>
    %c2_i32_47 = arith.constant 2 : i32
    %128 = arith.addi %6, %c2_i32_47 : i32
    %129 = arith.index_cast %128 : i32 to index
    %c0_48 = arith.constant 0 : index
    %130 = vector.load %arg8[%129, %c0_48] : memref<8x128xf32, #tpu.memory_space<vmem>>, vector<1x128xf32>
    tpu.vector_store %arg8[%129, %c0_48], %119 {strides = array<i32>} : memref<8x128xf32, #tpu.memory_space<vmem>>, vector<1x128xf32>,
    %c2_i32_49 = arith.constant 2 : i32
    %131 = arith.addi %6, %c2_i32_49 : i32
    %132 = arith.index_cast %131 : i32 to index
    %c0_50 = arith.constant 0 : index
    %133 = vector.load %arg9[%132, %c0_50] : memref<8x128xf32, #tpu.memory_space<vmem>>, vector<1x128xf32>
    tpu.vector_store %arg9[%132, %c0_50], %127 {strides = array<i32>} : memref<8x128xf32, #tpu.memory_space<vmem>>, vector<1x128xf32>,
    %c3_i32 = arith.constant 3 : i32
    %134 = arith.addi %5, %c3_i32 : i32
    %c0_51 = arith.constant 0 : index
    %135 = arith.index_cast %134 : i32 to index
    %136 = memref.load %arg2[%c0_51, %135] : memref<2x16xi32, #tpu.memory_space<smem>>
    %c3_i32_52 = arith.constant 3 : i32
    %137 = arith.addi %5, %c3_i32_52 : i32
    %c1_53 = arith.constant 1 : index
    %138 = arith.index_cast %137 : i32 to index
    %139 = memref.load %arg2[%c1_53, %138] : memref<2x16xi32, #tpu.memory_space<smem>>
    %c3 = arith.constant 3 : index
    %c0_54 = arith.constant 0 : index
    %c0_55 = arith.constant 0 : index
    %140 = vector.load %arg3[%c3, %c0_54, %c0_55] : memref<8x8x128xbf16, #tpu.memory_space<vmem>>, vector<1x8x128xbf16>
    %141 = vector.shape_cast %140 : vector<1x8x128xbf16> to vector<8x128xbf16>
    %142 = arith.extf %141 : vector<8x128xbf16> to vector<8x128xf32>
    %143 = vector.broadcast %136 : i32 to vector<8x1xi32>
    %144 = arith.cmpi sge, %7, %143 : vector<8x1xi32>
    %145 = vector.broadcast %139 : i32 to vector<8x1xi32>
    %146 = arith.cmpi slt, %7, %145 : vector<8x1xi32>
    %147 = arith.andi %144, %146 : vector<8x1xi1>
    %148 = arith.cmpi sgt, %139, %136 : i32
    %149 = arith.subi %139, %136 : i32
    %c1_i32_56 = arith.constant 1 : i32
    %150 = arith.maxsi %149, %c1_i32_56 : i32
    %151 = arith.sitofp %150 : i32 to f32
    %cst_57 = arith.constant 0.000000e+00 : f32
    %152 = vector.shape_cast %147 : vector<8x1xi1> to vector<8x1xi1>
    %153 = vector.broadcast %152 : vector<8x1xi1> to vector<8x128xi1>
    %154 = vector.broadcast %cst_57 : f32 to vector<8x128xf32>
    %155 = arith.select %153, %142, %154 : vector<8x128xi1>, vector<8x128xf32>
    %cst_58 = arith.constant dense<0.000000e+00> : vector<128xf32>
    %156 = vector.multi_reduction <add>, %155, %cst_58 [0] : vector<8x128xf32> to vector<128xf32>
    %157 = vector.shape_cast %156 : vector<128xf32> to vector<1x128xf32>
    %158 = vector.broadcast %151 : f32 to vector<1x128xf32>
    %159 = arith.divf %157, %158 : vector<1x128xf32>
    %cst_59 = arith.constant 0.000000e+00 : f32
    %160 = vector.broadcast %cst_59 : f32 to vector<1x128xf32>
    %161 = arith.select %148, %159, %160 : vector<1x128xf32>
    %cst_60 = arith.constant 0xFF800000 : f32
    %162 = vector.shape_cast %147 : vector<8x1xi1> to vector<8x1xi1>
    %163 = vector.broadcast %162 : vector<8x1xi1> to vector<8x128xi1>
    %164 = vector.broadcast %cst_60 : f32 to vector<8x128xf32>
    %165 = arith.select %163, %142, %164 : vector<8x128xi1>, vector<8x128xf32>
    %cst_61 = arith.constant dense<0xFF800000> : vector<128xf32>
    %166 = vector.multi_reduction <maximumf>, %165, %cst_61 [0] : vector<8x128xf32> to vector<128xf32>
    %167 = vector.shape_cast %166 : vector<128xf32> to vector<1x128xf32>
    %cst_62 = arith.constant 0.000000e+00 : f32
    %168 = vector.broadcast %cst_62 : f32 to vector<1x128xf32>
    %169 = arith.select %148, %167, %168 : vector<1x128xf32>
    %c3_i32_63 = arith.constant 3 : i32
    %170 = arith.addi %6, %c3_i32_63 : i32
    %171 = arith.index_cast %170 : i32 to index
    %c0_64 = arith.constant 0 : index
    %172 = vector.load %arg8[%171, %c0_64] : memref<8x128xf32, #tpu.memory_space<vmem>>, vector<1x128xf32>
    tpu.vector_store %arg8[%171, %c0_64], %161 {strides = array<i32>} : memref<8x128xf32, #tpu.memory_space<vmem>>, vector<1x128xf32>,
    %c3_i32_65 = arith.constant 3 : i32
    %173 = arith.addi %6, %c3_i32_65 : i32
    %174 = arith.index_cast %173 : i32 to index
    %c0_66 = arith.constant 0 : index
    %175 = vector.load %arg9[%174, %c0_66] : memref<8x128xf32, #tpu.memory_space<vmem>>, vector<1x128xf32>
    tpu.vector_store %arg9[%174, %c0_66], %169 {strides = array<i32>} : memref<8x128xf32, #tpu.memory_space<vmem>>, vector<1x128xf32>,
    %c4_i32 = arith.constant 4 : i32
    %176 = arith.addi %5, %c4_i32 : i32
    %c0_67 = arith.constant 0 : index
    %177 = arith.index_cast %176 : i32 to index
    %178 = memref.load %arg2[%c0_67, %177] : memref<2x16xi32, #tpu.memory_space<smem>>
    %c4_i32_68 = arith.constant 4 : i32
    %179 = arith.addi %5, %c4_i32_68 : i32
    %c1_69 = arith.constant 1 : index
    %180 = arith.index_cast %179 : i32 to index
    %181 = memref.load %arg2[%c1_69, %180] : memref<2x16xi32, #tpu.memory_space<smem>>
    %c4 = arith.constant 4 : index
    %c0_70 = arith.constant 0 : index
    %c0_71 = arith.constant 0 : index
    %182 = vector.load %arg3[%c4, %c0_70, %c0_71] : memref<8x8x128xbf16, #tpu.memory_space<vmem>>, vector<1x8x128xbf16>
    %183 = vector.shape_cast %182 : vector<1x8x128xbf16> to vector<8x128xbf16>
    %184 = arith.extf %183 : vector<8x128xbf16> to vector<8x128xf32>
    %185 = vector.broadcast %178 : i32 to vector<8x1xi32>
    %186 = arith.cmpi sge, %7, %185 : vector<8x1xi32>
    %187 = vector.broadcast %181 : i32 to vector<8x1xi32>
    %188 = arith.cmpi slt, %7, %187 : vector<8x1xi32>
    %189 = arith.andi %186, %188 : vector<8x1xi1>
    %190 = arith.cmpi sgt, %181, %178 : i32
    %191 = arith.subi %181, %178 : i32
    %c1_i32_72 = arith.constant 1 : i32
    %192 = arith.maxsi %191, %c1_i32_72 : i32
    %193 = arith.sitofp %192 : i32 to f32
    %cst_73 = arith.constant 0.000000e+00 : f32
    %194 = vector.shape_cast %189 : vector<8x1xi1> to vector<8x1xi1>
    %195 = vector.broadcast %194 : vector<8x1xi1> to vector<8x128xi1>
    %196 = vector.broadcast %cst_73 : f32 to vector<8x128xf32>
    %197 = arith.select %195, %184, %196 : vector<8x128xi1>, vector<8x128xf32>
    %cst_74 = arith.constant dense<0.000000e+00> : vector<128xf32>
    %198 = vector.multi_reduction <add>, %197, %cst_74 [0] : vector<8x128xf32> to vector<128xf32>
    %199 = vector.shape_cast %198 : vector<128xf32> to vector<1x128xf32>
    %200 = vector.broadcast %193 : f32 to vector<1x128xf32>
    %201 = arith.divf %199, %200 : vector<1x128xf32>
    %cst_75 = arith.constant 0.000000e+00 : f32
    %202 = vector.broadcast %cst_75 : f32 to vector<1x128xf32>
    %203 = arith.select %190, %201, %202 : vector<1x128xf32>
    %cst_76 = arith.constant 0xFF800000 : f32
    %204 = vector.shape_cast %189 : vector<8x1xi1> to vector<8x1xi1>
    %205 = vector.broadcast %204 : vector<8x1xi1> to vector<8x128xi1>
    %206 = vector.broadcast %cst_76 : f32 to vector<8x128xf32>
    %207 = arith.select %205, %184, %206 : vector<8x128xi1>, vector<8x128xf32>
    %cst_77 = arith.constant dense<0xFF800000> : vector<128xf32>
    %208 = vector.multi_reduction <maximumf>, %207, %cst_77 [0] : vector<8x128xf32> to vector<128xf32>
    %209 = vector.shape_cast %208 : vector<128xf32> to vector<1x128xf32>
    %cst_78 = arith.constant 0.000000e+00 : f32
    %210 = vector.broadcast %cst_78 : f32 to vector<1x128xf32>
    %211 = arith.select %190, %209, %210 : vector<1x128xf32>
    %c4_i32_79 = arith.constant 4 : i32
    %212 = arith.addi %6, %c4_i32_79 : i32
    %213 = arith.index_cast %212 : i32 to index
    %c0_80 = arith.constant 0 : index
    %214 = vector.load %arg8[%213, %c0_80] : memref<8x128xf32, #tpu.memory_space<vmem>>, vector<1x128xf32>
    tpu.vector_store %arg8[%213, %c0_80], %203 {strides = array<i32>} : memref<8x128xf32, #tpu.memory_space<vmem>>, vector<1x128xf32>,
    %c4_i32_81 = arith.constant 4 : i32
    %215 = arith.addi %6, %c4_i32_81 : i32
    %216 = arith.index_cast %215 : i32 to index
    %c0_82 = arith.constant 0 : index
    %217 = vector.load %arg9[%216, %c0_82] : memref<8x128xf32, #tpu.memory_space<vmem>>, vector<1x128xf32>
    tpu.vector_store %arg9[%216, %c0_82], %211 {strides = array<i32>} : memref<8x128xf32, #tpu.memory_space<vmem>>, vector<1x128xf32>,
    %c5_i32 = arith.constant 5 : i32
    %218 = arith.addi %5, %c5_i32 : i32
    %c0_83 = arith.constant 0 : index
    %219 = arith.index_cast %218 : i32 to index
    %220 = memref.load %arg2[%c0_83, %219] : memref<2x16xi32, #tpu.memory_space<smem>>
    %c5_i32_84 = arith.constant 5 : i32
    %221 = arith.addi %5, %c5_i32_84 : i32
    %c1_85 = arith.constant 1 : index
    %222 = arith.index_cast %221 : i32 to index
    %223 = memref.load %arg2[%c1_85, %222] : memref<2x16xi32, #tpu.memory_space<smem>>
    %c5 = arith.constant 5 : index
    %c0_86 = arith.constant 0 : index
    %c0_87 = arith.constant 0 : index
    %224 = vector.load %arg3[%c5, %c0_86, %c0_87] : memref<8x8x128xbf16, #tpu.memory_space<vmem>>, vector<1x8x128xbf16>
    %225 = vector.shape_cast %224 : vector<1x8x128xbf16> to vector<8x128xbf16>
    %226 = arith.extf %225 : vector<8x128xbf16> to vector<8x128xf32>
    %227 = vector.broadcast %220 : i32 to vector<8x1xi32>
    %228 = arith.cmpi sge, %7, %227 : vector<8x1xi32>
    %229 = vector.broadcast %223 : i32 to vector<8x1xi32>
    %230 = arith.cmpi slt, %7, %229 : vector<8x1xi32>
    %231 = arith.andi %228, %230 : vector<8x1xi1>
    %232 = arith.cmpi sgt, %223, %220 : i32
    %233 = arith.subi %223, %220 : i32
    %c1_i32_88 = arith.constant 1 : i32
    %234 = arith.maxsi %233, %c1_i32_88 : i32
    %235 = arith.sitofp %234 : i32 to f32
    %cst_89 = arith.constant 0.000000e+00 : f32
    %236 = vector.shape_cast %231 : vector<8x1xi1> to vector<8x1xi1>
    %237 = vector.broadcast %236 : vector<8x1xi1> to vector<8x128xi1>
    %238 = vector.broadcast %cst_89 : f32 to vector<8x128xf32>
    %239 = arith.select %237, %226, %238 : vector<8x128xi1>, vector<8x128xf32>
    %cst_90 = arith.constant dense<0.000000e+00> : vector<128xf32>
    %240 = vector.multi_reduction <add>, %239, %cst_90 [0] : vector<8x128xf32> to vector<128xf32>
    %241 = vector.shape_cast %240 : vector<128xf32> to vector<1x128xf32>
    %242 = vector.broadcast %235 : f32 to vector<1x128xf32>
    %243 = arith.divf %241, %242 : vector<1x128xf32>
    %cst_91 = arith.constant 0.000000e+00 : f32
    %244 = vector.broadcast %cst_91 : f32 to vector<1x128xf32>
    %245 = arith.select %232, %243, %244 : vector<1x128xf32>
    %cst_92 = arith.constant 0xFF800000 : f32
    %246 = vector.shape_cast %231 : vector<8x1xi1> to vector<8x1xi1>
    %247 = vector.broadcast %246 : vector<8x1xi1> to vector<8x128xi1>
    %248 = vector.broadcast %cst_92 : f32 to vector<8x128xf32>
    %249 = arith.select %247, %226, %248 : vector<8x128xi1>, vector<8x128xf32>
    %cst_93 = arith.constant dense<0xFF800000> : vector<128xf32>
    %250 = vector.multi_reduction <maximumf>, %249, %cst_93 [0] : vector<8x128xf32> to vector<128xf32>
    %251 = vector.shape_cast %250 : vector<128xf32> to vector<1x128xf32>
    %cst_94 = arith.constant 0.000000e+00 : f32
    %252 = vector.broadcast %cst_94 : f32 to vector<1x128xf32>
    %253 = arith.select %232, %251, %252 : vector<1x128xf32>
    %c5_i32_95 = arith.constant 5 : i32
    %254 = arith.addi %6, %c5_i32_95 : i32
    %255 = arith.index_cast %254 : i32 to index
    %c0_96 = arith.constant 0 : index
    %256 = vector.load %arg8[%255, %c0_96] : memref<8x128xf32, #tpu.memory_space<vmem>>, vector<1x128xf32>
    tpu.vector_store %arg8[%255, %c0_96], %245 {strides = array<i32>} : memref<8x128xf32, #tpu.memory_space<vmem>>, vector<1x128xf32>,
    %c5_i32_97 = arith.constant 5 : i32
    %257 = arith.addi %6, %c5_i32_97 : i32
    %258 = arith.index_cast %257 : i32 to index
    %c0_98 = arith.constant 0 : index
    %259 = vector.load %arg9[%258, %c0_98] : memref<8x128xf32, #tpu.memory_space<vmem>>, vector<1x128xf32>
    tpu.vector_store %arg9[%258, %c0_98], %253 {strides = array<i32>} : memref<8x128xf32, #tpu.memory_space<vmem>>, vector<1x128xf32>,
    %c6_i32 = arith.constant 6 : i32
    %260 = arith.addi %5, %c6_i32 : i32
    %c0_99 = arith.constant 0 : index
    %261 = arith.index_cast %260 : i32 to index
    %262 = memref.load %arg2[%c0_99, %261] : memref<2x16xi32, #tpu.memory_space<smem>>
    %c6_i32_100 = arith.constant 6 : i32
    %263 = arith.addi %5, %c6_i32_100 : i32
    %c1_101 = arith.constant 1 : index
    %264 = arith.index_cast %263 : i32 to index
    %265 = memref.load %arg2[%c1_101, %264] : memref<2x16xi32, #tpu.memory_space<smem>>
    %c6 = arith.constant 6 : index
    %c0_102 = arith.constant 0 : index
    %c0_103 = arith.constant 0 : index
    %266 = vector.load %arg3[%c6, %c0_102, %c0_103] : memref<8x8x128xbf16, #tpu.memory_space<vmem>>, vector<1x8x128xbf16>
    %267 = vector.shape_cast %266 : vector<1x8x128xbf16> to vector<8x128xbf16>
    %268 = arith.extf %267 : vector<8x128xbf16> to vector<8x128xf32>
    %269 = vector.broadcast %262 : i32 to vector<8x1xi32>
    %270 = arith.cmpi sge, %7, %269 : vector<8x1xi32>
    %271 = vector.broadcast %265 : i32 to vector<8x1xi32>
    %272 = arith.cmpi slt, %7, %271 : vector<8x1xi32>
    %273 = arith.andi %270, %272 : vector<8x1xi1>
    %274 = arith.cmpi sgt, %265, %262 : i32
    %275 = arith.subi %265, %262 : i32
    %c1_i32_104 = arith.constant 1 : i32
    %276 = arith.maxsi %275, %c1_i32_104 : i32
    %277 = arith.sitofp %276 : i32 to f32
    %cst_105 = arith.constant 0.000000e+00 : f32
    %278 = vector.shape_cast %273 : vector<8x1xi1> to vector<8x1xi1>
    %279 = vector.broadcast %278 : vector<8x1xi1> to vector<8x128xi1>
    %280 = vector.broadcast %cst_105 : f32 to vector<8x128xf32>
    %281 = arith.select %279, %268, %280 : vector<8x128xi1>, vector<8x128xf32>
    %cst_106 = arith.constant dense<0.000000e+00> : vector<128xf32>
    %282 = vector.multi_reduction <add>, %281, %cst_106 [0] : vector<8x128xf32> to vector<128xf32>
    %283 = vector.shape_cast %282 : vector<128xf32> to vector<1x128xf32>
    %284 = vector.broadcast %277 : f32 to vector<1x128xf32>
    %285 = arith.divf %283, %284 : vector<1x128xf32>
    %cst_107 = arith.constant 0.000000e+00 : f32
    %286 = vector.broadcast %cst_107 : f32 to vector<1x128xf32>
    %287 = arith.select %274, %285, %286 : vector<1x128xf32>
    %cst_108 = arith.constant 0xFF800000 : f32
    %288 = vector.shape_cast %273 : vector<8x1xi1> to vector<8x1xi1>
    %289 = vector.broadcast %288 : vector<8x1xi1> to vector<8x128xi1>
    %290 = vector.broadcast %cst_108 : f32 to vector<8x128xf32>
    %291 = arith.select %289, %268, %290 : vector<8x128xi1>, vector<8x128xf32>
    %cst_109 = arith.constant dense<0xFF800000> : vector<128xf32>
    %292 = vector.multi_reduction <maximumf>, %291, %cst_109 [0] : vector<8x128xf32> to vector<128xf32>
    %293 = vector.shape_cast %292 : vector<128xf32> to vector<1x128xf32>
    %cst_110 = arith.constant 0.000000e+00 : f32
    %294 = vector.broadcast %cst_110 : f32 to vector<1x128xf32>
    %295 = arith.select %274, %293, %294 : vector<1x128xf32>
    %c6_i32_111 = arith.constant 6 : i32
    %296 = arith.addi %6, %c6_i32_111 : i32
    %297 = arith.index_cast %296 : i32 to index
    %c0_112 = arith.constant 0 : index
    %298 = vector.load %arg8[%297, %c0_112] : memref<8x128xf32, #tpu.memory_space<vmem>>, vector<1x128xf32>
    tpu.vector_store %arg8[%297, %c0_112], %287 {strides = array<i32>} : memref<8x128xf32, #tpu.memory_space<vmem>>, vector<1x128xf32>,
    %c6_i32_113 = arith.constant 6 : i32
    %299 = arith.addi %6, %c6_i32_113 : i32
    %300 = arith.index_cast %299 : i32 to index
    %c0_114 = arith.constant 0 : index
    %301 = vector.load %arg9[%300, %c0_114] : memref<8x128xf32, #tpu.memory_space<vmem>>, vector<1x128xf32>
    tpu.vector_store %arg9[%300, %c0_114], %295 {strides = array<i32>} : memref<8x128xf32, #tpu.memory_space<vmem>>, vector<1x128xf32>,
    %c7_i32 = arith.constant 7 : i32
    %302 = arith.addi %5, %c7_i32 : i32
    %c0_115 = arith.constant 0 : index
    %303 = arith.index_cast %302 : i32 to index
    %304 = memref.load %arg2[%c0_115, %303] : memref<2x16xi32, #tpu.memory_space<smem>>
    %c7_i32_116 = arith.constant 7 : i32
    %305 = arith.addi %5, %c7_i32_116 : i32
    %c1_117 = arith.constant 1 : index
    %306 = arith.index_cast %305 : i32 to index
    %307 = memref.load %arg2[%c1_117, %306] : memref<2x16xi32, #tpu.memory_space<smem>>
    %c7 = arith.constant 7 : index
    %c0_118 = arith.constant 0 : index
    %c0_119 = arith.constant 0 : index
    %308 = vector.load %arg3[%c7, %c0_118, %c0_119] : memref<8x8x128xbf16, #tpu.memory_space<vmem>>, vector<1x8x128xbf16>
    %309 = vector.shape_cast %308 : vector<1x8x128xbf16> to vector<8x128xbf16>
    %310 = arith.extf %309 : vector<8x128xbf16> to vector<8x128xf32>
    %311 = vector.broadcast %304 : i32 to vector<8x1xi32>
    %312 = arith.cmpi sge, %7, %311 : vector<8x1xi32>
    %313 = vector.broadcast %307 : i32 to vector<8x1xi32>
    %314 = arith.cmpi slt, %7, %313 : vector<8x1xi32>
    %315 = arith.andi %312, %314 : vector<8x1xi1>
    %316 = arith.cmpi sgt, %307, %304 : i32
    %317 = arith.subi %307, %304 : i32
    %c1_i32_120 = arith.constant 1 : i32
    %318 = arith.maxsi %317, %c1_i32_120 : i32
    %319 = arith.sitofp %318 : i32 to f32
    %cst_121 = arith.constant 0.000000e+00 : f32
    %320 = vector.shape_cast %315 : vector<8x1xi1> to vector<8x1xi1>
    %321 = vector.broadcast %320 : vector<8x1xi1> to vector<8x128xi1>
    %322 = vector.broadcast %cst_121 : f32 to vector<8x128xf32>
    %323 = arith.select %321, %310, %322 : vector<8x128xi1>, vector<8x128xf32>
    %cst_122 = arith.constant dense<0.000000e+00> : vector<128xf32>
    %324 = vector.multi_reduction <add>, %323, %cst_122 [0] : vector<8x128xf32> to vector<128xf32>
    %325 = vector.shape_cast %324 : vector<128xf32> to vector<1x128xf32>
    %326 = vector.broadcast %319 : f32 to vector<1x128xf32>
    %327 = arith.divf %325, %326 : vector<1x128xf32>
    %cst_123 = arith.constant 0.000000e+00 : f32
    %328 = vector.broadcast %cst_123 : f32 to vector<1x128xf32>
    %329 = arith.select %316, %327, %328 : vector<1x128xf32>
    %cst_124 = arith.constant 0xFF800000 : f32
    %330 = vector.shape_cast %315 : vector<8x1xi1> to vector<8x1xi1>
    %331 = vector.broadcast %330 : vector<8x1xi1> to vector<8x128xi1>
    %332 = vector.broadcast %cst_124 : f32 to vector<8x128xf32>
    %333 = arith.select %331, %310, %332 : vector<8x128xi1>, vector<8x128xf32>
    %cst_125 = arith.constant dense<0xFF800000> : vector<128xf32>
    %334 = vector.multi_reduction <maximumf>, %333, %cst_125 [0] : vector<8x128xf32> to vector<128xf32>
    %335 = vector.shape_cast %334 : vector<128xf32> to vector<1x128xf32>
    %cst_126 = arith.constant 0.000000e+00 : f32
    %336 = vector.broadcast %cst_126 : f32 to vector<1x128xf32>
    %337 = arith.select %316, %335, %336 : vector<1x128xf32>
    %c7_i32_127 = arith.constant 7 : i32
    %338 = arith.addi %6, %c7_i32_127 : i32
    %339 = arith.index_cast %338 : i32 to index
    %c0_128 = arith.constant 0 : index
    %340 = vector.load %arg8[%339, %c0_128] : memref<8x128xf32, #tpu.memory_space<vmem>>, vector<1x128xf32>
    tpu.vector_store %arg8[%339, %c0_128], %329 {strides = array<i32>} : memref<8x128xf32, #tpu.memory_space<vmem>>, vector<1x128xf32>,
    %c7_i32_129 = arith.constant 7 : i32
    %341 = arith.addi %6, %c7_i32_129 : i32
    %342 = arith.index_cast %341 : i32 to index
    %c0_130 = arith.constant 0 : index
    %343 = vector.load %arg9[%342, %c0_130] : memref<8x128xf32, #tpu.memory_space<vmem>>, vector<1x128xf32>
    tpu.vector_store %arg9[%342, %c0_130], %337 {strides = array<i32>} : memref<8x128xf32, #tpu.memory_space<vmem>>, vector<1x128xf32>,
    %c0_i32_131 = arith.constant 0 : i32
    %344 = arith.cmpi eq, %arg1, %c0_i32_131 : i32
    %345 = arith.extui %344 : i1 to i32
    %c0_i32_132 = arith.constant 0 : i32
    %346 = arith.cmpi ne, %345, %c0_i32_132 : i32
    scf.if %346 {
      %c0_133 = arith.constant 0 : index
      %c0_134 = arith.constant 0 : index
      %347 = vector.load %arg4[%c0_133, %c0_134] : memref<128x128xbf16, #tpu.memory_space<vmem>>, vector<128x128xbf16>
      %348 = arith.extf %347 : vector<128x128xbf16> to vector<128x128xf32>
      %c0_135 = arith.constant 0 : index
      %c0_136 = arith.constant 0 : index
      %349 = vector.load %arg5[%c0_135, %c0_136] : memref<128x128xbf16, #tpu.memory_space<vmem>>, vector<128x128xbf16>
      %350 = arith.extf %349 : vector<128x128xbf16> to vector<128x128xf32>
      %c0_137 = arith.constant 0 : index
      %c0_138 = arith.constant 0 : index
      %351 = vector.load %arg8[%c0_137, %c0_138] : memref<8x128xf32, #tpu.memory_space<vmem>>, vector<8x128xf32>
      %cst_139 = arith.constant dense<0.000000e+00> : vector<8x128xf32>
      %352 = tpu.matmul %351, %348, %cst_139 {dimension_numbers = #tpu.dot_dimension_numbers<[1], [0], [0], [1], [0, 0, 1, 1], [], []>} : vector<8x128xf32>, vector<128x128xf32>, vector<8x128xf32> -> vector<8x128xf32>
      %c0_140 = arith.constant 0 : index
      %c0_141 = arith.constant 0 : index
      %353 = vector.load %arg9[%c0_140, %c0_141] : memref<8x128xf32, #tpu.memory_space<vmem>>, vector<8x128xf32>
      %cst_142 = arith.constant dense<0.000000e+00> : vector<8x128xf32>
      %354 = tpu.matmul %353, %350, %cst_142 {dimension_numbers = #tpu.dot_dimension_numbers<[1], [0], [0], [1], [0, 0, 1, 1], [], []>} : vector<8x128xf32>, vector<128x128xf32>, vector<8x128xf32> -> vector<8x128xf32>
      %355 = arith.addf %352, %354 : vector<8x128xf32>
      %c0_143 = arith.constant 0 : index
      %c0_144 = arith.constant 0 : index
      %356 = vector.load %arg6[%c0_143, %c0_144] : memref<1x128xf32, #tpu.memory_space<vmem>>, vector<1x128xf32>
      %357 = vector.broadcast %356 : vector<1x128xf32> to vector<8x128xf32>
      %358 = arith.addf %355, %357 : vector<8x128xf32>
      %c0_145 = arith.constant 0 : index
      %c0_146 = arith.constant 0 : index
      %359 = vector.load %arg7[%c0_145, %c0_146] : memref<8x128xf32, #tpu.memory_space<vmem>>, vector<8x128xf32>
      tpu.vector_store %arg7[%c0_145, %c0_146], %358 {strides = array<i32>} : memref<8x128xf32, #tpu.memory_space<vmem>>, vector<8x128xf32>,
    } else {
    }
    return
  }
  func.func @transform_0(%arg0: i32, %arg1: i32, %arg2: memref<2x16xi32, #tpu.memory_space<smem>>) -> (i32, i32, i32) {
    %c1_i32 = arith.constant 1 : i32
    %0 = arith.muli %arg0, %c1_i32 : i32
    %1 = arith.addi %0, %arg1 : i32
    %c0_i32 = arith.constant 0 : i32
    %c0_i32_0 = arith.constant 0 : i32
    %c0_i32_1 = arith.constant 0 : i32
    return %1, %c0_i32, %c0_i32_0 : i32, i32, i32
  }
  func.func @transform_1(%arg0: i32, %arg1: i32, %arg2: memref<2x16xi32, #tpu.memory_space<smem>>) -> (i32, i32) {
    %c0_i32 = arith.constant 0 : i32
    %c0_i32_0 = arith.constant 0 : i32
    %c0_i32_1 = arith.constant 0 : i32
    return %c0_i32, %c0_i32_0 : i32, i32
  }
  func.func @transform_2(%arg0: i32, %arg1: i32, %arg2: memref<2x16xi32, #tpu.memory_space<smem>>) -> (i32, i32) {
    %c0_i32 = arith.constant 0 : i32
    %c0_i32_0 = arith.constant 0 : i32
    %c0_i32_1 = arith.constant 0 : i32
    return %c0_i32, %c0_i32_0 : i32, i32
  }
  func.func @transform_3(%arg0: i32, %arg1: i32, %arg2: memref<2x16xi32, #tpu.memory_space<smem>>) -> (i32, i32) {
    %c0_i32 = arith.constant 0 : i32
    %c0_i32_0 = arith.constant 0 : i32
    %c0_i32_1 = arith.constant 0 : i32
    return %c0_i32, %c0_i32_0 : i32, i32
  }
  func.func @transform_4(%arg0: i32, %arg1: i32, %arg2: memref<2x16xi32, #tpu.memory_space<smem>>) -> (i32, i32) {
    %c0_i32 = arith.constant 0 : i32
    %c0_i32_0 = arith.constant 0 : i32
    return %arg0, %c0_i32 : i32, i32
  }
}

</mosaic_0001>

<llo_original>
// kernel: tpu_custom_call.1
$region0: #{tpu_custom_call.1}
  #allocation0 [shape = 'u32[]', space=smem, size = 0x4, offset = 0x4, fixed_abs, tag = 'smem constant byte address 0x4 - core index']
  #allocation1 [shape = 'u32[72,128]{1,0:T(1,128)}', space=vmem, size = 0x9000, scoped, tag = 'internal scratch']
  #allocation2 [shape = 'f32[8,128]{1,0:T(8,128)}', space=vmem, size = 0x1000, scoped, tag = 'scratch operand']
  #allocation3 [shape = 'f32[8,128]{1,0:T(8,128)}', space=vmem, size = 0x1000, scoped, tag = 'scratch operand']
  #allocation4 [shape = 's32[1]{0}', space=sflag, size = 0x4, scoped, tag = 'scoped memory for tpu_custom_call.1']
  #allocation5 [shape = 'u8[1024]{0}', space=smem, size = 0x400, scoped, tag = 'prefetched SMEM operand 0']
  %s0 = inlined_call_operand.hbm [shape: s32[2,16], index: 0, kind: input, shape index: {}]
  %s1 = inlined_call_operand.hbm [shape: bf16[16,8,128], index: 1, kind: input, shape index: {}]
  %s2 = inlined_call_operand.hbm [shape: bf16[128,128], index: 2, kind: input, shape index: {}]
  %s3 = inlined_call_operand.hbm [shape: bf16[128,128], index: 3, kind: input, shape index: {}]
  %s4 = inlined_call_operand.vmem [shape: f32[1,128], index: 4, kind: input, shape index: {}]
  %s5 = inlined_call_operand.hbm [shape: f32[16,128], index: 5, kind: output, shape index: {}]
  %s6 = sld [smem:[#allocation0]]
  $region69: #{tpu_custom_call.1} parent=0
    _
  %s8 = ssub.s32 1, %s6
  %s9 = scalar_select 0, %s8, %s6
  %s11 = sshll.u32 %s0, 4
  %s12 = int_to_ptr.hbm [resolvable:$true] %s11
  %14 = dma.hbm_to_smem %s12, 32, [#allocation5], [#allocation4]
  %16 = dma.done [#allocation4], 32
  %17 = sfence
  $region1: #{tpu_custom_call.1} parent=0
    #allocation6 [shape = 'u8[32768]{0}', space=vmem, size = 0x8000, scoped, tag = 'input window, operand 1']
    #allocation7 [shape = 's32[2]{0}', space=sflag, size = 0x8, scoped, tag = 'scoped memory for tpu_custom_call.1']
    #allocation8 [shape = 's32[2]{0}', space=sflag, size = 0x8, scoped, tag = 'scoped memory for tpu_custom_call.1']
    #allocation9 [shape = 'u8[32768]{0}', space=vmem, size = 0x8000, scoped, tag = 'input window, operand 2, single buffered']
    #allocation10 [shape = 's32[1]{0}', space=sflag, size = 0x4, scoped, tag = 'scoped memory for tpu_custom_call.1']
    #allocation11 [shape = 'u8[32768]{0}', space=vmem, size = 0x8000, scoped, tag = 'input window, operand 3, single buffered']
    #allocation12 [shape = 'u8[8192]{0}', space=vmem, size = 0x2000, scoped, tag = 'output window, operand 0']
    %18 = vsyncpa [#allocation7], 0
    %s19 = scalar_lea.sflag [#allocation7], 1
    %20 = vsyncpa %s19, 0
    %21 = vsyncpa [#allocation10], 0
    %22 = vsyncpa [#allocation8], 0
    %s23 = scalar_lea.sflag [#allocation8], 1
    %24 = vsyncpa %s23, 0
    loop: start=0, step=1, limit=4
    $region2: #{tpu_custom_call.1} parent=1 // loop_pre_header
      _
    $region3: #{tpu_custom_call.1} parent=1 // loop_header
      %s26 = sphi 0, %s30
      %p27 = scmp.ge.s32.totalorder %s26, 4
      %s33 = sphi 0, %s45
      %s34 = sphi 0, %s41
      %s35 = sphi 0, %s33
      %s36 = sphi 0, %s34
      %s37 = sphi 0, %s35
      %s38 = sphi 0, %s36
      %s50 = sphi 0, %s52
      %s53 = sphi 0, %s50
      %s54 = sphi 0, %s53
      %s70 = sphi 0, %s54
      %s74 = sphi 0, %s74
      %s76 = sphi 0, %s74
      %s77 = sphi 0, %s76
      %s91 = sphi 0, %s77
      %s95 = sphi 0, %s95
      %s97 = sphi 0, %s95
      %s98 = sphi 0, %s97
      %s112 = sphi 0, %s98
      %s116 = sphi 0, %s116
      %s118 = sphi 0, %s116
      %s119 = sphi 0, %s118
      %s133 = sphi 0, %s119
      %s139 = sphi 0, %s141
      %s142 = sphi 0, %s139
      %s143 = sphi 0, %s142
      %s159 = sphi 0, %s143
    $region4: #{tpu_custom_call.1} parent=1 // loop_header_branch
      %29 = sbr.rel (%p27) target = $region8
    $region5: #{tpu_custom_call.1} parent=1 // loop_body
      %s31 = ssub.s32 %s26, 1
      %s32 = ssub.s32 %s26, 2
      %s39 = sadd.s32 1, %s34
      %p40 = scmp.ge.s32.totalorder %s39, 1
      %s41 = scalar_select %p40, 0, %s39
      %s42 = sadd.s32 1, %s33
      %s43 = scalar_select %p40, %s42, %s33
      %p44 = scmp.ge.s32.totalorder %s43, 2
      %s45 = scalar_select %p44, 0, %s43
      %s46 = sadd.s32 %s33, %s34
      %s47 = sadd.s32 %s45, %s41
      %s48 = ssub.s32 %s46, %s47
      %p49 = scmp.eq.s32.totalorder %s48, 0
      %s51 = sadd.s32 %s50, 1
      %s52 = scalar_select %p49, %s50, %s51
      %p55 = pneg %p49
      %p56 = scmp.eq.s32.totalorder %s26, 1
      %p57 = por %p55, %p56
      %p58 = scmp.ne.s32.totalorder %s50, %s53
      %p59 = scmp.eq.s32.totalorder %s26, 0
      %p60 = por %p58, %p59
      %p61 = scmp.ne.s32.totalorder %s50, %s53
      %p62 = scmp.eq.s32.totalorder %s31, 1
      %p63 = por %p61, %p62
      %p64 = scmp.ne.s32.totalorder %s53, %s54
      %p65 = scmp.eq.s32.totalorder %s31, 0
      %p66 = por %p64, %p65
      %p67 = scmp.ne.s32.totalorder %s53, %s54
      %p68 = scmp.eq.s32.totalorder %s32, 1
      %p69 = por %p67, %p68
      %p71 = scmp.ne.s32.totalorder %s54, %s70
      %p72 = scmp.eq.s32.totalorder %s32, 0
      %p73 = por %p71, %p72
      %s75 = sadd.s32 %s74, 1
      %p78 = scmp.eq.s32.totalorder %s26, 1
      %p79 = scmp.ne.s32.totalorder %s74, %s76
      %p80 = scmp.eq.s32.totalorder %s26, 0
      %p81 = por %p79, %p80
      %p82 = scmp.ne.s32.totalorder %s74, %s76
      %p83 = scmp.eq.s32.totalorder %s31, 1
      %p84 = por %p82, %p83
      %p85 = scmp.ne.s32.totalorder %s76, %s77
      %p86 = scmp.eq.s32.totalorder %s31, 0
      %p87 = por %p85, %p86
      %p88 = scmp.ne.s32.totalorder %s76, %s77
      %p89 = scmp.eq.s32.totalorder %s32, 1
      %p90 = por %p88, %p89
      %p92 = scmp.ne.s32.totalorder %s77, %s91
      %p93 = scmp.eq.s32.totalorder %s32, 0
      %p94 = por %p92, %p93
      %s96 = sadd.s32 %s95, 1
      %p99 = scmp.eq.s32.totalorder %s26, 1
      %p100 = scmp.ne.s32.totalorder %s95, %s97
      %p101 = scmp.eq.s32.totalorder %s26, 0
      %p102 = por %p100, %p101
      %p103 = scmp.ne.s32.totalorder %s95, %s97
      %p104 = scmp.eq.s32.totalorder %s31, 1
      %p105 = por %p103, %p104
      %p106 = scmp.ne.s32.totalorder %s97, %s98
      %p107 = scmp.eq.s32.totalorder %s31, 0
      %p108 = por %p106, %p107
      %p109 = scmp.ne.s32.totalorder %s97, %s98
      %p110 = scmp.eq.s32.totalorder %s32, 1
      %p111 = por %p109, %p110
      %p113 = scmp.ne.s32.totalorder %s98, %s112
      %p114 = scmp.eq.s32.totalorder %s32, 0
      %p115 = por %p113, %p114
      %s117 = sadd.s32 %s116, 1
      %p120 = scmp.eq.s32.totalorder %s26, 1
      %p121 = scmp.ne.s32.totalorder %s116, %s118
      %p122 = scmp.eq.s32.totalorder %s26, 0
      %p123 = por %p121, %p122
      %p124 = scmp.ne.s32.totalorder %s116, %s118
      %p125 = scmp.eq.s32.totalorder %s31, 1
      %p126 = por %p124, %p125
      %p127 = scmp.ne.s32.totalorder %s118, %s119
      %p128 = scmp.eq.s32.totalorder %s31, 0
      %p129 = por %p127, %p128
      %p130 = scmp.ne.s32.totalorder %s118, %s119
      %p131 = scmp.eq.s32.totalorder %s32, 1
      %p132 = por %p130, %p131
      %p134 = scmp.ne.s32.totalorder %s119, %s133
      %p135 = scmp.eq.s32.totalorder %s32, 0
      %p136 = por %p134, %p135
      %s137 = ssub.s32 %s33, %s45
      %p138 = scmp.eq.s32.totalorder %s137, 0
      %s140 = sadd.s32 %s139, 1
      %s141 = scalar_select %p138, %s139, %s140
      %p144 = pneg %p138
      %p145 = scmp.eq.s32.totalorder %s26, 1
      %p146 = por %p144, %p145
      %p147 = scmp.ne.s32.totalorder %s139, %s142
      %p148 = scmp.eq.s32.totalorder %s26, 0
      %p149 = por %p147, %p148
      %p150 = scmp.ne.s32.totalorder %s139, %s142
      %p151 = scmp.eq.s32.totalorder %s31, 1
      %p152 = por %p150, %p151
      %p153 = scmp.ne.s32.totalorder %s142, %s143
      %p154 = scmp.eq.s32.totalorder %s31, 0
      %p155 = por %p153, %p154
      %p156 = scmp.ne.s32.totalorder %s142, %s143
      %p157 = scmp.eq.s32.totalorder %s32, 1
      %p158 = por %p156, %p157
      %p160 = scmp.ne.s32.totalorder %s143, %s159
      %p161 = scmp.eq.s32.totalorder %s32, 0
      %p162 = por %p160, %p161
      %p163 = scmp.le.s32.totalorder 1, %s26
      %p164 = scmp.lt.s32.totalorder %s26, 3
      %p165 = pnand %p163, %p164
      %p166 = pneg %p165
      // Predicated region
      $region9: #{tpu_custom_call.1} parent=5 // pred_check
        _
      $region10: #{tpu_custom_call.1} parent=5 // pred_check_branch
        %168 = sbr.rel (%p165) target = $region12
      $region11: #{tpu_custom_call.1} parent=5 // pred_region
        %s169 = ssub.s32 %s26, 1
        // Predicated region
        $region13: #{tpu_custom_call.1} parent=11 // pred_check
          %p170 = pneg %p87
        $region14: #{tpu_custom_call.1} parent=11 // pred_check_branch
          %172 = sbr.rel (%p170) target = $region16
        $region15: #{tpu_custom_call.1} parent=11 // pred_region
          %174 = vsyncadd [#allocation10], 0
          %s175 = sshll.u32 %s2, 4
          %s176 = int_to_ptr.hbm [resolvable:$true] %s175
          %s177 = sshll.u32 [#allocation9], 4
          %s178 = int_to_ptr.vmem [resolvable:$true] %s177
          %183 = dma.hbm_to_vmem [thread:$0]  %s176, 1024, %s178, [#allocation10], 64, 64, 4
        $region16: #{tpu_custom_call.1} parent=11 // pred_fallthru
          _
        // Predicated region
        $region17: #{tpu_custom_call.1} parent=11 // pred_check
          %p184 = pneg %p108
        $region18: #{tpu_custom_call.1} parent=11 // pred_check_branch
          %186 = sbr.rel (%p184) target = $region20
        $region19: #{tpu_custom_call.1} parent=11 // pred_region
          %188 = vsyncadd [#allocation10], 0
          %s189 = sshll.u32 %s3, 4
          %s190 = int_to_ptr.hbm [resolvable:$true] %s189
          %s191 = sshll.u32 [#allocation11], 4
          %s192 = int_to_ptr.vmem [resolvable:$true] %s191
          %197 = dma.hbm_to_vmem [thread:$0]  %s190, 1024, %s192, [#allocation10], 64, 64, 4
        $region20: #{tpu_custom_call.1} parent=11 // pred_fallthru
          _
        // Predicated region
        $region21: #{tpu_custom_call.1} parent=11 // pred_check
          %p198 = pneg %p129
        $region22: #{tpu_custom_call.1} parent=11 // pred_check_branch
          %200 = sbr.rel (%p198) target = $region24
        $region23: #{tpu_custom_call.1} parent=11 // pred_region
          _
        $region24: #{tpu_custom_call.1} parent=11 // pred_fallthru
          _
      $region12: #{tpu_custom_call.1} parent=5 // pred_fallthru
        _
      %p201 = scmp.lt.s32.totalorder %s26, 2
      // Predicated region
      $region25: #{tpu_custom_call.1} parent=5 // pred_check
        %p202 = pneg %p201
      $region26: #{tpu_custom_call.1} parent=5 // pred_check_branch
        %204 = sbr.rel (%p202) target = $region28
      $region27: #{tpu_custom_call.1} parent=5 // pred_region
        // Predicated region
        $region29: #{tpu_custom_call.1} parent=27 // pred_check
          %p205 = pneg %p60
        $region30: #{tpu_custom_call.1} parent=27 // pred_check_branch
          %207 = sbr.rel (%p205) target = $region32
        $region31: #{tpu_custom_call.1} parent=27 // pred_region
          %s208 = sand.u32 %s50, 1
          %s209 = scalar_lea.sflag [#allocation7], %s208
          %s210 = sand.u32 %s50, 1
          %s211 = smul.addr %s210, 32
          %s212 = scalar_lea.vmem [#allocation6], %s211
          %s213 = sadd.s32 %s33, %s34
          %s214 = smul.u32 8, %s213
          %216 = vsyncadd %s209, 0
          %s217 = smul.addr %s214, 4
          %s218 = scalar_lea.hbm %s1, %s217
          %s219 = sshll.u32 %s218, 4
          %s220 = int_to_ptr.hbm [resolvable:$true] %s219
          %s221 = sshll.u32 %s212, 4
          %s222 = int_to_ptr.vmem [resolvable:$true] %s221
          %227 = dma.hbm_to_vmem [thread:$0]  %s220, 512, %s222, %s209, 64, 64, 4
        $region32: #{tpu_custom_call.1} parent=27 // pred_fallthru
          _
      $region28: #{tpu_custom_call.1} parent=5 // pred_fallthru
        _
      %p228 = scmp.le.s32.totalorder 1, %s26
      %p229 = scmp.lt.s32.totalorder %s26, 3
      %p230 = pnand %p228, %p229
      %p231 = pneg %p230
      // Predicated region
      $region33: #{tpu_custom_call.1} parent=5 // pred_check
        _
      $region34: #{tpu_custom_call.1} parent=5 // pred_check_branch
        %233 = sbr.rel (%p230) target = $region36
      $region35: #{tpu_custom_call.1} parent=5 // pred_region
        %s234 = ssub.s32 %s26, 1
        %s235 = sand.u32 %s53, 1
        %s236 = scalar_lea.sflag [#allocation7], %s235
        %s237 = sand.u32 %s53, 1
        %s238 = smul.addr %s237, 32
        %s239 = scalar_lea.vmem [#allocation6], %s238
        // Predicated region
        $region37: #{tpu_custom_call.1} parent=35 // pred_check
          %p240 = pneg %p66
        $region38: #{tpu_custom_call.1} parent=35 // pred_check_branch
          %242 = sbr.rel (%p240) target = $region40
        $region39: #{tpu_custom_call.1} parent=35 // pred_region
          %244 = dma.done %s236, 512
        $region40: #{tpu_custom_call.1} parent=35 // pred_fallthru
          _
        // Predicated region
        $region41: #{tpu_custom_call.1} parent=35 // pred_check
          %p245 = pneg %p87
        $region42: #{tpu_custom_call.1} parent=35 // pred_check_branch
          %247 = sbr.rel (%p245) target = $region44
        $region43: #{tpu_custom_call.1} parent=35 // pred_region
          %249 = dma.done [#allocation10], 1024
        $region44: #{tpu_custom_call.1} parent=35 // pred_fallthru
          _
        // Predicated region
        $region45: #{tpu_custom_call.1} parent=35 // pred_check
          %p250 = pneg %p108
        $region46: #{tpu_custom_call.1} parent=35 // pred_check_branch
          %252 = sbr.rel (%p250) target = $region48
        $region47: #{tpu_custom_call.1} parent=35 // pred_region
          %254 = dma.done [#allocation10], 1024
        $region48: #{tpu_custom_call.1} parent=35 // pred_fallthru
          _
        %s255 = sand.u32 %s53, 1
        %s256 = scalar_lea.sflag [#allocation7], %s255
        %s257 = sand.u32 %s53, 1
        %s258 = smul.addr %s257, 32
        %s259 = scalar_lea.vmem [#allocation6], %s258
        %p260 = pneg %p66
        %p261 = pneg %p63
        %p262 = pneg %p87
        %p263 = pneg %p84
        %p264 = pneg %p108
        %p265 = pneg %p105
        %p266 = pneg %p129
        %p267 = pneg %p126
        %p268 = pneg %p155
        %p269 = pneg %p152
        %s270 = sand.u32 %s142, 1
        %s271 = scalar_lea.sflag [#allocation8], %s270
        %s272 = sand.u32 %s142, 1
        %s273 = smul.addr %s272, 8
        %s274 = scalar_lea.vmem [#allocation12], %s273
        %s275 = sadd.s32 %s35, %s36
        %s276 = smul.u32 8, %s275
        %p277 = scmp.eq.s32.totalorder %s36, 0
        // Predicated region
        $region49: #{tpu_custom_call.1} parent=35 // pred_check
          %p278 = pneg %p277
        $region50: #{tpu_custom_call.1} parent=35 // pred_check_branch
          %280 = sbr.rel (%p278) target = $region52
        $region51: #{tpu_custom_call.1} parent=35 // pred_region
          %281 = vst [vmem:[#allocation2] sm:$0xff] 0.0
          %282 = vst [vmem:[#allocation3] sm:$0xff] 0.0
        $region52: #{tpu_custom_call.1} parent=35 // pred_fallthru
          _
        %s283 = sadd.s32 %s35, %s36
        %s284 = smul.u32 %s283, 8
        %s285 = smul.u32 %s36, 8
        %v286 = vlaneseq
        %v287 = vshrl.u32 %v286, 7
        %s288 = sld [smem:[#allocation5 + %s284]]
        %s289 = sshra.s32 %s284, 7
        %s290 = sand.u32 %s284, 127
        %s291 = sadd.s32 %s289, 1
        %s292 = smul.u32 %s291, 128
        %s293 = sshra.s32 %s284, 7
        %s294 = sand.u32 %s284, 127
        %s295 = sadd.s32 %s292, %s294
        %s296 = sld [smem:[#allocation5 + %s295]]
        %v297 = vld [vmem:[%s239] sm:$0xf]
        %v298 = vunpack.c.l.bf16 %v297
        %v299 = vstv %s288
        %vm300 = vcmp.ge.s32.totalorder %v287, %v299
        %v301 = vstv %s296
        %vm302 = vcmp.lt.s32.totalorder %v287, %v301
        %vm303 = vmand %vm300, %vm302
        %p304 = scmp.gt.s32.totalorder %s296, %s288
        %s305 = ssub.s32 %s296, %s288
        %p306 = scmp.gt.s32.totalorder %s305, 1
        %s307 = scalar_select %p306, %s305, 1
        %s308 = scvt.s32.f32 %s307
        %v309 = vsel %vm303, 1, 0
        %vm310 = vcmp.eq.s32.totalorder %v309, 1
        %v311 = vsel %vm310, %v298, 0.0
        %v312 = vrot.slane %v311, 4
        %v313 = vadd.f32 %v311, %v312
        %v314 = vrot.slane %v313, 2
        %v315 = vadd.f32 %v313, %v314
        %v316 = vrot.slane %v315, 1
        %v317 = vadd.f32 %v315, %v316
        %v318 = vstv %s308
        %v319 = vrcp.pop %v318
        %v320 = vmul.f32 %v318, %v319
        %v321 = vsub.f32 1.0, %v320
        %v322 = vmul.f32 %v319, %v321
        %v323 = vadd.f32 %v319, %v322
        %vm324 = vweird.f32 %v318
        %vm325 = vweird.f32 %v319
        %vm326 = vmor %vm324, %vm325
        %v327 = vsel %vm326, %v319, %v323
        %v328 = vand.u32 2147483647, %v318
        %vm329 = vcmp.eq.f32.partialorder %v328, 8.507059e+37
        %v330 = vand.u32 %v318, 2147483648
        %v331 = vor.u32 1.1754944e-38, %v330
        %v332 = vsel %vm329, %v331, %v327
        %v333 = vmul.f32 %v317, %v332
        %s334 = scalar_select %p304, 1, 0
        %v335 = vstv %s334
        %vm336 = vcmp.eq.s32.totalorder %v335, 1
        %v337 = vsel %vm336, %v333, 0.0
        %v338 = vsel %vm310, %v298, -inf
        %v339 = vrot.slane %v338, 4
        %v340 = vmax.f32 %v338, %v339
        %v341 = vrot.slane %v340, 2
        %v342 = vmax.f32 %v340, %v341
        %v343 = vrot.slane %v342, 1
        %v344 = vmax.f32 %v342, %v343
        %v345 = vsel %vm336, %v344, 0.0
        %s346 = scalar_lea.vmem [#allocation2], %s285
        %347 = vst [vmem:[%s346] sm:$0x1] %v337
        %s348 = scalar_lea.vmem [#allocation3], %s285
        %349 = vst [vmem:[%s348] sm:$0x1] %v345
        %s350 = sadd.s32 %s284, 1
        %s351 = sld [smem:[#allocation5 + %s350]]
        %s352 = sshra.s32 %s350, 7
        %s353 = sand.u32 %s350, 127
        %s354 = sadd.s32 %s352, 1
        %s355 = smul.u32 %s354, 128
        %s356 = sshra.s32 %s350, 7
        %s357 = sand.u32 %s350, 127
        %s358 = sadd.s32 %s355, %s357
        %s359 = sld [smem:[#allocation5 + %s358]]
        %s360 = scalar_lea.vmem %s239, 4 [#allocation6]
        %v361 = vld [vmem:[%s360] sm:$0xf]
        %v362 = vunpack.c.l.bf16 %v361
        %v363 = vstv %s351
        %vm364 = vcmp.ge.s32.totalorder %v287, %v363
        %v365 = vstv %s359
        %vm366 = vcmp.lt.s32.totalorder %v287, %v365
        %vm367 = vmand %vm364, %vm366
        %p368 = scmp.gt.s32.totalorder %s359, %s351
        %s369 = ssub.s32 %s359, %s351
        %p370 = scmp.gt.s32.totalorder %s369, 1
        %s371 = scalar_select %p370, %s369, 1
        %s372 = scvt.s32.f32 %s371
        %v373 = vsel %vm367, 1, 0
        %vm374 = vcmp.eq.s32.totalorder %v373, 1
        %v375 = vsel %vm374, %v362, 0.0
        %v376 = vrot.slane %v375, 4
        %v377 = vadd.f32 %v375, %v376
        %v378 = vrot.slane %v377, 2
        %v379 = vadd.f32 %v377, %v378
        %v380 = vrot.slane %v379, 1
        %v381 = vadd.f32 %v379, %v380
        %v382 = vstv %s372
        %v383 = vrcp.pop %v382
        %v384 = vmul.f32 %v382, %v383
        %v385 = vsub.f32 1.0, %v384
        %v386 = vmul.f32 %v383, %v385
        %v387 = vadd.f32 %v383, %v386
        %vm388 = vweird.f32 %v382
        %vm389 = vweird.f32 %v383
        %vm390 = vmor %vm388, %vm389
        %v391 = vsel %vm390, %v383, %v387
        %v392 = vand.u32 2147483647, %v382
        %vm393 = vcmp.eq.f32.partialorder %v392, 8.507059e+37
        %v394 = vand.u32 %v382, 2147483648
        %v395 = vor.u32 1.1754944e-38, %v394
        %v396 = vsel %vm393, %v395, %v391
        %v397 = vmul.f32 %v381, %v396
        %s398 = scalar_select %p368, 1, 0
        %v399 = vstv %s398
        %vm400 = vcmp.eq.s32.totalorder %v399, 1
        %v401 = vsel %vm400, %v397, 0.0
        %v402 = vsel %vm374, %v362, -inf
        %v403 = vrot.slane %v402, 4
        %v404 = vmax.f32 %v402, %v403
        %v405 = vrot.slane %v404, 2
        %v406 = vmax.f32 %v404, %v405
        %v407 = vrot.slane %v406, 1
        %v408 = vmax.f32 %v406, %v407
        %v409 = vsel %vm400, %v408, 0.0
        %s410 = sadd.s32 %s285, 1
        %s411 = scalar_lea.vmem [#allocation2], %s410
        %412 = vst [vmem:[%s411] sm:$0x1] %v401
        %s413 = scalar_lea.vmem [#allocation3], %s410
        %414 = vst [vmem:[%s413] sm:$0x1] %v409
        %s415 = sadd.s32 %s284, 2
        %s416 = sld [smem:[#allocation5 + %s415]]
        %s417 = sshra.s32 %s415, 7
        %s418 = sand.u32 %s415, 127
        %s419 = sadd.s32 %s417, 1
        %s420 = smul.u32 %s419, 128
        %s421 = sshra.s32 %s415, 7
        %s422 = sand.u32 %s415, 127
        %s423 = sadd.s32 %s420, %s422
        %s424 = sld [smem:[#allocation5 + %s423]]
        %s425 = scalar_lea.vmem %s239, 8 [#allocation6]
        %v426 = vld [vmem:[%s425] sm:$0xf]
        %v427 = vunpack.c.l.bf16 %v426
        %v428 = vstv %s416
        %vm429 = vcmp.ge.s32.totalorder %v287, %v428
        %v430 = vstv %s424
        %vm431 = vcmp.lt.s32.totalorder %v287, %v430
        %vm432 = vmand %vm429, %vm431
        %p433 = scmp.gt.s32.totalorder %s424, %s416
        %s434 = ssub.s32 %s424, %s416
        %p435 = scmp.gt.s32.totalorder %s434, 1
        %s436 = scalar_select %p435, %s434, 1
        %s437 = scvt.s32.f32 %s436
        %v438 = vsel %vm432, 1, 0
        %vm439 = vcmp.eq.s32.totalorder %v438, 1
        %v440 = vsel %vm439, %v427, 0.0
        %v441 = vrot.slane %v440, 4
        %v442 = vadd.f32 %v440, %v441
        %v443 = vrot.slane %v442, 2
        %v444 = vadd.f32 %v442, %v443
        %v445 = vrot.slane %v444, 1
        %v446 = vadd.f32 %v444, %v445
        %v447 = vstv %s437
        %v448 = vrcp.pop %v447
        %v449 = vmul.f32 %v447, %v448
        %v450 = vsub.f32 1.0, %v449
        %v451 = vmul.f32 %v448, %v450
        %v452 = vadd.f32 %v448, %v451
        %vm453 = vweird.f32 %v447
        %vm454 = vweird.f32 %v448
        %vm455 = vmor %vm453, %vm454
        %v456 = vsel %vm455, %v448, %v452
        %v457 = vand.u32 2147483647, %v447
        %vm458 = vcmp.eq.f32.partialorder %v457, 8.507059e+37
        %v459 = vand.u32 %v447, 2147483648
        %v460 = vor.u32 1.1754944e-38, %v459
        %v461 = vsel %vm458, %v460, %v456
        %v462 = vmul.f32 %v446, %v461
        %s463 = scalar_select %p433, 1, 0
        %v464 = vstv %s463
        %vm465 = vcmp.eq.s32.totalorder %v464, 1
        %v466 = vsel %vm465, %v462, 0.0
        %v467 = vsel %vm439, %v427, -inf
        %v468 = vrot.slane %v467, 4
        %v469 = vmax.f32 %v467, %v468
        %v470 = vrot.slane %v469, 2
        %v471 = vmax.f32 %v469, %v470
        %v472 = vrot.slane %v471, 1
        %v473 = vmax.f32 %v471, %v472
        %v474 = vsel %vm465, %v473, 0.0
        %s475 = sadd.s32 %s285, 2
        %s476 = scalar_lea.vmem [#allocation2], %s475
        %477 = vst [vmem:[%s476] sm:$0x1] %v466
        %s478 = scalar_lea.vmem [#allocation3], %s475
        %479 = vst [vmem:[%s478] sm:$0x1] %v474
        %s480 = sadd.s32 %s284, 3
        %s481 = sld [smem:[#allocation5 + %s480]]
        %s482 = sshra.s32 %s480, 7
        %s483 = sand.u32 %s480, 127
        %s484 = sadd.s32 %s482, 1
        %s485 = smul.u32 %s484, 128
        %s486 = sshra.s32 %s480, 7
        %s487 = sand.u32 %s480, 127
        %s488 = sadd.s32 %s485, %s487
        %s489 = sld [smem:[#allocation5 + %s488]]
        %s490 = scalar_lea.vmem %s239, 12 [#allocation6]
        %v491 = vld [vmem:[%s490] sm:$0xf]
        %v492 = vunpack.c.l.bf16 %v491
        %v493 = vstv %s481
        %vm494 = vcmp.ge.s32.totalorder %v287, %v493
        %v495 = vstv %s489
        %vm496 = vcmp.lt.s32.totalorder %v287, %v495
        %vm497 = vmand %vm494, %vm496
        %p498 = scmp.gt.s32.totalorder %s489, %s481
        %s499 = ssub.s32 %s489, %s481
        %p500 = scmp.gt.s32.totalorder %s499, 1
        %s501 = scalar_select %p500, %s499, 1
        %s502 = scvt.s32.f32 %s501
        %v503 = vsel %vm497, 1, 0
        %vm504 = vcmp.eq.s32.totalorder %v503, 1
        %v505 = vsel %vm504, %v492, 0.0
        %v506 = vrot.slane %v505, 4
        %v507 = vadd.f32 %v505, %v506
        %v508 = vrot.slane %v507, 2
        %v509 = vadd.f32 %v507, %v508
        %v510 = vrot.slane %v509, 1
        %v511 = vadd.f32 %v509, %v510
        %v512 = vstv %s502
        %v513 = vrcp.pop %v512
        %v514 = vmul.f32 %v512, %v513
        %v515 = vsub.f32 1.0, %v514
        %v516 = vmul.f32 %v513, %v515
        %v517 = vadd.f32 %v513, %v516
        %vm518 = vweird.f32 %v512
        %vm519 = vweird.f32 %v513
        %vm520 = vmor %vm518, %vm519
        %v521 = vsel %vm520, %v513, %v517
        %v522 = vand.u32 2147483647, %v512
        %vm523 = vcmp.eq.f32.partialorder %v522, 8.507059e+37
        %v524 = vand.u32 %v512, 2147483648
        %v525 = vor.u32 1.1754944e-38, %v524
        %v526 = vsel %vm523, %v525, %v521
        %v527 = vmul.f32 %v511, %v526
        %s528 = scalar_select %p498, 1, 0
        %v529 = vstv %s528
        %vm530 = vcmp.eq.s32.totalorder %v529, 1
        %v531 = vsel %vm530, %v527, 0.0
        %v532 = vsel %vm504, %v492, -inf
        %v533 = vrot.slane %v532, 4
        %v534 = vmax.f32 %v532, %v533
        %v535 = vrot.slane %v534, 2
        %v536 = vmax.f32 %v534, %v535
        %v537 = vrot.slane %v536, 1
        %v538 = vmax.f32 %v536, %v537
        %v539 = vsel %vm530, %v538, 0.0
        %s540 = sadd.s32 %s285, 3
        %s541 = scalar_lea.vmem [#allocation2], %s540
        %542 = vst [vmem:[%s541] sm:$0x1] %v531
        %s543 = scalar_lea.vmem [#allocation3], %s540
        %544 = vst [vmem:[%s543] sm:$0x1] %v539
        %s545 = sadd.s32 %s284, 4
        %s546 = sld [smem:[#allocation5 + %s545]]
        %s547 = sshra.s32 %s545, 7
        %s548 = sand.u32 %s545, 127
        %s549 = sadd.s32 %s547, 1
        %s550 = smul.u32 %s549, 128
        %s551 = sshra.s32 %s545, 7
        %s552 = sand.u32 %s545, 127
        %s553 = sadd.s32 %s550, %s552
        %s554 = sld [smem:[#allocation5 + %s553]]
        %s555 = scalar_lea.vmem %s239, 16 [#allocation6]
        %v556 = vld [vmem:[%s555] sm:$0xf]
        %v557 = vunpack.c.l.bf16 %v556
        %v558 = vstv %s546
        %vm559 = vcmp.ge.s32.totalorder %v287, %v558
        %v560 = vstv %s554
        %vm561 = vcmp.lt.s32.totalorder %v287, %v560
        %vm562 = vmand %vm559, %vm561
        %p563 = scmp.gt.s32.totalorder %s554, %s546
        %s564 = ssub.s32 %s554, %s546
        %p565 = scmp.gt.s32.totalorder %s564, 1
        %s566 = scalar_select %p565, %s564, 1
        %s567 = scvt.s32.f32 %s566
        %v568 = vsel %vm562, 1, 0
        %vm569 = vcmp.eq.s32.totalorder %v568, 1
        %v570 = vsel %vm569, %v557, 0.0
        %v571 = vrot.slane %v570, 4
        %v572 = vadd.f32 %v570, %v571
        %v573 = vrot.slane %v572, 2
        %v574 = vadd.f32 %v572, %v573
        %v575 = vrot.slane %v574, 1
        %v576 = vadd.f32 %v574, %v575
        %v577 = vstv %s567
        %v578 = vrcp.pop %v577
        %v579 = vmul.f32 %v577, %v578
        %v580 = vsub.f32 1.0, %v579
        %v581 = vmul.f32 %v578, %v580
        %v582 = vadd.f32 %v578, %v581
        %vm583 = vweird.f32 %v577
        %vm584 = vweird.f32 %v578
        %vm585 = vmor %vm583, %vm584
        %v586 = vsel %vm585, %v578, %v582
        %v587 = vand.u32 2147483647, %v577
        %vm588 = vcmp.eq.f32.partialorder %v587, 8.507059e+37
        %v589 = vand.u32 %v577, 2147483648
        %v590 = vor.u32 1.1754944e-38, %v589
        %v591 = vsel %vm588, %v590, %v586
        %v592 = vmul.f32 %v576, %v591
        %s593 = scalar_select %p563, 1, 0
        %v594 = vstv %s593
        %vm595 = vcmp.eq.s32.totalorder %v594, 1
        %v596 = vsel %vm595, %v592, 0.0
        %v597 = vsel %vm569, %v557, -inf
        %v598 = vrot.slane %v597, 4
        %v599 = vmax.f32 %v597, %v598
        %v600 = vrot.slane %v599, 2
        %v601 = vmax.f32 %v599, %v600
        %v602 = vrot.slane %v601, 1
        %v603 = vmax.f32 %v601, %v602
        %v604 = vsel %vm595, %v603, 0.0
        %s605 = sadd.s32 %s285, 4
        %s606 = scalar_lea.vmem [#allocation2], %s605
        %607 = vst [vmem:[%s606] sm:$0x1] %v596
        %s608 = scalar_lea.vmem [#allocation3], %s605
        %609 = vst [vmem:[%s608] sm:$0x1] %v604
        %s610 = sadd.s32 %s284, 5
        %s611 = sld [smem:[#allocation5 + %s610]]
        %s612 = sshra.s32 %s610, 7
        %s613 = sand.u32 %s610, 127
        %s614 = sadd.s32 %s612, 1
        %s615 = smul.u32 %s614, 128
        %s616 = sshra.s32 %s610, 7
        %s617 = sand.u32 %s610, 127
        %s618 = sadd.s32 %s615, %s617
        %s619 = sld [smem:[#allocation5 + %s618]]
        %s620 = scalar_lea.vmem %s239, 20 [#allocation6]
        %v621 = vld [vmem:[%s620] sm:$0xf]
        %v622 = vunpack.c.l.bf16 %v621
        %v623 = vstv %s611
        %vm624 = vcmp.ge.s32.totalorder %v287, %v623
        %v625 = vstv %s619
        %vm626 = vcmp.lt.s32.totalorder %v287, %v625
        %vm627 = vmand %vm624, %vm626
        %p628 = scmp.gt.s32.totalorder %s619, %s611
        %s629 = ssub.s32 %s619, %s611
        %p630 = scmp.gt.s32.totalorder %s629, 1
        %s631 = scalar_select %p630, %s629, 1
        %s632 = scvt.s32.f32 %s631
        %v633 = vsel %vm627, 1, 0
        %vm634 = vcmp.eq.s32.totalorder %v633, 1
        %v635 = vsel %vm634, %v622, 0.0
        %v636 = vrot.slane %v635, 4
        %v637 = vadd.f32 %v635, %v636
        %v638 = vrot.slane %v637, 2
        %v639 = vadd.f32 %v637, %v638
        %v640 = vrot.slane %v639, 1
        %v641 = vadd.f32 %v639, %v640
        %v642 = vstv %s632
        %v643 = vrcp.pop %v642
        %v644 = vmul.f32 %v642, %v643
        %v645 = vsub.f32 1.0, %v644
        %v646 = vmul.f32 %v643, %v645
        %v647 = vadd.f32 %v643, %v646
        %vm648 = vweird.f32 %v642
        %vm649 = vweird.f32 %v643
        %vm650 = vmor %vm648, %vm649
        %v651 = vsel %vm650, %v643, %v647
        %v652 = vand.u32 2147483647, %v642
        %vm653 = vcmp.eq.f32.partialorder %v652, 8.507059e+37
        %v654 = vand.u32 %v642, 2147483648
        %v655 = vor.u32 1.1754944e-38, %v654
        %v656 = vsel %vm653, %v655, %v651
        %v657 = vmul.f32 %v641, %v656
        %s658 = scalar_select %p628, 1, 0
        %v659 = vstv %s658
        %vm660 = vcmp.eq.s32.totalorder %v659, 1
        %v661 = vsel %vm660, %v657, 0.0
        %v662 = vsel %vm634, %v622, -inf
        %v663 = vrot.slane %v662, 4
        %v664 = vmax.f32 %v662, %v663
        %v665 = vrot.slane %v664, 2
        %v666 = vmax.f32 %v664, %v665
        %v667 = vrot.slane %v666, 1
        %v668 = vmax.f32 %v666, %v667
        %v669 = vsel %vm660, %v668, 0.0
        %s670 = sadd.s32 %s285, 5
        %s671 = scalar_lea.vmem [#allocation2], %s670
        %672 = vst [vmem:[%s671] sm:$0x1] %v661
        %s673 = scalar_lea.vmem [#allocation3], %s670
        %674 = vst [vmem:[%s673] sm:$0x1] %v669
        %s675 = sadd.s32 %s284, 6
        %s676 = sld [smem:[#allocation5 + %s675]]
        %s677 = sshra.s32 %s675, 7
        %s678 = sand.u32 %s675, 127
        %s679 = sadd.s32 %s677, 1
        %s680 = smul.u32 %s679, 128
        %s681 = sshra.s32 %s675, 7
        %s682 = sand.u32 %s675, 127
        %s683 = sadd.s32 %s680, %s682
        %s684 = sld [smem:[#allocation5 + %s683]]
        %s685 = scalar_lea.vmem %s239, 24 [#allocation6]
        %v686 = vld [vmem:[%s685] sm:$0xf]
        %v687 = vunpack.c.l.bf16 %v686
        %v688 = vstv %s676
        %vm689 = vcmp.ge.s32.totalorder %v287, %v688
        %v690 = vstv %s684
        %vm691 = vcmp.lt.s32.totalorder %v287, %v690
        %vm692 = vmand %vm689, %vm691
        %p693 = scmp.gt.s32.totalorder %s684, %s676
        %s694 = ssub.s32 %s684, %s676
        %p695 = scmp.gt.s32.totalorder %s694, 1
        %s696 = scalar_select %p695, %s694, 1
        %s697 = scvt.s32.f32 %s696
        %v698 = vsel %vm692, 1, 0
        %vm699 = vcmp.eq.s32.totalorder %v698, 1
        %v700 = vsel %vm699, %v687, 0.0
        %v701 = vrot.slane %v700, 4
        %v702 = vadd.f32 %v700, %v701
        %v703 = vrot.slane %v702, 2
        %v704 = vadd.f32 %v702, %v703
        %v705 = vrot.slane %v704, 1
        %v706 = vadd.f32 %v704, %v705
        %v707 = vstv %s697
        %v708 = vrcp.pop %v707
        %v709 = vmul.f32 %v707, %v708
        %v710 = vsub.f32 1.0, %v709
        %v711 = vmul.f32 %v708, %v710
        %v712 = vadd.f32 %v708, %v711
        %vm713 = vweird.f32 %v707
        %vm714 = vweird.f32 %v708
        %vm715 = vmor %vm713, %vm714
        %v716 = vsel %vm715, %v708, %v712
        %v717 = vand.u32 2147483647, %v707
        %vm718 = vcmp.eq.f32.partialorder %v717, 8.507059e+37
        %v719 = vand.u32 %v707, 2147483648
        %v720 = vor.u32 1.1754944e-38, %v719
        %v721 = vsel %vm718, %v720, %v716
        %v722 = vmul.f32 %v706, %v721
        %s723 = scalar_select %p693, 1, 0
        %v724 = vstv %s723
        %vm725 = vcmp.eq.s32.totalorder %v724, 1
        %v726 = vsel %vm725, %v722, 0.0
        %v727 = vsel %vm699, %v687, -inf
        %v728 = vrot.slane %v727, 4
        %v729 = vmax.f32 %v727, %v728
        %v730 = vrot.slane %v729, 2
        %v731 = vmax.f32 %v729, %v730
        %v732 = vrot.slane %v731, 1
        %v733 = vmax.f32 %v731, %v732
        %v734 = vsel %vm725, %v733, 0.0
        %s735 = sadd.s32 %s285, 6
        %s736 = scalar_lea.vmem [#allocation2], %s735
        %737 = vst [vmem:[%s736] sm:$0x1] %v726
        %s738 = scalar_lea.vmem [#allocation3], %s735
        %739 = vst [vmem:[%s738] sm:$0x1] %v734
        %s740 = sadd.s32 %s284, 7
        %s741 = sld [smem:[#allocation5 + %s740]]
        %s742 = sshra.s32 %s740, 7
        %s743 = sand.u32 %s740, 127
        %s744 = sadd.s32 %s742, 1
        %s745 = smul.u32 %s744, 128
        %s746 = sshra.s32 %s740, 7
        %s747 = sand.u32 %s740, 127
        %s748 = sadd.s32 %s745, %s747
        %s749 = sld [smem:[#allocation5 + %s748]]
        %s750 = scalar_lea.vmem %s239, 28 [#allocation6]
        %v751 = vld [vmem:[%s750] sm:$0xf]
        %v752 = vunpack.c.l.bf16 %v751
        %v753 = vstv %s741
        %vm754 = vcmp.ge.s32.totalorder %v287, %v753
        %v755 = vstv %s749
        %vm756 = vcmp.lt.s32.totalorder %v287, %v755
        %vm757 = vmand %vm754, %vm756
        %p758 = scmp.gt.s32.totalorder %s749, %s741
        %s759 = ssub.s32 %s749, %s741
        %p760 = scmp.gt.s32.totalorder %s759, 1
        %s761 = scalar_select %p760, %s759, 1
        %s762 = scvt.s32.f32 %s761
        %v763 = vsel %vm757, 1, 0
        %vm764 = vcmp.eq.s32.totalorder %v763, 1
        %v765 = vsel %vm764, %v752, 0.0
        %v766 = vrot.slane %v765, 4
        %v767 = vadd.f32 %v765, %v766
        %v768 = vrot.slane %v767, 2
        %v769 = vadd.f32 %v767, %v768
        %v770 = vrot.slane %v769, 1
        %v771 = vadd.f32 %v769, %v770
        %v772 = vstv %s762
        %v773 = vrcp.pop %v772
        %v774 = vmul.f32 %v772, %v773
        %v775 = vsub.f32 1.0, %v774
        %v776 = vmul.f32 %v773, %v775
        %v777 = vadd.f32 %v773, %v776
        %vm778 = vweird.f32 %v772
        %vm779 = vweird.f32 %v773
        %vm780 = vmor %vm778, %vm779
        %v781 = vsel %vm780, %v773, %v777
        %v782 = vand.u32 2147483647, %v772
        %vm783 = vcmp.eq.f32.partialorder %v782, 8.507059e+37
        %v784 = vand.u32 %v772, 2147483648
        %v785 = vor.u32 1.1754944e-38, %v784
        %v786 = vsel %vm783, %v785, %v781
        %v787 = vmul.f32 %v771, %v786
        %s788 = scalar_select %p758, 1, 0
        %v789 = vstv %s788
        %vm790 = vcmp.eq.s32.totalorder %v789, 1
        %v791 = vsel %vm790, %v787, 0.0
        %v792 = vsel %vm764, %v752, -inf
        %v793 = vrot.slane %v792, 4
        %v794 = vmax.f32 %v792, %v793
        %v795 = vrot.slane %v794, 2
        %v796 = vmax.f32 %v794, %v795
        %v797 = vrot.slane %v796, 1
        %v798 = vmax.f32 %v796, %v797
        %v799 = vsel %vm790, %v798, 0.0
        %s800 = sadd.s32 %s285, 7
        %s801 = scalar_lea.vmem [#allocation2], %s800
        %802 = vst [vmem:[%s801] sm:$0x1] %v791
        %s803 = scalar_lea.vmem [#allocation3], %s800
        %804 = vst [vmem:[%s803] sm:$0x1] %v799
        // Predicated region
        $region53: #{tpu_custom_call.1} parent=35 // pred_check
          %p805 = pneg %p277
        $region54: #{tpu_custom_call.1} parent=35 // pred_check_branch
          %807 = sbr.rel (%p805) target = $region56
        $region55: #{tpu_custom_call.1} parent=35 // pred_region
          %v808 = vld [vmem:[#allocation9] sm:$0xf]
          %v809 = vld [vmem:[#allocation9 + $0x4] sm:$0xf]
          %v810 = vld [vmem:[#allocation9 + $0x8] sm:$0xf]
          %v811 = vld [vmem:[#allocation9 + $0xc] sm:$0xf]
          %v812 = vld [vmem:[#allocation9 + $0x10] sm:$0xf]
          %v813 = vld [vmem:[#allocation9 + $0x14] sm:$0xf]
          %v814 = vld [vmem:[#allocation9 + $0x18] sm:$0xf]
          %v815 = vld [vmem:[#allocation9 + $0x1c] sm:$0xf]
          %v816 = vld [vmem:[#allocation9 + $0x20] sm:$0xf]
          %v817 = vld [vmem:[#allocation9 + $0x24] sm:$0xf]
          %v818 = vld [vmem:[#allocation9 + $0x28] sm:$0xf]
          %v819 = vld [vmem:[#allocation9 + $0x2c] sm:$0xf]
          %v820 = vld [vmem:[#allocation9 + $0x30] sm:$0xf]
          %v821 = vld [vmem:[#allocation9 + $0x34] sm:$0xf]
          %v822 = vld [vmem:[#allocation9 + $0x38] sm:$0xf]
          %v823 = vld [vmem:[#allocation9 + $0x3c] sm:$0xf]
          %v824 = vunpack.c.l.bf16 %v808
          %v825 = vunpack.c.l.bf16 %v809
          %v826 = vunpack.c.l.bf16 %v810
          %v827 = vunpack.c.l.bf16 %v811
          %v828 = vunpack.c.l.bf16 %v812
          %v829 = vunpack.c.l.bf16 %v813
          %v830 = vunpack.c.l.bf16 %v814
          %v831 = vunpack.c.l.bf16 %v815
          %v832 = vunpack.c.l.bf16 %v816
          %v833 = vunpack.c.l.bf16 %v817
          %v834 = vunpack.c.l.bf16 %v818
          %v835 = vunpack.c.l.bf16 %v819
          %v836 = vunpack.c.l.bf16 %v820
          %v837 = vunpack.c.l.bf16 %v821
          %v838 = vunpack.c.l.bf16 %v822
          %v839 = vunpack.c.l.bf16 %v823
          %v840 = vld [vmem:[#allocation11] sm:$0xf]
          %v841 = vld [vmem:[#allocation11 + $0x4] sm:$0xf]
          %v842 = vld [vmem:[#allocation11 + $0x8] sm:$0xf]
          %v843 = vld [vmem:[#allocation11 + $0xc] sm:$0xf]
          %v844 = vld [vmem:[#allocation11 + $0x10] sm:$0xf]
          %v845 = vld [vmem:[#allocation11 + $0x14] sm:$0xf]
          %v846 = vld [vmem:[#allocation11 + $0x18] sm:$0xf]
          %v847 = vld [vmem:[#allocation11 + $0x1c] sm:$0xf]
          %v848 = vld [vmem:[#allocation11 + $0x20] sm:$0xf]
          %v849 = vld [vmem:[#allocation11 + $0x24] sm:$0xf]
          %v850 = vld [vmem:[#allocation11 + $0x28] sm:$0xf]
          %v851 = vld [vmem:[#allocation11 + $0x2c] sm:$0xf]
          %v852 = vld [vmem:[#allocation11 + $0x30] sm:$0xf]
          %v853 = vld [vmem:[#allocation11 + $0x34] sm:$0xf]
          %v854 = vld [vmem:[#allocation11 + $0x38] sm:$0xf]
          %v855 = vld [vmem:[#allocation11 + $0x3c] sm:$0xf]
          %v856 = vunpack.c.l.bf16 %v840
          %v857 = vunpack.c.l.bf16 %v841
          %v858 = vunpack.c.l.bf16 %v842
          %v859 = vunpack.c.l.bf16 %v843
          %v860 = vunpack.c.l.bf16 %v844
          %v861 = vunpack.c.l.bf16 %v845
          %v862 = vunpack.c.l.bf16 %v846
          %v863 = vunpack.c.l.bf16 %v847
          %v864 = vunpack.c.l.bf16 %v848
          %v865 = vunpack.c.l.bf16 %v849
          %v866 = vunpack.c.l.bf16 %v850
          %v867 = vunpack.c.l.bf16 %v851
          %v868 = vunpack.c.l.bf16 %v852
          %v869 = vunpack.c.l.bf16 %v853
          %v870 = vunpack.c.l.bf16 %v854
          %v871 = vunpack.c.l.bf16 %v855
          %v872 = vld [vmem:[#allocation2] sm:$0xff]
          %v873 = vld [vmem:[#allocation3] sm:$0xff]
          %874 = vmatpush.msra.mxu0 %v871
          %875 = vmatpush.msra.mxu0 %v870
          %876 = vmatpush.msra.mxu0 %v869
          %877 = vmatpush.msra.mxu0 %v868
          %878 = vmatpush.msra.mxu0 %v867
          %879 = vmatpush.msra.mxu0 %v866
          %880 = vmatpush.msra.mxu0 %v865
          %881 = vmatpush.msra.mxu0 %v864
          %882 = vmatpush.msra.mxu0 %v863
          %883 = vmatpush.msra.mxu0 %v862
          %884 = vmatpush.msra.mxu0 %v861
          %885 = vmatpush.msra.mxu0 %v860
          %886 = vmatpush.msra.mxu0 %v859
          %887 = vmatpush.msra.mxu0 %v858
          %888 = vmatpush.msra.mxu0 %v857
          %889 = vmatpush.msra.mxu0 %v856
          %890 = vmatmul.f32.gmra.mxu0 %v873
          %v891 = vpop.f32.mrf.mxu0
          %v892 = vadd.f32 0.0, %v891
          %893 = vdwg.mxu0
          %894 = vmatpush.msra.mxu0 %v839
          %895 = vmatpush.msra.mxu0 %v838
          %896 = vmatpush.msra.mxu0 %v837
          %897 = vmatpush.msra.mxu0 %v836
          %898 = vmatpush.msra.mxu0 %v835
          %899 = vmatpush.msra.mxu0 %v834
          %900 = vmatpush.msra.mxu0 %v833
          %901 = vmatpush.msra.mxu0 %v832
          %902 = vmatpush.msra.mxu0 %v831
          %903 = vmatpush.msra.mxu0 %v830
          %904 = vmatpush.msra.mxu0 %v829
          %905 = vmatpush.msra.mxu0 %v828
          %906 = vmatpush.msra.mxu0 %v827
          %907 = vmatpush.msra.mxu0 %v826
          %908 = vmatpush.msra.mxu0 %v825
          %909 = vmatpush.msra.mxu0 %v824
          %910 = vmatmul.f32.gmra.mxu0 %v872
          %v911 = vpop.f32.mrf.mxu0
          %v912 = vadd.f32 %v892, %v911
          %913 = vdwg.mxu0
          %v914 = vld [vmem:[%s4] sm:$0x1]
          %v916 = vperm.slane %v914, 0
          %v918 = vadd.f32 %v912, %v916
          %919 = vst [vmem:[%s274] sm:$0xff] %v918
        $region56: #{tpu_custom_call.1} parent=35 // pred_fallthru
          _
        %s920 = sand.u32 %s142, 1
        %s921 = scalar_lea.sflag [#allocation8], %s920
        %s922 = sand.u32 %s142, 1
        %s923 = smul.addr %s922, 8
        %s924 = scalar_lea.vmem [#allocation12], %s923
        // Predicated region
        $region57: #{tpu_custom_call.1} parent=35 // pred_check
          %p925 = pneg %p152
        $region58: #{tpu_custom_call.1} parent=35 // pred_check_branch
          %927 = sbr.rel (%p925) target = $region60
        $region59: #{tpu_custom_call.1} parent=35 // pred_region
          %929 = vsyncadd %s921, 0
          %s930 = smul.addr %s35, 8
          %s931 = scalar_lea.hbm %s5, %s930
          %s933 = sshll.u32 %s924, 4
          %s934 = int_to_ptr.vmem [resolvable:$true] %s933
          %s935 = sshll.u32 %s931, 4
          %s936 = int_to_ptr.hbm [resolvable:$true] %s935
          %938 = dma.vmem_to_hbm [thread:$0]  %s934, 128, %s936, %s921
        $region60: #{tpu_custom_call.1} parent=35 // pred_fallthru
          _
      $region36: #{tpu_custom_call.1} parent=5 // pred_fallthru
        _
      %p939 = scmp.le.s32.totalorder 2, %s26
      // Predicated region
      $region61: #{tpu_custom_call.1} parent=5 // pred_check
        %p940 = pneg %p939
      $region62: #{tpu_custom_call.1} parent=5 // pred_check_branch
        %942 = sbr.rel (%p940) target = $region64
      $region63: #{tpu_custom_call.1} parent=5 // pred_region
        %s943 = ssub.s32 %s26, 2
        // Predicated region
        $region65: #{tpu_custom_call.1} parent=63 // pred_check
          %p944 = pneg %p158
        $region66: #{tpu_custom_call.1} parent=63 // pred_check_branch
          %946 = sbr.rel (%p944) target = $region68
        $region67: #{tpu_custom_call.1} parent=63 // pred_region
          %s947 = sand.u32 %s143, 1
          %s948 = scalar_lea.sflag [#allocation8], %s947
          %s949 = sand.u32 %s143, 1
          %s950 = smul.addr %s949, 8
          %s951 = scalar_lea.vmem [#allocation12], %s950
          %953 = dma.done %s948, 128
        $region68: #{tpu_custom_call.1} parent=63 // pred_fallthru
          _
      $region64: #{tpu_custom_call.1} parent=5 // pred_fallthru
        _
    $region6: #{tpu_custom_call.1} parent=1 // loop_footer
      %s30 = sadd.s32 1, %s26
    $region7: #{tpu_custom_call.1} parent=1 // loop_footer_branch
      %25 = sbr.rel target = $region3
    $region8: #{tpu_custom_call.1} parent=1 // loop_exit
      _
    %954 = vsyncpa [#allocation7], 1
    %s955 = scalar_lea.sflag [#allocation7], 1
    %956 = vsyncpa %s955, 1
    %957 = vsyncpa [#allocation10], 1
    %958 = vsyncpa [#allocation8], 1
    %s959 = scalar_lea.sflag [#allocation8], 1
    %960 = vsyncpa %s959, 1

// kernel: tpu_custom_call.1
$region0: #{tpu_custom_call.1}
  #allocation0 [shape = 'u32[]', space=smem, size = 0x4, offset = 0x4, fixed_abs, tag = 'smem constant byte address 0x4 - core index']
  #allocation1 [shape = 'u32[72,128]{1,0:T(1,128)}', space=vmem, size = 0x9000, scoped, tag = 'internal scratch']
  #allocation2 [shape = 'f32[8,128]{1,0:T(8,128)}', space=vmem, size = 0x1000, scoped, tag = 'scratch operand']
  #allocation3 [shape = 'f32[8,128]{1,0:T(8,128)}', space=vmem, size = 0x1000, scoped, tag = 'scratch operand']
  #allocation4 [shape = 's32[1]{0}', space=sflag, size = 0x4, scoped, tag = 'scoped memory for tpu_custom_call.1']
  #allocation5 [shape = 'u8[1024]{0}', space=smem, size = 0x400, scoped, tag = 'prefetched SMEM operand 0']
  %s0 = inlined_call_operand.hbm [shape: s32[2,16], index: 0, kind: input, shape index: {}]
  %s1 = inlined_call_operand.hbm [shape: bf16[16,8,128], index: 1, kind: input, shape index: {}]
  %s2 = inlined_call_operand.hbm [shape: bf16[128,128], index: 2, kind: input, shape index: {}]
  %s3 = inlined_call_operand.hbm [shape: bf16[128,128], index: 3, kind: input, shape index: {}]
  %s4 = inlined_call_operand.vmem [shape: f32[1,128], index: 4, kind: input, shape index: {}]
  %s5 = inlined_call_operand.hbm [shape: f32[16,128], index: 5, kind: output, shape index: {}]
  %s6 = sld [smem:[#allocation0]]
  $region69: #{tpu_custom_call.1} parent=0
    _
  %s8 = ssub.s32 1, %s6
  %s9 = scalar_select 0, %s8, %s6
  %s11 = sshll.u32 %s0, 4
  %s12 = int_to_ptr.hbm [resolvable:$true] %s11
  %14 = dma.hbm_to_smem %s12, 32, [#allocation5], [#allocation4]
  %16 = dma.done [#allocation4], 32
  %17 = sfence
  $region1: #{tpu_custom_call.1} parent=0
    #allocation6 [shape = 'u8[32768]{0}', space=vmem, size = 0x8000, scoped, tag = 'input window, operand 1']
    #allocation7 [shape = 's32[2]{0}', space=sflag, size = 0x8, scoped, tag = 'scoped memory for tpu_custom_call.1']
    #allocation8 [shape = 's32[2]{0}', space=sflag, size = 0x8, scoped, tag = 'scoped memory for tpu_custom_call.1']
    #allocation9 [shape = 'u8[32768]{0}', space=vmem, size = 0x8000, scoped, tag = 'input window, operand 2, single buffered']
    #allocation10 [shape = 's32[1]{0}', space=sflag, size = 0x4, scoped, tag = 'scoped memory for tpu_custom_call.1']
    #allocation11 [shape = 'u8[32768]{0}', space=vmem, size = 0x8000, scoped, tag = 'input window, operand 3, single buffered']
    #allocation12 [shape = 'u8[8192]{0}', space=vmem, size = 0x2000, scoped, tag = 'output window, operand 0']
    %18 = vsyncpa [#allocation7], 0
    %s19 = scalar_lea.sflag [#allocation7], 1
    %20 = vsyncpa %s19, 0
    %21 = vsyncpa [#allocation10], 0
    %22 = vsyncpa [#allocation8], 0
    %s23 = scalar_lea.sflag [#allocation8], 1
    %24 = vsyncpa %s23, 0
    loop: start=0, step=1, limit=4
    $region2: #{tpu_custom_call.1} parent=1 // loop_pre_header
      _
    $region3: #{tpu_custom_call.1} parent=1 // loop_header
      %s26 = sphi 0, %s30
      %p27 = scmp.ge.s32.totalorder %s26, 4
      %s33 = sphi 0, %s45
      %s34 = sphi 0, %s41
      %s35 = sphi 0, %s33
      %s36 = sphi 0, %s34
      %s37 = sphi 0, %s35
      %s38 = sphi 0, %s36
      %s50 = sphi 0, %s52
      %s53 = sphi 0, %s50
      %s54 = sphi 0, %s53
      %s70 = sphi 0, %s54
      %s74 = sphi 0, %s74
      %s76 = sphi 0, %s74
      %s77 = sphi 0, %s76
      %s91 = sphi 0, %s77
      %s95 = sphi 0, %s95
      %s97 = sphi 0, %s95
      %s98 = sphi 0, %s97
      %s112 = sphi 0, %s98
      %s116 = sphi 0, %s116
      %s118 = sphi 0, %s116
      %s119 = sphi 0, %s118
      %s133 = sphi 0, %s119
      %s139 = sphi 0, %s141
      %s142 = sphi 0, %s139
      %s143 = sphi 0, %s142
      %s159 = sphi 0, %s143
    $region4: #{tpu_custom_call.1} parent=1 // loop_header_branch
      %29 = sbr.rel (%p27) target = $region8
    $region5: #{tpu_custom_call.1} parent=1 // loop_body
      %s31 = ssub.s32 %s26, 1
      %s32 = ssub.s32 %s26, 2
      %s39 = sadd.s32 1, %s34
      %p40 = scmp.ge.s32.totalorder %s39, 1
      %s41 = scalar_select %p40, 0, %s39
      %s42 = sadd.s32 1, %s33
      %s43 = scalar_select %p40, %s42, %s33
      %p44 = scmp.ge.s32.totalorder %s43, 2
      %s45 = scalar_select %p44, 0, %s43
      %s46 = sadd.s32 %s33, %s34
      %s47 = sadd.s32 %s45, %s41
      %s48 = ssub.s32 %s46, %s47
      %p49 = scmp.eq.s32.totalorder %s48, 0
      %s51 = sadd.s32 %s50, 1
      %s52 = scalar_select %p49, %s50, %s51
      %p55 = pneg %p49
      %p56 = scmp.eq.s32.totalorder %s26, 1
      %p57 = por %p55, %p56
      %p58 = scmp.ne.s32.totalorder %s50, %s53
      %p59 = scmp.eq.s32.totalorder %s26, 0
      %p60 = por %p58, %p59
      %p61 = scmp.ne.s32.totalorder %s50, %s53
      %p62 = scmp.eq.s32.totalorder %s31, 1
      %p63 = por %p61, %p62
      %p64 = scmp.ne.s32.totalorder %s53, %s54
      %p65 = scmp.eq.s32.totalorder %s31, 0
      %p66 = por %p64, %p65
      %p67 = scmp.ne.s32.totalorder %s53, %s54
      %p68 = scmp.eq.s32.totalorder %s32, 1
      %p69 = por %p67, %p68
      %p71 = scmp.ne.s32.totalorder %s54, %s70
      %p72 = scmp.eq.s32.totalorder %s32, 0
      %p73 = por %p71, %p72
      %s75 = sadd.s32 %s74, 1
      %p78 = scmp.eq.s32.totalorder %s26, 1
      %p79 = scmp.ne.s32.totalorder %s74, %s76
      %p80 = scmp.eq.s32.totalorder %s26, 0
      %p81 = por %p79, %p80
      %p82 = scmp.ne.s32.totalorder %s74, %s76
      %p83 = scmp.eq.s32.totalorder %s31, 1
      %p84 = por %p82, %p83
      %p85 = scmp.ne.s32.totalorder %s76, %s77
      %p86 = scmp.eq.s32.totalorder %s31, 0
      %p87 = por %p85, %p86
      %p88 = scmp.ne.s32.totalorder %s76, %s77
      %p89 = scmp.eq.s32.totalorder %s32, 1
      %p90 = por %p88, %p89
      %p92 = scmp.ne.s32.totalorder %s77, %s91
      %p93 = scmp.eq.s32.totalorder %s32, 0
      %p94 = por %p92, %p93
      %s96 = sadd.s32 %s95, 1
      %p99 = scmp.eq.s32.totalorder %s26, 1
      %p100 = scmp.ne.s32.totalorder %s95, %s97
      %p101 = scmp.eq.s32.totalorder %s26, 0
      %p102 = por %p100, %p101
      %p103 = scmp.ne.s32.totalorder %s95, %s97
      %p104 = scmp.eq.s32.totalorder %s31, 1
      %p105 = por %p103, %p104
      %p106 = scmp.ne.s32.totalorder %s97, %s98
      %p107 = scmp.eq.s32.totalorder %s31, 0
      %p108 = por %p106, %p107
      %p109 = scmp.ne.s32.totalorder %s97, %s98
      %p110 = scmp.eq.s32.totalorder %s32, 1
      %p111 = por %p109, %p110
      %p113 = scmp.ne.s32.totalorder %s98, %s112
      %p114 = scmp.eq.s32.totalorder %s32, 0
      %p115 = por %p113, %p114
      %s117 = sadd.s32 %s116, 1
      %p120 = scmp.eq.s32.totalorder %s26, 1
      %p121 = scmp.ne.s32.totalorder %s116, %s118
      %p122 = scmp.eq.s32.totalorder %s26, 0
      %p123 = por %p121, %p122
      %p124 = scmp.ne.s32.totalorder %s116, %s118
      %p125 = scmp.eq.s32.totalorder %s31, 1
      %p126 = por %p124, %p125
      %p127 = scmp.ne.s32.totalorder %s118, %s119
      %p128 = scmp.eq.s32.totalorder %s31, 0
      %p129 = por %p127, %p128
      %p130 = scmp.ne.s32.totalorder %s118, %s119
      %p131 = scmp.eq.s32.totalorder %s32, 1
      %p132 = por %p130, %p131
      %p134 = scmp.ne.s32.totalorder %s119, %s133
      %p135 = scmp.eq.s32.totalorder %s32, 0
      %p136 = por %p134, %p135
      %s137 = ssub.s32 %s33, %s45
      %p138 = scmp.eq.s32.totalorder %s137, 0
      %s140 = sadd.s32 %s139, 1
      %s141 = scalar_select %p138, %s139, %s140
      %p144 = pneg %p138
      %p145 = scmp.eq.s32.totalorder %s26, 1
      %p146 = por %p144, %p145
      %p147 = scmp.ne.s32.totalorder %s139, %s142
      %p148 = scmp.eq.s32.totalorder %s26, 0
      %p149 = por %p147, %p148
      %p150 = scmp.ne.s32.totalorder %s139, %s142
      %p151 = scmp.eq.s32.totalorder %s31, 1
      %p152 = por %p150, %p151
      %p153 = scmp.ne.s32.totalorder %s142, %s143
      %p154 = scmp.eq.s32.totalorder %s31, 0
      %p155 = por %p153, %p154
      %p156 = scmp.ne.s32.totalorder %s142, %s143
      %p157 = scmp.eq.s32.totalorder %s32, 1
      %p158 = por %p156, %p157
      %p160 = scmp.ne.s32.totalorder %s143, %s159
      %p161 = scmp.eq.s32.totalorder %s32, 0
      %p162 = por %p160, %p161
      %p163 = scmp.le.s32.totalorder 1, %s26
      %p164 = scmp.lt.s32.totalorder %s26, 3
      %p165 = pnand %p163, %p164
      %p166 = pneg %p165
      // Predicated region
      $region9: #{tpu_custom_call.1} parent=5 // pred_check
        _
      $region10: #{tpu_custom_call.1} parent=5 // pred_check_branch
        %168 = sbr.rel (%p165) target = $region12
      $region11: #{tpu_custom_call.1} parent=5 // pred_region
        %s169 = ssub.s32 %s26, 1
        // Predicated region
        $region13: #{tpu_custom_call.1} parent=11 // pred_check
          %p170 = pneg %p87
        $region14: #{tpu_custom_call.1} parent=11 // pred_check_branch
          %172 = sbr.rel (%p170) target = $region16
        $region15: #{tpu_custom_call.1} parent=11 // pred_region
          %174 = vsyncadd [#allocation10], 0
          %s175 = sshll.u32 %s2, 4
          %s176 = int_to_ptr.hbm [resolvable:$true] %s175
          %s177 = sshll.u32 [#allocation9], 4
          %s178 = int_to_ptr.vmem [resolvable:$true] %s177
          %183 = dma.hbm_to_vmem [thread:$0]  %s176, 1024, %s178, [#allocation10], 64, 64, 4
        $region16: #{tpu_custom_call.1} parent=11 // pred_fallthru
          _
        // Predicated region
        $region17: #{tpu_custom_call.1} parent=11 // pred_check
          %p184 = pneg %p108
        $region18: #{tpu_custom_call.1} parent=11 // pred_check_branch
          %186 = sbr.rel (%p184) target = $region20
        $region19: #{tpu_custom_call.1} parent=11 // pred_region
          %188 = vsyncadd [#allocation10], 0
          %s189 = sshll.u32 %s3, 4
          %s190 = int_to_ptr.hbm [resolvable:$true] %s189
          %s191 = sshll.u32 [#allocation11], 4
          %s192 = int_to_ptr.vmem [resolvable:$true] %s191
          %197 = dma.hbm_to_vmem [thread:$0]  %s190, 1024, %s192, [#allocation10], 64, 64, 4
        $region20: #{tpu_custom_call.1} parent=11 // pred_fallthru
          _
        // Predicated region
        $region21: #{tpu_custom_call.1} parent=11 // pred_check
          %p198 = pneg %p129
        $region22: #{tpu_custom_call.1} parent=11 // pred_check_branch
          %200 = sbr.rel (%p198) target = $region24
        $region23: #{tpu_custom_call.1} parent=11 // pred_region
          _
        $region24: #{tpu_custom_call.1} parent=11 // pred_fallthru
          _
      $region12: #{tpu_custom_call.1} parent=5 // pred_fallthru
        _
      %p201 = scmp.lt.s32.totalorder %s26, 2
      // Predicated region
      $region25: #{tpu_custom_call.1} parent=5 // pred_check
        %p202 = pneg %p201
      $region26: #{tpu_custom_call.1} parent=5 // pred_check_branch
        %204 = sbr.rel (%p202) target = $region28
      $region27: #{tpu_custom_call.1} parent=5 // pred_region
        // Predicated region
        $region29: #{tpu_custom_call.1} parent=27 // pred_check
          %p205 = pneg %p60
        $region30: #{tpu_custom_call.1} parent=27 // pred_check_branch
          %207 = sbr.rel (%p205) target = $region32
        $region31: #{tpu_custom_call.1} parent=27 // pred_region
          %s208 = sand.u32 %s50, 1
          %s209 = scalar_lea.sflag [#allocation7], %s208
          %s210 = sand.u32 %s50, 1
          %s211 = smul.addr %s210, 32
          %s212 = scalar_lea.vmem [#allocation6], %s211
          %s213 = sadd.s32 %s33, %s34
          %s214 = smul.u32 8, %s213
          %216 = vsyncadd %s209, 0
          %s217 = smul.addr %s214, 4
          %s218 = scalar_lea.hbm %s1, %s217
          %s219 = sshll.u32 %s218, 4
          %s220 = int_to_ptr.hbm [resolvable:$true] %s219
          %s221 = sshll.u32 %s212, 4
          %s222 = int_to_ptr.vmem [resolvable:$true] %s221
          %227 = dma.hbm_to_vmem [thread:$0]  %s220, 512, %s222, %s209, 64, 64, 4
        $region32: #{tpu_custom_call.1} parent=27 // pred_fallthru
          _
      $region28: #{tpu_custom_call.1} parent=5 // pred_fallthru
        _
      %p228 = scmp.le.s32.totalorder 1, %s26
      %p229 = scmp.lt.s32.totalorder %s26, 3
      %p230 = pnand %p228, %p229
      %p231 = pneg %p230
      // Predicated region
      $region33: #{tpu_custom_call.1} parent=5 // pred_check
        _
      $region34: #{tpu_custom_call.1} parent=5 // pred_check_branch
        %233 = sbr.rel (%p230) target = $region36
      $region35: #{tpu_custom_call.1} parent=5 // pred_region
        %s234 = ssub.s32 %s26, 1
        %s235 = sand.u32 %s53, 1
        %s236 = scalar_lea.sflag [#allocation7], %s235
        %s237 = sand.u32 %s53, 1
        %s238 = smul.addr %s237, 32
        %s239 = scalar_lea.vmem [#allocation6], %s238
        // Predicated region
        $region37: #{tpu_custom_call.1} parent=35 // pred_check
          %p240 = pneg %p66
        $region38: #{tpu_custom_call.1} parent=35 // pred_check_branch
          %242 = sbr.rel (%p240) target = $region40
        $region39: #{tpu_custom_call.1} parent=35 // pred_region
          %244 = dma.done %s236, 512
        $region40: #{tpu_custom_call.1} parent=35 // pred_fallthru
          _
        // Predicated region
        $region41: #{tpu_custom_call.1} parent=35 // pred_check
          %p245 = pneg %p87
        $region42: #{tpu_custom_call.1} parent=35 // pred_check_branch
          %247 = sbr.rel (%p245) target = $region44
        $region43: #{tpu_custom_call.1} parent=35 // pred_region
          %249 = dma.done [#allocation10], 1024
        $region44: #{tpu_custom_call.1} parent=35 // pred_fallthru
          _
        // Predicated region
        $region45: #{tpu_custom_call.1} parent=35 // pred_check
          %p250 = pneg %p108
        $region46: #{tpu_custom_call.1} parent=35 // pred_check_branch
          %252 = sbr.rel (%p250) target = $region48
        $region47: #{tpu_custom_call.1} parent=35 // pred_region
          %254 = dma.done [#allocation10], 1024
        $region48: #{tpu_custom_call.1} parent=35 // pred_fallthru
          _
        %s255 = sand.u32 %s53, 1
        %s256 = scalar_lea.sflag [#allocation7], %s255
        %s257 = sand.u32 %s53, 1
        %s258 = smul.addr %s257, 32
        %s259 = scalar_lea.vmem [#allocation6], %s258
        %p260 = pneg %p66
        %p261 = pneg %p63
        %p262 = pneg %p87
        %p263 = pneg %p84
        %p264 = pneg %p108
        %p265 = pneg %p105
        %p266 = pneg %p129
        %p267 = pneg %p126
        %p268 = pneg %p155
        %p269 = pneg %p152
        %s270 = sand.u32 %s142, 1
        %s271 = scalar_lea.sflag [#allocation8], %s270
        %s272 = sand.u32 %s142, 1
        %s273 = smul.addr %s272, 8
        %s274 = scalar_lea.vmem [#allocation12], %s273
        %s275 = sadd.s32 %s35, %s36
        %s276 = smul.u32 8, %s275
        %p277 = scmp.eq.s32.totalorder %s36, 0
        // Predicated region
        $region49: #{tpu_custom_call.1} parent=35 // pred_check
          %p278 = pneg %p277
        $region50: #{tpu_custom_call.1} parent=35 // pred_check_branch
          %280 = sbr.rel (%p278) target = $region52
        $region51: #{tpu_custom_call.1} parent=35 // pred_region
          %281 = vst [vmem:[#allocation2] sm:$0xff] 0.0
          %282 = vst [vmem:[#allocation3] sm:$0xff] 0.0
        $region52: #{tpu_custom_call.1} parent=35 // pred_fallthru
          _
        %s283 = sadd.s32 %s35, %s36
        %s284 = smul.u32 %s283, 8
        %s285 = smul.u32 %s36, 8
        %v286 = vlaneseq
        %v287 = vshrl.u32 %v286, 7
        %s288 = sld [smem:[#allocation5 + %s284]]
        %s289 = sshra.s32 %s284, 7
        %s290 = sand.u32 %s284, 127
        %s291 = sadd.s32 %s289, 1
        %s292 = smul.u32 %s291, 128
        %s293 = sshra.s32 %s284, 7
        %s294 = sand.u32 %s284, 127
        %s295 = sadd.s32 %s292, %s294
        %s296 = sld [smem:[#allocation5 + %s295]]
        %v297 = vld [vmem:[%s239] sm:$0xf]
        %v298 = vunpack.c.l.bf16 %v297
        %v299 = vstv %s288
        %vm300 = vcmp.ge.s32.totalorder %v287, %v299
        %v301 = vstv %s296
        %vm302 = vcmp.lt.s32.totalorder %v287, %v301
        %vm303 = vmand %vm300, %vm302
        %p304 = scmp.gt.s32.totalorder %s296, %s288
        %s305 = ssub.s32 %s296, %s288
        %p306 = scmp.gt.s32.totalorder %s305, 1
        %s307 = scalar_select %p306, %s305, 1
        %s308 = scvt.s32.f32 %s307
        %v309 = vsel %vm303, 1, 0
        %vm310 = vcmp.eq.s32.totalorder %v309, 1
        %v311 = vsel %vm310, %v298, 0.0
        %v312 = vrot.slane %v311, 4
        %v313 = vadd.f32 %v311, %v312
        %v314 = vrot.slane %v313, 2
        %v315 = vadd.f32 %v313, %v314
        %v316 = vrot.slane %v315, 1
        %v317 = vadd.f32 %v315, %v316
        %v318 = vstv %s308
        %v319 = vrcp.pop %v318
        %v320 = vmul.f32 %v318, %v319
        %v321 = vsub.f32 1.0, %v320
        %v322 = vmul.f32 %v319, %v321
        %v323 = vadd.f32 %v319, %v322
        %vm324 = vweird.f32 %v318
        %vm325 = vweird.f32 %v319
        %vm326 = vmor %vm324, %vm325
        %v327 = vsel %vm326, %v319, %v323
        %v328 = vand.u32 2147483647, %v318
        %vm329 = vcmp.eq.f32.partialorder %v328, 8.507059e+37
        %v330 = vand.u32 %v318, 2147483648
        %v331 = vor.u32 1.1754944e-38, %v330
        %v332 = vsel %vm329, %v331, %v327
        %v333 = vmul.f32 %v317, %v332
        %s334 = scalar_select %p304, 1, 0
        %v335 = vstv %s334
        %vm336 = vcmp.eq.s32.totalorder %v335, 1
        %v337 = vsel %vm336, %v333, 0.0
        %v338 = vsel %vm310, %v298, -inf
        %v339 = vrot.slane %v338, 4
        %v340 = vmax.f32 %v338, %v339
        %v341 = vrot.slane %v340, 2
        %v342 = vmax.f32 %v340, %v341
        %v343 = vrot.slane %v342, 1
        %v344 = vmax.f32 %v342, %v343
        %v345 = vsel %vm336, %v344, 0.0
        %s346 = scalar_lea.vmem [#allocation2], %s285
        %347 = vst [vmem:[%s346] sm:$0x1] %v337
        %s348 = scalar_lea.vmem [#allocation3], %s285
        %349 = vst [vmem:[%s348] sm:$0x1] %v345
        %s350 = sadd.s32 %s284, 1
        %s351 = sld [smem:[#allocation5 + %s350]]
        %s352 = sshra.s32 %s350, 7
        %s353 = sand.u32 %s350, 127
        %s354 = sadd.s32 %s352, 1
        %s355 = smul.u32 %s354, 128
        %s356 = sshra.s32 %s350, 7
        %s357 = sand.u32 %s350, 127
        %s358 = sadd.s32 %s355, %s357
        %s359 = sld [smem:[#allocation5 + %s358]]
        %s360 = scalar_lea.vmem %s239, 4 [#allocation6]
        %v361 = vld [vmem:[%s360] sm:$0xf]
        %v362 = vunpack.c.l.bf16 %v361
        %v363 = vstv %s351
        %vm364 = vcmp.ge.s32.totalorder %v287, %v363
        %v365 = vstv %s359
        %vm366 = vcmp.lt.s32.totalorder %v287, %v365
        %vm367 = vmand %vm364, %vm366
        %p368 = scmp.gt.s32.totalorder %s359, %s351
        %s369 = ssub.s32 %s359, %s351
        %p370 = scmp.gt.s32.totalorder %s369, 1
        %s371 = scalar_select %p370, %s369, 1
        %s372 = scvt.s32.f32 %s371
        %v373 = vsel %vm367, 1, 0
        %vm374 = vcmp.eq.s32.totalorder %v373, 1
        %v375 = vsel %vm374, %v362, 0.0
        %v376 = vrot.slane %v375, 4
        %v377 = vadd.f32 %v375, %v376
        %v378 = vrot.slane %v377, 2
        %v379 = vadd.f32 %v377, %v378
        %v380 = vrot.slane %v379, 1
        %v381 = vadd.f32 %v379, %v380
        %v382 = vstv %s372
        %v383 = vrcp.pop %v382
        %v384 = vmul.f32 %v382, %v383
        %v385 = vsub.f32 1.0, %v384
        %v386 = vmul.f32 %v383, %v385
        %v387 = vadd.f32 %v383, %v386
        %vm388 = vweird.f32 %v382
        %vm389 = vweird.f32 %v383
        %vm390 = vmor %vm388, %vm389
        %v391 = vsel %vm390, %v383, %v387
        %v392 = vand.u32 2147483647, %v382
        %vm393 = vcmp.eq.f32.partialorder %v392, 8.507059e+37
        %v394 = vand.u32 %v382, 2147483648
        %v395 = vor.u32 1.1754944e-38, %v394
        %v396 = vsel %vm393, %v395, %v391
        %v397 = vmul.f32 %v381, %v396
        %s398 = scalar_select %p368, 1, 0
        %v399 = vstv %s398
        %vm400 = vcmp.eq.s32.totalorder %v399, 1
        %v401 = vsel %vm400, %v397, 0.0
        %v402 = vsel %vm374, %v362, -inf
        %v403 = vrot.slane %v402, 4
        %v404 = vmax.f32 %v402, %v403
        %v405 = vrot.slane %v404, 2
        %v406 = vmax.f32 %v404, %v405
        %v407 = vrot.slane %v406, 1
        %v408 = vmax.f32 %v406, %v407
        %v409 = vsel %vm400, %v408, 0.0
        %s410 = sadd.s32 %s285, 1
        %s411 = scalar_lea.vmem [#allocation2], %s410
        %412 = vst [vmem:[%s411] sm:$0x1] %v401
        %s413 = scalar_lea.vmem [#allocation3], %s410
        %414 = vst [vmem:[%s413] sm:$0x1] %v409
        %s415 = sadd.s32 %s284, 2
        %s416 = sld [smem:[#allocation5 + %s415]]
        %s417 = sshra.s32 %s415, 7
        %s418 = sand.u32 %s415, 127
        %s419 = sadd.s32 %s417, 1
        %s420 = smul.u32 %s419, 128
        %s421 = sshra.s32 %s415, 7
        %s422 = sand.u32 %s415, 127
        %s423 = sadd.s32 %s420, %s422
        %s424 = sld [smem:[#allocation5 + %s423]]
        %s425 = scalar_lea.vmem %s239, 8 [#allocation6]
        %v426 = vld [vmem:[%s425] sm:$0xf]
        %v427 = vunpack.c.l.bf16 %v426
        %v428 = vstv %s416
        %vm429 = vcmp.ge.s32.totalorder %v287, %v428
        %v430 = vstv %s424
        %vm431 = vcmp.lt.s32.totalorder %v287, %v430
        %vm432 = vmand %vm429, %vm431
        %p433 = scmp.gt.s32.totalorder %s424, %s416
        %s434 = ssub.s32 %s424, %s416
        %p435 = scmp.gt.s32.totalorder %s434, 1
        %s436 = scalar_select %p435, %s434, 1
        %s437 = scvt.s32.f32 %s436
        %v438 = vsel %vm432, 1, 0
        %vm439 = vcmp.eq.s32.totalorder %v438, 1
        %v440 = vsel %vm439, %v427, 0.0
        %v441 = vrot.slane %v440, 4
        %v442 = vadd.f32 %v440, %v441
        %v443 = vrot.slane %v442, 2
        %v444 = vadd.f32 %v442, %v443
        %v445 = vrot.slane %v444, 1
        %v446 = vadd.f32 %v444, %v445
        %v447 = vstv %s437
        %v448 = vrcp.pop %v447
        %v449 = vmul.f32 %v447, %v448
        %v450 = vsub.f32 1.0, %v449
        %v451 = vmul.f32 %v448, %v450
        %v452 = vadd.f32 %v448, %v451
        %vm453 = vweird.f32 %v447
        %vm454 = vweird.f32 %v448
        %vm455 = vmor %vm453, %vm454
        %v456 = vsel %vm455, %v448, %v452
        %v457 = vand.u32 2147483647, %v447
        %vm458 = vcmp.eq.f32.partialorder %v457, 8.507059e+37
        %v459 = vand.u32 %v447, 2147483648
        %v460 = vor.u32 1.1754944e-38, %v459
        %v461 = vsel %vm458, %v460, %v456
        %v462 = vmul.f32 %v446, %v461
        %s463 = scalar_select %p433, 1, 0
        %v464 = vstv %s463
        %vm465 = vcmp.eq.s32.totalorder %v464, 1
        %v466 = vsel %vm465, %v462, 0.0
        %v467 = vsel %vm439, %v427, -inf
        %v468 = vrot.slane %v467, 4
        %v469 = vmax.f32 %v467, %v468
        %v470 = vrot.slane %v469, 2
        %v471 = vmax.f32 %v469, %v470
        %v472 = vrot.slane %v471, 1
        %v473 = vmax.f32 %v471, %v472
        %v474 = vsel %vm465, %v473, 0.0
        %s475 = sadd.s32 %s285, 2
        %s476 = scalar_lea.vmem [#allocation2], %s475
        %477 = vst [vmem:[%s476] sm:$0x1] %v466
        %s478 = scalar_lea.vmem [#allocation3], %s475
        %479 = vst [vmem:[%s478] sm:$0x1] %v474
        %s480 = sadd.s32 %s284, 3
        %s481 = sld [smem:[#allocation5 + %s480]]
        %s482 = sshra.s32 %s480, 7
        %s483 = sand.u32 %s480, 127
        %s484 = sadd.s32 %s482, 1
        %s485 = smul.u32 %s484, 128
        %s486 = sshra.s32 %s480, 7
        %s487 = sand.u32 %s480, 127
        %s488 = sadd.s32 %s485, %s487
        %s489 = sld [smem:[#allocation5 + %s488]]
        %s490 = scalar_lea.vmem %s239, 12 [#allocation6]
        %v491 = vld [vmem:[%s490] sm:$0xf]
        %v492 = vunpack.c.l.bf16 %v491
        %v493 = vstv %s481
        %vm494 = vcmp.ge.s32.totalorder %v287, %v493
        %v495 = vstv %s489
        %vm496 = vcmp.lt.s32.totalorder %v287, %v495
        %vm497 = vmand %vm494, %vm496
        %p498 = scmp.gt.s32.totalorder %s489, %s481
        %s499 = ssub.s32 %s489, %s481
        %p500 = scmp.gt.s32.totalorder %s499, 1
        %s501 = scalar_select %p500, %s499, 1
        %s502 = scvt.s32.f32 %s501
        %v503 = vsel %vm497, 1, 0
        %vm504 = vcmp.eq.s32.totalorder %v503, 1
        %v505 = vsel %vm504, %v492, 0.0
        %v506 = vrot.slane %v505, 4
        %v507 = vadd.f32 %v505, %v506
        %v508 = vrot.slane %v507, 2
        %v509 = vadd.f32 %v507, %v508
        %v510 = vrot.slane %v509, 1
        %v511 = vadd.f32 %v509, %v510
        %v512 = vstv %s502
        %v513 = vrcp.pop %v512
        %v514 = vmul.f32 %v512, %v513
        %v515 = vsub.f32 1.0, %v514
        %v516 = vmul.f32 %v513, %v515
        %v517 = vadd.f32 %v513, %v516
        %vm518 = vweird.f32 %v512
        %vm519 = vweird.f32 %v513
        %vm520 = vmor %vm518, %vm519
        %v521 = vsel %vm520, %v513, %v517
        %v522 = vand.u32 2147483647, %v512
        %vm523 = vcmp.eq.f32.partialorder %v522, 8.507059e+37
        %v524 = vand.u32 %v512, 2147483648
        %v525 = vor.u32 1.1754944e-38, %v524
        %v526 = vsel %vm523, %v525, %v521
        %v527 = vmul.f32 %v511, %v526
        %s528 = scalar_select %p498, 1, 0
        %v529 = vstv %s528
        %vm530 = vcmp.eq.s32.totalorder %v529, 1
        %v531 = vsel %vm530, %v527, 0.0
        %v532 = vsel %vm504, %v492, -inf
        %v533 = vrot.slane %v532, 4
        %v534 = vmax.f32 %v532, %v533
        %v535 = vrot.slane %v534, 2
        %v536 = vmax.f32 %v534, %v535
        %v537 = vrot.slane %v536, 1
        %v538 = vmax.f32 %v536, %v537
        %v539 = vsel %vm530, %v538, 0.0
        %s540 = sadd.s32 %s285, 3
        %s541 = scalar_lea.vmem [#allocation2], %s540
        %542 = vst [vmem:[%s541] sm:$0x1] %v531
        %s543 = scalar_lea.vmem [#allocation3], %s540
        %544 = vst [vmem:[%s543] sm:$0x1] %v539
        %s545 = sadd.s32 %s284, 4
        %s546 = sld [smem:[#allocation5 + %s545]]
        %s547 = sshra.s32 %s545, 7
        %s548 = sand.u32 %s545, 127
        %s549 = sadd.s32 %s547, 1
        %s550 = smul.u32 %s549, 128
        %s551 = sshra.s32 %s545, 7
        %s552 = sand.u32 %s545, 127
        %s553 = sadd.s32 %s550, %s552
        %s554 = sld [smem:[#allocation5 + %s553]]
        %s555 = scalar_lea.vmem %s239, 16 [#allocation6]
        %v556 = vld [vmem:[%s555] sm:$0xf]
        %v557 = vunpack.c.l.bf16 %v556
        %v558 = vstv %s546
        %vm559 = vcmp.ge.s32.totalorder %v287, %v558
        %v560 = vstv %s554
        %vm561 = vcmp.lt.s32.totalorder %v287, %v560
        %vm562 = vmand %vm559, %vm561
        %p563 = scmp.gt.s32.totalorder %s554, %s546
        %s564 = ssub.s32 %s554, %s546
        %p565 = scmp.gt.s32.totalorder %s564, 1
        %s566 = scalar_select %p565, %s564, 1
        %s567 = scvt.s32.f32 %s566
        %v568 = vsel %vm562, 1, 0
        %vm569 = vcmp.eq.s32.totalorder %v568, 1
        %v570 = vsel %vm569, %v557, 0.0
        %v571 = vrot.slane %v570, 4
        %v572 = vadd.f32 %v570, %v571
        %v573 = vrot.slane %v572, 2
        %v574 = vadd.f32 %v572, %v573
        %v575 = vrot.slane %v574, 1
        %v576 = vadd.f32 %v574, %v575
        %v577 = vstv %s567
        %v578 = vrcp.pop %v577
        %v579 = vmul.f32 %v577, %v578
        %v580 = vsub.f32 1.0, %v579
        %v581 = vmul.f32 %v578, %v580
        %v582 = vadd.f32 %v578, %v581
        %vm583 = vweird.f32 %v577
        %vm584 = vweird.f32 %v578
        %vm585 = vmor %vm583, %vm584
        %v586 = vsel %vm585, %v578, %v582
        %v587 = vand.u32 2147483647, %v577
        %vm588 = vcmp.eq.f32.partialorder %v587, 8.507059e+37
        %v589 = vand.u32 %v577, 2147483648
        %v590 = vor.u32 1.1754944e-38, %v589
        %v591 = vsel %vm588, %v590, %v586
        %v592 = vmul.f32 %v576, %v591
        %s593 = scalar_select %p563, 1, 0
        %v594 = vstv %s593
        %vm595 = vcmp.eq.s32.totalorder %v594, 1
        %v596 = vsel %vm595, %v592, 0.0
        %v597 = vsel %vm569, %v557, -inf
        %v598 = vrot.slane %v597, 4
        %v599 = vmax.f32 %v597, %v598
        %v600 = vrot.slane %v599, 2
        %v601 = vmax.f32 %v599, %v600
        %v602 = vrot.slane %v601, 1
        %v603 = vmax.f32 %v601, %v602
        %v604 = vsel %vm595, %v603, 0.0
        %s605 = sadd.s32 %s285, 4
        %s606 = scalar_lea.vmem [#allocation2], %s605
        %607 = vst [vmem:[%s606] sm:$0x1] %v596
        %s608 = scalar_lea.vmem [#allocation3], %s605
        %609 = vst [vmem:[%s608] sm:$0x1] %v604
        %s610 = sadd.s32 %s284, 5
        %s611 = sld [smem:[#allocation5 + %s610]]
        %s612 = sshra.s32 %s610, 7
        %s613 = sand.u32 %s610, 127
        %s614 = sadd.s32 %s612, 1
        %s615 = smul.u32 %s614, 128
        %s616 = sshra.s32 %s610, 7
        %s617 = sand.u32 %s610, 127
        %s618 = sadd.s32 %s615, %s617
        %s619 = sld [smem:[#allocation5 + %s618]]
        %s620 = scalar_lea.vmem %s239, 20 [#allocation6]
        %v621 = vld [vmem:[%s620] sm:$0xf]
        %v622 = vunpack.c.l.bf16 %v621
        %v623 = vstv %s611
        %vm624 = vcmp.ge.s32.totalorder %v287, %v623
        %v625 = vstv %s619
        %vm626 = vcmp.lt.s32.totalorder %v287, %v625
        %vm627 = vmand %vm624, %vm626
        %p628 = scmp.gt.s32.totalorder %s619, %s611
        %s629 = ssub.s32 %s619, %s611
        %p630 = scmp.gt.s32.totalorder %s629, 1
        %s631 = scalar_select %p630, %s629, 1
        %s632 = scvt.s32.f32 %s631
        %v633 = vsel %vm627, 1, 0
        %vm634 = vcmp.eq.s32.totalorder %v633, 1
        %v635 = vsel %vm634, %v622, 0.0
        %v636 = vrot.slane %v635, 4
        %v637 = vadd.f32 %v635, %v636
        %v638 = vrot.slane %v637, 2
        %v639 = vadd.f32 %v637, %v638
        %v640 = vrot.slane %v639, 1
        %v641 = vadd.f32 %v639, %v640
        %v642 = vstv %s632
        %v643 = vrcp.pop %v642
        %v644 = vmul.f32 %v642, %v643
        %v645 = vsub.f32 1.0, %v644
        %v646 = vmul.f32 %v643, %v645
        %v647 = vadd.f32 %v643, %v646
        %vm648 = vweird.f32 %v642
        %vm649 = vweird.f32 %v643
        %vm650 = vmor %vm648, %vm649
        %v651 = vsel %vm650, %v643, %v647
        %v652 = vand.u32 2147483647, %v642
        %vm653 = vcmp.eq.f32.partialorder %v652, 8.507059e+37
        %v654 = vand.u32 %v642, 2147483648
        %v655 = vor.u32 1.1754944e-38, %v654
        %v656 = vsel %vm653, %v655, %v651
        %v657 = vmul.f32 %v641, %v656
        %s658 = scalar_select %p628, 1, 0
        %v659 = vstv %s658
        %vm660 = vcmp.eq.s32.totalorder %v659, 1
        %v661 = vsel %vm660, %v657, 0.0
        %v662 = vsel %vm634, %v622, -inf
        %v663 = vrot.slane %v662, 4
        %v664 = vmax.f32 %v662, %v663
        %v665 = vrot.slane %v664, 2
        %v666 = vmax.f32 %v664, %v665
        %v667 = vrot.slane %v666, 1
        %v668 = vmax.f32 %v666, %v667
        %v669 = vsel %vm660, %v668, 0.0
        %s670 = sadd.s32 %s285, 5
        %s671 = scalar_lea.vmem [#allocation2], %s670
        %672 = vst [vmem:[%s671] sm:$0x1] %v661
        %s673 = scalar_lea.vmem [#allocation3], %s670
        %674 = vst [vmem:[%s673] sm:$0x1] %v669
        %s675 = sadd.s32 %s284, 6
        %s676 = sld [smem:[#allocation5 + %s675]]
        %s677 = sshra.s32 %s675, 7
        %s678 = sand.u32 %s675, 127
        %s679 = sadd.s32 %s677, 1
        %s680 = smul.u32 %s679, 128
        %s681 = sshra.s32 %s675, 7
        %s682 = sand.u32 %s675, 127
        %s683 = sadd.s32 %s680, %s682
        %s684 = sld [smem:[#allocation5 + %s683]]
        %s685 = scalar_lea.vmem %s239, 24 [#allocation6]
        %v686 = vld [vmem:[%s685] sm:$0xf]
        %v687 = vunpack.c.l.bf16 %v686
        %v688 = vstv %s676
        %vm689 = vcmp.ge.s32.totalorder %v287, %v688
        %v690 = vstv %s684
        %vm691 = vcmp.lt.s32.totalorder %v287, %v690
        %vm692 = vmand %vm689, %vm691
        %p693 = scmp.gt.s32.totalorder %s684, %s676
        %s694 = ssub.s32 %s684, %s676
        %p695 = scmp.gt.s32.totalorder %s694, 1
        %s696 = scalar_select %p695, %s694, 1
        %s697 = scvt.s32.f32 %s696
        %v698 = vsel %vm692, 1, 0
        %vm699 = vcmp.eq.s32.totalorder %v698, 1
        %v700 = vsel %vm699, %v687, 0.0
        %v701 = vrot.slane %v700, 4
        %v702 = vadd.f32 %v700, %v701
        %v703 = vrot.slane %v702, 2
        %v704 = vadd.f32 %v702, %v703
        %v705 = vrot.slane %v704, 1
        %v706 = vadd.f32 %v704, %v705
        %v707 = vstv %s697
        %v708 = vrcp.pop %v707
        %v709 = vmul.f32 %v707, %v708
        %v710 = vsub.f32 1.0, %v709
        %v711 = vmul.f32 %v708, %v710
        %v712 = vadd.f32 %v708, %v711
        %vm713 = vweird.f32 %v707
        %vm714 = vweird.f32 %v708
        %vm715 = vmor %vm713, %vm714
        %v716 = vsel %vm715, %v708, %v712
        %v717 = vand.u32 2147483647, %v707
        %vm718 = vcmp.eq.f32.partialorder %v717, 8.507059e+37
        %v719 = vand.u32 %v707, 2147483648
        %v720 = vor.u32 1.1754944e-38, %v719
        %v721 = vsel %vm718, %v720, %v716
        %v722 = vmul.f32 %v706, %v721
        %s723 = scalar_select %p693, 1, 0
        %v724 = vstv %s723
        %vm725 = vcmp.eq.s32.totalorder %v724, 1
        %v726 = vsel %vm725, %v722, 0.0
        %v727 = vsel %vm699, %v687, -inf
        %v728 = vrot.slane %v727, 4
        %v729 = vmax.f32 %v727, %v728
        %v730 = vrot.slane %v729, 2
        %v731 = vmax.f32 %v729, %v730
        %v732 = vrot.slane %v731, 1
        %v733 = vmax.f32 %v731, %v732
        %v734 = vsel %vm725, %v733, 0.0
        %s735 = sadd.s32 %s285, 6
        %s736 = scalar_lea.vmem [#allocation2], %s735
        %737 = vst [vmem:[%s736] sm:$0x1] %v726
        %s738 = scalar_lea.vmem [#allocation3], %s735
        %739 = vst [vmem:[%s738] sm:$0x1] %v734
        %s740 = sadd.s32 %s284, 7
        %s741 = sld [smem:[#allocation5 + %s740]]
        %s742 = sshra.s32 %s740, 7
        %s743 = sand.u32 %s740, 127
        %s744 = sadd.s32 %s742, 1
        %s745 = smul.u32 %s744, 128
        %s746 = sshra.s32 %s740, 7
        %s747 = sand.u32 %s740, 127
        %s748 = sadd.s32 %s745, %s747
        %s749 = sld [smem:[#allocation5 + %s748]]
        %s750 = scalar_lea.vmem %s239, 28 [#allocation6]
        %v751 = vld [vmem:[%s750] sm:$0xf]
        %v752 = vunpack.c.l.bf16 %v751
        %v753 = vstv %s741
        %vm754 = vcmp.ge.s32.totalorder %v287, %v753
        %v755 = vstv %s749
        %vm756 = vcmp.lt.s32.totalorder %v287, %v755
        %vm757 = vmand %vm754, %vm756
        %p758 = scmp.gt.s32.totalorder %s749, %s741
        %s759 = ssub.s32 %s749, %s741
        %p760 = scmp.gt.s32.totalorder %s759, 1
        %s761 = scalar_select %p760, %s759, 1
        %s762 = scvt.s32.f32 %s761
        %v763 = vsel %vm757, 1, 0
        %vm764 = vcmp.eq.s32.totalorder %v763, 1
        %v765 = vsel %vm764, %v752, 0.0
        %v766 = vrot.slane %v765, 4
        %v767 = vadd.f32 %v765, %v766
        %v768 = vrot.slane %v767, 2
        %v769 = vadd.f32 %v767, %v768
        %v770 = vrot.slane %v769, 1
        %v771 = vadd.f32 %v769, %v770
        %v772 = vstv %s762
        %v773 = vrcp.pop %v772
        %v774 = vmul.f32 %v772, %v773
        %v775 = vsub.f32 1.0, %v774
        %v776 = vmul.f32 %v773, %v775
        %v777 = vadd.f32 %v773, %v776
        %vm778 = vweird.f32 %v772
        %vm779 = vweird.f32 %v773
        %vm780 = vmor %vm778, %vm779
        %v781 = vsel %vm780, %v773, %v777
        %v782 = vand.u32 2147483647, %v772
        %vm783 = vcmp.eq.f32.partialorder %v782, 8.507059e+37
        %v784 = vand.u32 %v772, 2147483648
        %v785 = vor.u32 1.1754944e-38, %v784
        %v786 = vsel %vm783, %v785, %v781
        %v787 = vmul.f32 %v771, %v786
        %s788 = scalar_select %p758, 1, 0
        %v789 = vstv %s788
        %vm790 = vcmp.eq.s32.totalorder %v789, 1
        %v791 = vsel %vm790, %v787, 0.0
        %v792 = vsel %vm764, %v752, -inf
        %v793 = vrot.slane %v792, 4
        %v794 = vmax.f32 %v792, %v793
        %v795 = vrot.slane %v794, 2
        %v796 = vmax.f32 %v794, %v795
        %v797 = vrot.slane %v796, 1
        %v798 = vmax.f32 %v796, %v797
        %v799 = vsel %vm790, %v798, 0.0
        %s800 = sadd.s32 %s285, 7
        %s801 = scalar_lea.vmem [#allocation2], %s800
        %802 = vst [vmem:[%s801] sm:$0x1] %v791
        %s803 = scalar_lea.vmem [#allocation3], %s800
        %804 = vst [vmem:[%s803] sm:$0x1] %v799
        // Predicated region
        $region53: #{tpu_custom_call.1} parent=35 // pred_check
          %p805 = pneg %p277
        $region54: #{tpu_custom_call.1} parent=35 // pred_check_branch
          %807 = sbr.rel (%p805) target = $region56
        $region55: #{tpu_custom_call.1} parent=35 // pred_region
          %v808 = vld [vmem:[#allocation9] sm:$0xf]
          %v809 = vld [vmem:[#allocation9 + $0x4] sm:$0xf]
          %v810 = vld [vmem:[#allocation9 + $0x8] sm:$0xf]
          %v811 = vld [vmem:[#allocation9 + $0xc] sm:$0xf]
          %v812 = vld [vmem:[#allocation9 + $0x10] sm:$0xf]
          %v813 = vld [vmem:[#allocation9 + $0x14] sm:$0xf]
          %v814 = vld [vmem:[#allocation9 + $0x18] sm:$0xf]
          %v815 = vld [vmem:[#allocation9 + $0x1c] sm:$0xf]
          %v816 = vld [vmem:[#allocation9 + $0x20] sm:$0xf]
          %v817 = vld [vmem:[#allocation9 + $0x24] sm:$0xf]
          %v818 = vld [vmem:[#allocation9 + $0x28] sm:$0xf]
          %v819 = vld [vmem:[#allocation9 + $0x2c] sm:$0xf]
          %v820 = vld [vmem:[#allocation9 + $0x30] sm:$0xf]
          %v821 = vld [vmem:[#allocation9 + $0x34] sm:$0xf]
          %v822 = vld [vmem:[#allocation9 + $0x38] sm:$0xf]
          %v823 = vld [vmem:[#allocation9 + $0x3c] sm:$0xf]
          %v824 = vunpack.c.l.bf16 %v808
          %v825 = vunpack.c.l.bf16 %v809
          %v826 = vunpack.c.l.bf16 %v810
          %v827 = vunpack.c.l.bf16 %v811
          %v828 = vunpack.c.l.bf16 %v812
          %v829 = vunpack.c.l.bf16 %v813
          %v830 = vunpack.c.l.bf16 %v814
          %v831 = vunpack.c.l.bf16 %v815
          %v832 = vunpack.c.l.bf16 %v816
          %v833 = vunpack.c.l.bf16 %v817
          %v834 = vunpack.c.l.bf16 %v818
          %v835 = vunpack.c.l.bf16 %v819
          %v836 = vunpack.c.l.bf16 %v820
          %v837 = vunpack.c.l.bf16 %v821
          %v838 = vunpack.c.l.bf16 %v822
          %v839 = vunpack.c.l.bf16 %v823
          %v840 = vld [vmem:[#allocation11] sm:$0xf]
          %v841 = vld [vmem:[#allocation11 + $0x4] sm:$0xf]
          %v842 = vld [vmem:[#allocation11 + $0x8] sm:$0xf]
          %v843 = vld [vmem:[#allocation11 + $0xc] sm:$0xf]
          %v844 = vld [vmem:[#allocation11 + $0x10] sm:$0xf]
          %v845 = vld [vmem:[#allocation11 + $0x14] sm:$0xf]
          %v846 = vld [vmem:[#allocation11 + $0x18] sm:$0xf]
          %v847 = vld [vmem:[#allocation11 + $0x1c] sm:$0xf]
          %v848 = vld [vmem:[#allocation11 + $0x20] sm:$0xf]
          %v849 = vld [vmem:[#allocation11 + $0x24] sm:$0xf]
          %v850 = vld [vmem:[#allocation11 + $0x28] sm:$0xf]
          %v851 = vld [vmem:[#allocation11 + $0x2c] sm:$0xf]
          %v852 = vld [vmem:[#allocation11 + $0x30] sm:$0xf]
          %v853 = vld [vmem:[#allocation11 + $0x34] sm:$0xf]
          %v854 = vld [vmem:[#allocation11 + $0x38] sm:$0xf]
          %v855 = vld [vmem:[#allocation11 + $0x3c] sm:$0xf]
          %v856 = vunpack.c.l.bf16 %v840
          %v857 = vunpack.c.l.bf16 %v841
          %v858 = vunpack.c.l.bf16 %v842
          %v859 = vunpack.c.l.bf16 %v843
          %v860 = vunpack.c.l.bf16 %v844
          %v861 = vunpack.c.l.bf16 %v845
          %v862 = vunpack.c.l.bf16 %v846
          %v863 = vunpack.c.l.bf16 %v847
          %v864 = vunpack.c.l.bf16 %v848
          %v865 = vunpack.c.l.bf16 %v849
          %v866 = vunpack.c.l.bf16 %v850
          %v867 = vunpack.c.l.bf16 %v851
          %v868 = vunpack.c.l.bf16 %v852
          %v869 = vunpack.c.l.bf16 %v853
          %v870 = vunpack.c.l.bf16 %v854
          %v871 = vunpack.c.l.bf16 %v855
          %v872 = vld [vmem:[#allocation2] sm:$0xff]
          %v873 = vld [vmem:[#allocation3] sm:$0xff]
          %874 = vmatpush.msra.mxu0 %v871
          %875 = vmatpush.msra.mxu0 %v870
          %876 = vmatpush.msra.mxu0 %v869
          %877 = vmatpush.msra.mxu0 %v868
          %878 = vmatpush.msra.mxu0 %v867
          %879 = vmatpush.msra.mxu0 %v866
          %880 = vmatpush.msra.mxu0 %v865
          %881 = vmatpush.msra.mxu0 %v864
          %882 = vmatpush.msra.mxu0 %v863
          %883 = vmatpush.msra.mxu0 %v862
          %884 = vmatpush.msra.mxu0 %v861
          %885 = vmatpush.msra.mxu0 %v860
          %886 = vmatpush.msra.mxu0 %v859
          %887 = vmatpush.msra.mxu0 %v858
          %888 = vmatpush.msra.mxu0 %v857
          %889 = vmatpush.msra.mxu0 %v856
          %890 = vmatmul.f32.gmra.mxu0 %v873
          %v891 = vpop.f32.mrf.mxu0
          %v892 = vadd.f32 0.0, %v891
          %893 = vdwg.mxu0
          %894 = vmatpush.msra.mxu0 %v839
          %895 = vmatpush.msra.mxu0 %v838
          %896 = vmatpush.msra.mxu0 %v837
          %897 = vmatpush.msra.mxu0 %v836
          %898 = vmatpush.msra.mxu0 %v835
          %899 = vmatpush.msra.mxu0 %v834
          %900 = vmatpush.msra.mxu0 %v833
          %901 = vmatpush.msra.mxu0 %v832
          %902 = vmatpush.msra.mxu0 %v831
          %903 = vmatpush.msra.mxu0 %v830
          %904 = vmatpush.msra.mxu0 %v829
          %905 = vmatpush.msra.mxu0 %v828
          %906 = vmatpush.msra.mxu0 %v827
          %907 = vmatpush.msra.mxu0 %v826
          %908 = vmatpush.msra.mxu0 %v825
          %909 = vmatpush.msra.mxu0 %v824
          %910 = vmatmul.f32.gmra.mxu0 %v872
          %v911 = vpop.f32.mrf.mxu0
          %v912 = vadd.f32 %v892, %v911
          %913 = vdwg.mxu0
          %v914 = vld [vmem:[%s4] sm:$0x1]
          %v916 = vperm.slane %v914, 0
          %v918 = vadd.f32 %v912, %v916
          %919 = vst [vmem:[%s274] sm:$0xff] %v918
        $region56: #{tpu_custom_call.1} parent=35 // pred_fallthru
          _
        %s920 = sand.u32 %s142, 1
        %s921 = scalar_lea.sflag [#allocation8], %s920
        %s922 = sand.u32 %s142, 1
        %s923 = smul.addr %s922, 8
        %s924 = scalar_lea.vmem [#allocation12], %s923
        // Predicated region
        $region57: #{tpu_custom_call.1} parent=35 // pred_check
          %p925 = pneg %p152
        $region58: #{tpu_custom_call.1} parent=35 // pred_check_branch
          %927 = sbr.rel (%p925) target = $region60
        $region59: #{tpu_custom_call.1} parent=35 // pred_region
          %929 = vsyncadd %s921, 0
          %s930 = smul.addr %s35, 8
          %s931 = scalar_lea.hbm %s5, %s930
          %s933 = sshll.u32 %s924, 4
          %s934 = int_to_ptr.vmem [resolvable:$true] %s933
          %s935 = sshll.u32 %s931, 4
          %s936 = int_to_ptr.hbm [resolvable:$true] %s935
          %938 = dma.vmem_to_hbm [thread:$0]  %s934, 128, %s936, %s921
        $region60: #{tpu_custom_call.1} parent=35 // pred_fallthru
          _
      $region36: #{tpu_custom_call.1} parent=5 // pred_fallthru
        _
      %p939 = scmp.le.s32.totalorder 2, %s26
      // Predicated region
      $region61: #{tpu_custom_call.1} parent=5 // pred_check
        %p940 = pneg %p939
      $region62: #{tpu_custom_call.1} parent=5 // pred_check_branch
        %942 = sbr.rel (%p940) target = $region64
      $region63: #{tpu_custom_call.1} parent=5 // pred_region
        %s943 = ssub.s32 %s26, 2
        // Predicated region
        $region65: #{tpu_custom_call.1} parent=63 // pred_check
          %p944 = pneg %p158
        $region66: #{tpu_custom_call.1} parent=63 // pred_check_branch
          %946 = sbr.rel (%p944) target = $region68
        $region67: #{tpu_custom_call.1} parent=63 // pred_region
          %s947 = sand.u32 %s143, 1
          %s948 = scalar_lea.sflag [#allocation8], %s947
          %s949 = sand.u32 %s143, 1
          %s950 = smul.addr %s949, 8
          %s951 = scalar_lea.vmem [#allocation12], %s950
          %953 = dma.done %s948, 128
        $region68: #{tpu_custom_call.1} parent=63 // pred_fallthru
          _
      $region64: #{tpu_custom_call.1} parent=5 // pred_fallthru
        _
    $region6: #{tpu_custom_call.1} parent=1 // loop_footer
      %s30 = sadd.s32 1, %s26
    $region7: #{tpu_custom_call.1} parent=1 // loop_footer_branch
      %25 = sbr.rel target = $region3
    $region8: #{tpu_custom_call.1} parent=1 // loop_exit
      _
    %954 = vsyncpa [#allocation7], 1
    %s955 = scalar_lea.sflag [#allocation7], 1
    %956 = vsyncpa %s955, 1
    %957 = vsyncpa [#allocation10], 1
    %958 = vsyncpa [#allocation8], 1
    %s959 = scalar_lea.sflag [#allocation8], 1
    %960 = vsyncpa %s959, 1

</llo_original>
